<compile_context>
chip_gen: v7x
topology: tpu7x:2x2x1
jax: 0.10.0
libtpu: 0.0.40
codegen_flags: <defaults>
</compile_context>

<pallas_src>
import functools

import jax
import jax.numpy as jnp
from jax import lax
from jax.experimental import pallas as pl
from jax.experimental.pallas import tpu as pltpu


# ----------------------------------------------------------------------------
# Fused residual-block kernel.  Internal layout: (C, N*H*W) f32, spatial on
# lanes, flat index f = n*HW + h*W + w.
# ----------------------------------------------------------------------------
def _shift_lanes(v, d):
  """out[:, f] = v[:, (f + d) mod L] (cyclic; wrap positions masked by caller)."""
  L = v.shape[-1]
  d = d % L
  if d == 0:
    return v
  return jnp.concatenate([v[:, d:], v[:, :d]], axis=-1)


def _residual_kernel(
    x_ref, w1_ref, w2_ref, w3_ref, b1_ref, b2_ref, b3_ref,
    g1_ref, be1_ref, g2_ref, be2_ref, m1_ref, m2_ref, sblk_ref,
    out_ref,
    *, N, Cin, Cout, H, W, H2, W2, K, pad, stride, use_bn, has_proj, eps):
  f32 = jnp.float32
  HW, HW2 = H * W, H2 * W2

  # Input as a single lane-dense (Cin, N*HW) slab (lane-aligned concatenation).
  x_all = jnp.concatenate([x_ref[n] for n in range(N)], axis=-1).astype(f32)

  def conv3x3(inp, w_ref, m_ref, Wg):
    # sum over 9 taps: (Cout,Cin_g) @ (masked lane-shift of inp)
    acc = jnp.zeros((Cout, inp.shape[-1]), f32)
    for t in range(K * K):
      kh, kw = t // K, t % K
      d = (kh - pad) * Wg + (kw - pad)
      tap = _shift_lanes(inp, d) * m_ref[t:t + 1, :]
      acc = acc + jnp.dot(w_ref[t], tap, preferred_element_type=f32)
    return acc

  def batchnorm(y, g_ref, be_ref):
    mean = jnp.mean(y, axis=-1, keepdims=True)
    var = jnp.mean(jnp.square(y - mean), axis=-1, keepdims=True)  # biased
    return (y - mean) * lax.rsqrt(var + eps) * g_ref[...] + be_ref[...]

  # ---- conv1 (stride-1 compute; exact subsample via 0/1 matmul if stride>1) --
  y1 = conv3x3(x_all, w1_ref, m1_ref, W)                       # (Cout, N*HW)
  if stride > 1:
    y1 = jnp.dot(y1, sblk_ref[...], preferred_element_type=f32)  # (Cout, N*HW2)
  if use_bn:
    y1 = batchnorm(y1, g1_ref, be1_ref)
  else:
    y1 = y1 + b1_ref[...]          # conv bias only when no BN follows
  a = jnp.maximum(y1, 0.0)                                     # (Cout, N*HW2)

  # ---- conv2 (stride 1 on the (H2, W2) grid) --------------------------------
  y2 = conv3x3(a, w2_ref, m2_ref, W2)                          # (Cout, N*HW2)
  if use_bn:
    y2 = batchnorm(y2, g2_ref, be2_ref)
  else:
    y2 = y2 + b2_ref[...]

  # ---- shortcut + add + ReLU -------------------------------------------------
  if has_proj:
    sc = jnp.dot(w3_ref[...], x_all, preferred_element_type=f32)  # (Cout, N*HW)
    if stride > 1:
      sc = jnp.dot(sc, sblk_ref[...], preferred_element_type=f32)
    sc = sc + b3_ref[...]
  else:
    sc = x_all                      # identity: Cin == Cout, stride == 1

  y = jnp.maximum(y2 + sc, 0.0)                                # (Cout, N*HW2)

  # ---- per-image NCHW-flat stores (free reshape at the wrapper boundary) ----
  for n in range(N):
    out_ref[n, :, :] = y[:, n * HW2:(n + 1) * HW2].astype(out_ref.dtype)


# ----------------------------------------------------------------------------
# Wrapper: NCHW in / NCHW out, parameter & constant prep, single pallas_call.
# ----------------------------------------------------------------------------
def residual_forward(x_nchw, params, *, strides=1, use_bn=True, eps=1e-5):
  N, Cin, H, W = x_nchw.shape
  K, pad = 3, 1
  Cout = params["w1"].shape[-1]
  H2 = (H + 2 * pad - K) // strides + 1
  W2 = (W + 2 * pad - K) // strides + 1
  HW, HW2 = H * W, H2 * W2
  L1, L2 = N * HW, N * HW2
  has_proj = "w3" in params

  f32 = jnp.float32
  dummy = jnp.zeros((1, 1), f32)

  # NCHW -> (N, C, H*W): free reshape, no transpose.
  x_flat = x_nchw.reshape(N, Cin, HW)

  # Per-tap weight matrices, tap-major: (K*K, Cout, Cin_group).
  w1s = jnp.transpose(params["w1"].reshape(K * K, Cin, Cout), (0, 2, 1))
  w2s = jnp.transpose(params["w2"].reshape(K * K, Cout, Cout), (0, 2, 1))
  if has_proj:
    w3m = params["w3"].reshape(Cin, Cout).T                   # (Cout, Cin)
    b3 = params["b3"].reshape(Cout, 1)
  else:
    w3m, b3 = dummy, dummy

  if use_bn:
    b1 = b2 = dummy                 # cancelled by BN mean subtraction
    g1 = params["g1"].reshape(Cout, 1)
    be1 = params["be1"].reshape(Cout, 1)
    g2 = params["g2"].reshape(Cout, 1)
    be2 = params["be2"].reshape(Cout, 1)
  else:
    b1 = params["b1"].reshape(Cout, 1)
    b2 = params["b2"].reshape(Cout, 1)
    g1 = be1 = g2 = be2 = dummy

  # Per-tap boundary masks over the flat spatial axis (same pattern per image).
  def tap_masks(Hg, Wg):
    idx = jnp.arange(Hg * Wg, dtype=jnp.int32)
    h, w = idx // Wg, idx % Wg
    rows = []
    for kh in range(K):
      for kw in range(K):
        dy, dx = kh - pad, kw - pad
        ok = (h + dy >= 0) & (h + dy < Hg) & (w + dx >= 0) & (w + dx < Wg)
        rows.append(ok.astype(f32))
    return jnp.tile(jnp.stack(rows, axis=0), (1, N))           # (9, N*Hg*Wg)

  m1 = tap_masks(H, W)
  m2 = tap_masks(H2, W2)

  # 0/1 block-diagonal subsampling matrix for stride > 1 (exact).
  if strides > 1:
    r = jnp.arange(L1, dtype=jnp.int32)[:, None]
    c = jnp.arange(L2, dtype=jnp.int32)[None, :]
    n_c, rem = c // HW2, c % HW2
    src = n_c * HW + (rem // W2) * (strides * W) + (rem % W2) * strides
    sblk = (r == src).astype(f32)                              # (L1, L2)
  else:
    sblk = dummy

  kernel = functools.partial(
      _residual_kernel, N=N, Cin=Cin, Cout=Cout, H=H, W=W, H2=H2, W2=W2,
      K=K, pad=pad, stride=strides, use_bn=use_bn, has_proj=has_proj, eps=eps)

  vmem_spec = pl.BlockSpec(memory_space=pltpu.MemorySpace.VMEM)
  out_flat = pl.pallas_call(
      kernel,
      out_shape=jax.ShapeDtypeStruct((N, Cout, HW2), x_nchw.dtype),
      in_specs=[vmem_spec] * 14,
      out_specs=vmem_spec,
  )(x_flat, w1s, w2s, w3m, b1, b2, b3, g1, be1, g2, be2, m1, m2, sblk)

  return out_flat.reshape(N, Cout, H2, W2)                     # free reshape


# ----------------------------------------------------------------------------
# Parameter init (matches PyTorch Conv2d / BatchNorm2d defaults).
# Conv weights stored HWIO: (KH, KW, Cin, Cout).
# ----------------------------------------------------------------------------
def init_residual_params(key, in_channels, out_channels, *, strides=1,
                         use_bn=True):
  ks = jax.random.split(key, 6)

  def conv_init(kw_key, kb_key, cin, cout, k):
    fan_in = cin * k * k
    bound = 1.0 / float(fan_in) ** 0.5
    w = jax.random.uniform(kw_key, (k, k, cin, cout), jnp.float32, -bound, bound)
    b = jax.random.uniform(kb_key, (cout,), jnp.float32, -bound, bound)
    return w, b

  p = {}
  p["w1"], p["b1"] = conv_init(ks[0], ks[1], in_channels, out_channels, 3)
  p["w2"], p["b2"] = conv_init(ks[2], ks[3], out_channels, out_channels, 3)
  if in_channels != out_channels or strides != 1:
    p["w3"], p["b3"] = conv_init(ks[4], ks[5], in_channels, out_channels, 1)
  if use_bn:
    p["g1"] = jnp.ones((out_channels,), jnp.float32)
    p["be1"] = jnp.zeros((out_channels,), jnp.float32)
    p["g2"] = jnp.ones((out_channels,), jnp.float32)
    p["be2"] = jnp.zeros((out_channels,), jnp.float32)
  return p


# ----------------------------------------------------------------------------
# Pure-JAX reference (mirrors the PyTorch forward) for verification.
# ----------------------------------------------------------------------------
def residual_reference(x_nchw, params, *, strides=1, use_bn=True, eps=1e-5):
  x = jnp.transpose(x_nchw, (0, 2, 3, 1))

  def conv(inp, w, b, stride, padding):
    y = lax.conv_general_dilated(
        inp, w, (stride, stride), [(padding, padding), (padding, padding)],
        dimension_numbers=("NHWC", "HWIO", "NHWC"),
        precision=lax.Precision.HIGHEST)
    return y + b

  def bn(y, g, be):
    mean = jnp.mean(y, axis=(0, 1, 2), keepdims=True)
    var = jnp.mean(jnp.square(y - mean), axis=(0, 1, 2), keepdims=True)
    return (y - mean) * lax.rsqrt(var + eps) * g + be

  y = conv(x, params["w1"], params["b1"], strides, 1)
  if use_bn:
    y = bn(y, params["g1"], params["be1"])
  y = jax.nn.relu(y)
  y = conv(y, params["w2"], params["b2"], 1, 1)
  if use_bn:
    y = bn(y, params["g2"], params["be2"])
  sc = conv(x, params["w3"], params["b3"], strides, 0) if "w3" in params else x
  return jnp.transpose(jax.nn.relu(y + sc), (0, 3, 1, 2))


if __name__ == "__main__":
  key = jax.random.PRNGKey(0)
  kx, kp1, kp2, kp3 = jax.random.split(key, 4)

  x = jax.random.normal(kx, (2, 4, 16, 16), jnp.float32)   # NCHW input

  # Case 1: projection shortcut (Cin != Cout), BN, stride 1.
  params1 = init_residual_params(kp1, 4, 8, strides=1, use_bn=True)
  out1 = jax.block_until_ready(residual_forward(x, params1, strides=1,
                                                use_bn=True))
  ref1 = residual_reference(x, params1, strides=1, use_bn=True)
  assert out1.shape == (2, 8, 16, 16), out1.shape
  assert jnp.allclose(out1, ref1, atol=2e-4, rtol=2e-4), (
      float(jnp.max(jnp.abs(out1 - ref1))))

  # Case 2: identity shortcut, no BatchNorm.
  params2 = init_residual_params(kp2, 4, 4, strides=1, use_bn=False)
  out2 = jax.block_until_ready(residual_forward(x, params2, strides=1,
                                                use_bn=False))
  ref2 = residual_reference(x, params2, strides=1, use_bn=False)
  assert out2.shape == (2, 4, 16, 16), out2.shape
  assert jnp.allclose(out2, ref2, atol=2e-4, rtol=2e-4), (
      float(jnp.max(jnp.abs(out2 - ref2))))

  # Case 3: projection shortcut with stride 2 (validates the stride>1 path).
  params3 = init_residual_params(kp3, 4, 8, strides=2, use_bn=True)
  out3 = jax.block_until_ready(residual_forward(x, params3, strides=2,
                                                use_bn=True))
  ref3 = residual_reference(x, params3, strides=2, use_bn=True)
  assert out3.shape == (2, 8, 8, 8), out3.shape
  assert jnp.allclose(out3, ref3, atol=2e-4, rtol=2e-4), (
      float(jnp.max(jnp.abs(out3 - ref3))))

  print("KERNEL_OK")
</pallas_src>

<mosaic_0001>
module attributes {stable_mosaic.version = 11 : i64} {
  func.func @_residual_kernel(%arg0: memref<2x4x256xf32, #tpu.memory_space<vmem>>, %arg1: memref<9x8x4xf32, #tpu.memory_space<vmem>>, %arg2: memref<9x8x8xf32, #tpu.memory_space<vmem>>, %arg3: memref<8x4xf32, #tpu.memory_space<vmem>>, %arg4: memref<1x1xf32, #tpu.memory_space<vmem>>, %arg5: memref<1x1xf32, #tpu.memory_space<vmem>>, %arg6: memref<8x1xf32, #tpu.memory_space<vmem>>, %arg7: memref<8x1xf32, #tpu.memory_space<vmem>>, %arg8: memref<8x1xf32, #tpu.memory_space<vmem>>, %arg9: memref<8x1xf32, #tpu.memory_space<vmem>>, %arg10: memref<8x1xf32, #tpu.memory_space<vmem>>, %arg11: memref<9x512xf32, #tpu.memory_space<vmem>>, %arg12: memref<9x512xf32, #tpu.memory_space<vmem>>, %arg13: memref<1x1xf32, #tpu.memory_space<vmem>>, %arg14: memref<2x8x256xf32, #tpu.memory_space<vmem>>) attributes {dimension_semantics = [], scalar_prefetch = 0 : i64, scratch_operands = 0 : i64, tpu.core_type = #tpu.core_type<tc>} {
    %c0 = arith.constant 0 : index
    %c0_0 = arith.constant 0 : index
    %c0_1 = arith.constant 0 : index
    %0 = vector.load %arg0[%c0, %c0_0, %c0_1] : memref<2x4x256xf32, #tpu.memory_space<vmem>>, vector<1x4x256xf32>
    %1 = vector.shape_cast %0 : vector<1x4x256xf32> to vector<4x256xf32>
    %c1 = arith.constant 1 : index
    %c0_2 = arith.constant 0 : index
    %c0_3 = arith.constant 0 : index
    %2 = vector.load %arg0[%c1, %c0_2, %c0_3] : memref<2x4x256xf32, #tpu.memory_space<vmem>>, vector<1x4x256xf32>
    %3 = vector.shape_cast %2 : vector<1x4x256xf32> to vector<4x256xf32>
    %4 = tpu.concatenate %1, %3 in 1 : vector<4x256xf32>, vector<4x256xf32> -> vector<4x512xf32>
    %cst = arith.constant 0.000000e+00 : f32
    %5 = vector.broadcast %cst : f32 to vector<8x512xf32>
    %6 = vector.extract_strided_slice %4 {offsets = [0, 495], sizes = [4, 17], strides = [1, 1]} : vector<4x512xf32> to vector<4x17xf32>
    %7 = vector.extract_strided_slice %4 {offsets = [0, 0], sizes = [4, 495], strides = [1, 1]} : vector<4x512xf32> to vector<4x495xf32>
    %8 = tpu.concatenate %6, %7 in 1 : vector<4x17xf32>, vector<4x495xf32> -> vector<4x512xf32>
    %c0_4 = arith.constant 0 : index
    %c0_5 = arith.constant 0 : index
    %9 = vector.load %arg11[%c0_4, %c0_5] : memref<9x512xf32, #tpu.memory_space<vmem>>, vector<1x512xf32>
    %10 = vector.broadcast %9 : vector<1x512xf32> to vector<4x512xf32>
    %11 = arith.mulf %8, %10 : vector<4x512xf32>
    %c0_6 = arith.constant 0 : index
    %c0_7 = arith.constant 0 : index
    %c0_8 = arith.constant 0 : index
    %12 = vector.load %arg1[%c0_6, %c0_7, %c0_8] : memref<9x8x4xf32, #tpu.memory_space<vmem>>, vector<1x8x4xf32>
    %13 = vector.shape_cast %12 : vector<1x8x4xf32> to vector<8x4xf32>
    %cst_9 = arith.constant dense<0.000000e+00> : vector<8x512xf32>
    %14 = tpu.matmul %13, %11, %cst_9 {dimension_numbers = #tpu.dot_dimension_numbers<[1], [0], [0], [1], [0, 0, 1, 1], [], []>} : vector<8x4xf32>, vector<4x512xf32>, vector<8x512xf32> -> vector<8x512xf32>
    %15 = arith.addf %5, %14 : vector<8x512xf32>
    %16 = vector.extract_strided_slice %4 {offsets = [0, 496], sizes = [4, 16], strides = [1, 1]} : vector<4x512xf32> to vector<4x16xf32>
    %17 = vector.extract_strided_slice %4 {offsets = [0, 0], sizes = [4, 496], strides = [1, 1]} : vector<4x512xf32> to vector<4x496xf32>
    %18 = tpu.concatenate %16, %17 in 1 : vector<4x16xf32>, vector<4x496xf32> -> vector<4x512xf32>
    %c1_10 = arith.constant 1 : index
    %c0_11 = arith.constant 0 : index
    %19 = vector.load %arg11[%c1_10, %c0_11] : memref<9x512xf32, #tpu.memory_space<vmem>>, vector<1x512xf32>
    %20 = vector.broadcast %19 : vector<1x512xf32> to vector<4x512xf32>
    %21 = arith.mulf %18, %20 : vector<4x512xf32>
    %c1_12 = arith.constant 1 : index
    %c0_13 = arith.constant 0 : index
    %c0_14 = arith.constant 0 : index
    %22 = vector.load %arg1[%c1_12, %c0_13, %c0_14] : memref<9x8x4xf32, #tpu.memory_space<vmem>>, vector<1x8x4xf32>
    %23 = vector.shape_cast %22 : vector<1x8x4xf32> to vector<8x4xf32>
    %cst_15 = arith.constant dense<0.000000e+00> : vector<8x512xf32>
    %24 = tpu.matmul %23, %21, %cst_15 {dimension_numbers = #tpu.dot_dimension_numbers<[1], [0], [0], [1], [0, 0, 1, 1], [], []>} : vector<8x4xf32>, vector<4x512xf32>, vector<8x512xf32> -> vector<8x512xf32>
    %25 = arith.addf %15, %24 : vector<8x512xf32>
    %26 = vector.extract_strided_slice %4 {offsets = [0, 497], sizes = [4, 15], strides = [1, 1]} : vector<4x512xf32> to vector<4x15xf32>
    %27 = vector.extract_strided_slice %4 {offsets = [0, 0], sizes = [4, 497], strides = [1, 1]} : vector<4x512xf32> to vector<4x497xf32>
    %28 = tpu.concatenate %26, %27 in 1 : vector<4x15xf32>, vector<4x497xf32> -> vector<4x512xf32>
    %c2 = arith.constant 2 : index
    %c0_16 = arith.constant 0 : index
    %29 = vector.load %arg11[%c2, %c0_16] : memref<9x512xf32, #tpu.memory_space<vmem>>, vector<1x512xf32>
    %30 = vector.broadcast %29 : vector<1x512xf32> to vector<4x512xf32>
    %31 = arith.mulf %28, %30 : vector<4x512xf32>
    %c2_17 = arith.constant 2 : index
    %c0_18 = arith.constant 0 : index
    %c0_19 = arith.constant 0 : index
    %32 = vector.load %arg1[%c2_17, %c0_18, %c0_19] : memref<9x8x4xf32, #tpu.memory_space<vmem>>, vector<1x8x4xf32>
    %33 = vector.shape_cast %32 : vector<1x8x4xf32> to vector<8x4xf32>
    %cst_20 = arith.constant dense<0.000000e+00> : vector<8x512xf32>
    %34 = tpu.matmul %33, %31, %cst_20 {dimension_numbers = #tpu.dot_dimension_numbers<[1], [0], [0], [1], [0, 0, 1, 1], [], []>} : vector<8x4xf32>, vector<4x512xf32>, vector<8x512xf32> -> vector<8x512xf32>
    %35 = arith.addf %25, %34 : vector<8x512xf32>
    %36 = vector.extract_strided_slice %4 {offsets = [0, 511], sizes = [4, 1], strides = [1, 1]} : vector<4x512xf32> to vector<4x1xf32>
    %37 = vector.extract_strided_slice %4 {offsets = [0, 0], sizes = [4, 511], strides = [1, 1]} : vector<4x512xf32> to vector<4x511xf32>
    %38 = tpu.concatenate %36, %37 in 1 : vector<4x1xf32>, vector<4x511xf32> -> vector<4x512xf32>
    %c3 = arith.constant 3 : index
    %c0_21 = arith.constant 0 : index
    %39 = vector.load %arg11[%c3, %c0_21] : memref<9x512xf32, #tpu.memory_space<vmem>>, vector<1x512xf32>
    %40 = vector.broadcast %39 : vector<1x512xf32> to vector<4x512xf32>
    %41 = arith.mulf %38, %40 : vector<4x512xf32>
    %c3_22 = arith.constant 3 : index
    %c0_23 = arith.constant 0 : index
    %c0_24 = arith.constant 0 : index
    %42 = vector.load %arg1[%c3_22, %c0_23, %c0_24] : memref<9x8x4xf32, #tpu.memory_space<vmem>>, vector<1x8x4xf32>
    %43 = vector.shape_cast %42 : vector<1x8x4xf32> to vector<8x4xf32>
    %cst_25 = arith.constant dense<0.000000e+00> : vector<8x512xf32>
    %44 = tpu.matmul %43, %41, %cst_25 {dimension_numbers = #tpu.dot_dimension_numbers<[1], [0], [0], [1], [0, 0, 1, 1], [], []>} : vector<8x4xf32>, vector<4x512xf32>, vector<8x512xf32> -> vector<8x512xf32>
    %45 = arith.addf %35, %44 : vector<8x512xf32>
    %c4 = arith.constant 4 : index
    %c0_26 = arith.constant 0 : index
    %46 = vector.load %arg11[%c4, %c0_26] : memref<9x512xf32, #tpu.memory_space<vmem>>, vector<1x512xf32>
    %47 = vector.broadcast %46 : vector<1x512xf32> to vector<4x512xf32>
    %48 = arith.mulf %4, %47 : vector<4x512xf32>
    %c4_27 = arith.constant 4 : index
    %c0_28 = arith.constant 0 : index
    %c0_29 = arith.constant 0 : index
    %49 = vector.load %arg1[%c4_27, %c0_28, %c0_29] : memref<9x8x4xf32, #tpu.memory_space<vmem>>, vector<1x8x4xf32>
    %50 = vector.shape_cast %49 : vector<1x8x4xf32> to vector<8x4xf32>
    %cst_30 = arith.constant dense<0.000000e+00> : vector<8x512xf32>
    %51 = tpu.matmul %50, %48, %cst_30 {dimension_numbers = #tpu.dot_dimension_numbers<[1], [0], [0], [1], [0, 0, 1, 1], [], []>} : vector<8x4xf32>, vector<4x512xf32>, vector<8x512xf32> -> vector<8x512xf32>
    %52 = arith.addf %45, %51 : vector<8x512xf32>
    %53 = vector.extract_strided_slice %4 {offsets = [0, 1], sizes = [4, 511], strides = [1, 1]} : vector<4x512xf32> to vector<4x511xf32>
    %54 = vector.extract_strided_slice %4 {offsets = [0, 0], sizes = [4, 1], strides = [1, 1]} : vector<4x512xf32> to vector<4x1xf32>
    %55 = tpu.concatenate %53, %54 in 1 : vector<4x511xf32>, vector<4x1xf32> -> vector<4x512xf32>
    %c5 = arith.constant 5 : index
    %c0_31 = arith.constant 0 : index
    %56 = vector.load %arg11[%c5, %c0_31] : memref<9x512xf32, #tpu.memory_space<vmem>>, vector<1x512xf32>
    %57 = vector.broadcast %56 : vector<1x512xf32> to vector<4x512xf32>
    %58 = arith.mulf %55, %57 : vector<4x512xf32>
    %c5_32 = arith.constant 5 : index
    %c0_33 = arith.constant 0 : index
    %c0_34 = arith.constant 0 : index
    %59 = vector.load %arg1[%c5_32, %c0_33, %c0_34] : memref<9x8x4xf32, #tpu.memory_space<vmem>>, vector<1x8x4xf32>
    %60 = vector.shape_cast %59 : vector<1x8x4xf32> to vector<8x4xf32>
    %cst_35 = arith.constant dense<0.000000e+00> : vector<8x512xf32>
    %61 = tpu.matmul %60, %58, %cst_35 {dimension_numbers = #tpu.dot_dimension_numbers<[1], [0], [0], [1], [0, 0, 1, 1], [], []>} : vector<8x4xf32>, vector<4x512xf32>, vector<8x512xf32> -> vector<8x512xf32>
    %62 = arith.addf %52, %61 : vector<8x512xf32>
    %63 = vector.extract_strided_slice %4 {offsets = [0, 15], sizes = [4, 497], strides = [1, 1]} : vector<4x512xf32> to vector<4x497xf32>
    %64 = vector.extract_strided_slice %4 {offsets = [0, 0], sizes = [4, 15], strides = [1, 1]} : vector<4x512xf32> to vector<4x15xf32>
    %65 = tpu.concatenate %63, %64 in 1 : vector<4x497xf32>, vector<4x15xf32> -> vector<4x512xf32>
    %c6 = arith.constant 6 : index
    %c0_36 = arith.constant 0 : index
    %66 = vector.load %arg11[%c6, %c0_36] : memref<9x512xf32, #tpu.memory_space<vmem>>, vector<1x512xf32>
    %67 = vector.broadcast %66 : vector<1x512xf32> to vector<4x512xf32>
    %68 = arith.mulf %65, %67 : vector<4x512xf32>
    %c6_37 = arith.constant 6 : index
    %c0_38 = arith.constant 0 : index
    %c0_39 = arith.constant 0 : index
    %69 = vector.load %arg1[%c6_37, %c0_38, %c0_39] : memref<9x8x4xf32, #tpu.memory_space<vmem>>, vector<1x8x4xf32>
    %70 = vector.shape_cast %69 : vector<1x8x4xf32> to vector<8x4xf32>
    %cst_40 = arith.constant dense<0.000000e+00> : vector<8x512xf32>
    %71 = tpu.matmul %70, %68, %cst_40 {dimension_numbers = #tpu.dot_dimension_numbers<[1], [0], [0], [1], [0, 0, 1, 1], [], []>} : vector<8x4xf32>, vector<4x512xf32>, vector<8x512xf32> -> vector<8x512xf32>
    %72 = arith.addf %62, %71 : vector<8x512xf32>
    %73 = vector.extract_strided_slice %4 {offsets = [0, 16], sizes = [4, 496], strides = [1, 1]} : vector<4x512xf32> to vector<4x496xf32>
    %74 = vector.extract_strided_slice %4 {offsets = [0, 0], sizes = [4, 16], strides = [1, 1]} : vector<4x512xf32> to vector<4x16xf32>
    %75 = tpu.concatenate %73, %74 in 1 : vector<4x496xf32>, vector<4x16xf32> -> vector<4x512xf32>
    %c7 = arith.constant 7 : index
    %c0_41 = arith.constant 0 : index
    %76 = vector.load %arg11[%c7, %c0_41] : memref<9x512xf32, #tpu.memory_space<vmem>>, vector<1x512xf32>
    %77 = vector.broadcast %76 : vector<1x512xf32> to vector<4x512xf32>
    %78 = arith.mulf %75, %77 : vector<4x512xf32>
    %c7_42 = arith.constant 7 : index
    %c0_43 = arith.constant 0 : index
    %c0_44 = arith.constant 0 : index
    %79 = vector.load %arg1[%c7_42, %c0_43, %c0_44] : memref<9x8x4xf32, #tpu.memory_space<vmem>>, vector<1x8x4xf32>
    %80 = vector.shape_cast %79 : vector<1x8x4xf32> to vector<8x4xf32>
    %cst_45 = arith.constant dense<0.000000e+00> : vector<8x512xf32>
    %81 = tpu.matmul %80, %78, %cst_45 {dimension_numbers = #tpu.dot_dimension_numbers<[1], [0], [0], [1], [0, 0, 1, 1], [], []>} : vector<8x4xf32>, vector<4x512xf32>, vector<8x512xf32> -> vector<8x512xf32>
    %82 = arith.addf %72, %81 : vector<8x512xf32>
    %83 = vector.extract_strided_slice %4 {offsets = [0, 17], sizes = [4, 495], strides = [1, 1]} : vector<4x512xf32> to vector<4x495xf32>
    %84 = vector.extract_strided_slice %4 {offsets = [0, 0], sizes = [4, 17], strides = [1, 1]} : vector<4x512xf32> to vector<4x17xf32>
    %85 = tpu.concatenate %83, %84 in 1 : vector<4x495xf32>, vector<4x17xf32> -> vector<4x512xf32>
    %c8 = arith.constant 8 : index
    %c0_46 = arith.constant 0 : index
    %86 = vector.load %arg11[%c8, %c0_46] : memref<9x512xf32, #tpu.memory_space<vmem>>, vector<1x512xf32>
    %87 = vector.broadcast %86 : vector<1x512xf32> to vector<4x512xf32>
    %88 = arith.mulf %85, %87 : vector<4x512xf32>
    %c8_47 = arith.constant 8 : index
    %c0_48 = arith.constant 0 : index
    %c0_49 = arith.constant 0 : index
    %89 = vector.load %arg1[%c8_47, %c0_48, %c0_49] : memref<9x8x4xf32, #tpu.memory_space<vmem>>, vector<1x8x4xf32>
    %90 = vector.shape_cast %89 : vector<1x8x4xf32> to vector<8x4xf32>
    %cst_50 = arith.constant dense<0.000000e+00> : vector<8x512xf32>
    %91 = tpu.matmul %90, %88, %cst_50 {dimension_numbers = #tpu.dot_dimension_numbers<[1], [0], [0], [1], [0, 0, 1, 1], [], []>} : vector<8x4xf32>, vector<4x512xf32>, vector<8x512xf32> -> vector<8x512xf32>
    %92 = arith.addf %82, %91 : vector<8x512xf32>
    %cst_51 = arith.constant dense<0.000000e+00> : vector<8xf32>
    %93 = vector.multi_reduction <add>, %92, %cst_51 [1] : vector<8x512xf32> to vector<8xf32>
    %94 = vector.shape_cast %93 : vector<8xf32> to vector<8x1xf32>
    %cst_52 = arith.constant 5.120000e+02 : f32
    %95 = vector.broadcast %cst_52 : f32 to vector<8x1xf32>
    %96 = arith.divf %94, %95 : vector<8x1xf32>
    %97 = vector.broadcast %96 : vector<8x1xf32> to vector<8x512xf32>
    %98 = arith.subf %92, %97 : vector<8x512xf32>
    %99 = arith.mulf %98, %98 : vector<8x512xf32>
    %cst_53 = arith.constant dense<0.000000e+00> : vector<8xf32>
    %100 = vector.multi_reduction <add>, %99, %cst_53 [1] : vector<8x512xf32> to vector<8xf32>
    %101 = vector.shape_cast %100 : vector<8xf32> to vector<8x1xf32>
    %cst_54 = arith.constant 5.120000e+02 : f32
    %102 = vector.broadcast %cst_54 : f32 to vector<8x1xf32>
    %103 = arith.divf %101, %102 : vector<8x1xf32>
    %104 = vector.broadcast %96 : vector<8x1xf32> to vector<8x512xf32>
    %105 = arith.subf %92, %104 : vector<8x512xf32>
    %cst_55 = arith.constant 9.99999974E-6 : f32
    %106 = vector.broadcast %cst_55 : f32 to vector<8x1xf32>
    %107 = arith.addf %103, %106 : vector<8x1xf32>
    %108 = math.rsqrt %107 : vector<8x1xf32>
    %109 = vector.broadcast %108 : vector<8x1xf32> to vector<8x512xf32>
    %110 = arith.mulf %105, %109 : vector<8x512xf32>
    %c0_56 = arith.constant 0 : index
    %c0_57 = arith.constant 0 : index
    %111 = vector.load %arg7[%c0_56, %c0_57] : memref<8x1xf32, #tpu.memory_space<vmem>>, vector<8x1xf32>
    %112 = vector.broadcast %111 : vector<8x1xf32> to vector<8x512xf32>
    %113 = arith.mulf %110, %112 : vector<8x512xf32>
    %c0_58 = arith.constant 0 : index
    %c0_59 = arith.constant 0 : index
    %114 = vector.load %arg8[%c0_58, %c0_59] : memref<8x1xf32, #tpu.memory_space<vmem>>, vector<8x1xf32>
    %115 = vector.broadcast %114 : vector<8x1xf32> to vector<8x512xf32>
    %116 = arith.addf %113, %115 : vector<8x512xf32>
    %cst_60 = arith.constant 0.000000e+00 : f32
    %117 = vector.broadcast %cst_60 : f32 to vector<8x512xf32>
    %118 = arith.maximumf %116, %117 : vector<8x512xf32>
    %cst_61 = arith.constant 0.000000e+00 : f32
    %119 = vector.broadcast %cst_61 : f32 to vector<8x512xf32>
    %120 = vector.extract_strided_slice %118 {offsets = [0, 495], sizes = [8, 17], strides = [1, 1]} : vector<8x512xf32> to vector<8x17xf32>
    %121 = vector.extract_strided_slice %118 {offsets = [0, 0], sizes = [8, 495], strides = [1, 1]} : vector<8x512xf32> to vector<8x495xf32>
    %122 = tpu.concatenate %120, %121 in 1 : vector<8x17xf32>, vector<8x495xf32> -> vector<8x512xf32>
    %c0_62 = arith.constant 0 : index
    %c0_63 = arith.constant 0 : index
    %123 = vector.load %arg12[%c0_62, %c0_63] : memref<9x512xf32, #tpu.memory_space<vmem>>, vector<1x512xf32>
    %124 = vector.broadcast %123 : vector<1x512xf32> to vector<8x512xf32>
    %125 = arith.mulf %122, %124 : vector<8x512xf32>
    %c0_64 = arith.constant 0 : index
    %c0_65 = arith.constant 0 : index
    %c0_66 = arith.constant 0 : index
    %126 = vector.load %arg2[%c0_64, %c0_65, %c0_66] : memref<9x8x8xf32, #tpu.memory_space<vmem>>, vector<1x8x8xf32>
    %127 = vector.shape_cast %126 : vector<1x8x8xf32> to vector<8x8xf32>
    %cst_67 = arith.constant dense<0.000000e+00> : vector<8x512xf32>
    %128 = tpu.matmul %127, %125, %cst_67 {dimension_numbers = #tpu.dot_dimension_numbers<[1], [0], [0], [1], [0, 0, 1, 1], [], []>} : vector<8x8xf32>, vector<8x512xf32>, vector<8x512xf32> -> vector<8x512xf32>
    %129 = arith.addf %119, %128 : vector<8x512xf32>
    %130 = vector.extract_strided_slice %118 {offsets = [0, 496], sizes = [8, 16], strides = [1, 1]} : vector<8x512xf32> to vector<8x16xf32>
    %131 = vector.extract_strided_slice %118 {offsets = [0, 0], sizes = [8, 496], strides = [1, 1]} : vector<8x512xf32> to vector<8x496xf32>
    %132 = tpu.concatenate %130, %131 in 1 : vector<8x16xf32>, vector<8x496xf32> -> vector<8x512xf32>
    %c1_68 = arith.constant 1 : index
    %c0_69 = arith.constant 0 : index
    %133 = vector.load %arg12[%c1_68, %c0_69] : memref<9x512xf32, #tpu.memory_space<vmem>>, vector<1x512xf32>
    %134 = vector.broadcast %133 : vector<1x512xf32> to vector<8x512xf32>
    %135 = arith.mulf %132, %134 : vector<8x512xf32>
    %c1_70 = arith.constant 1 : index
    %c0_71 = arith.constant 0 : index
    %c0_72 = arith.constant 0 : index
    %136 = vector.load %arg2[%c1_70, %c0_71, %c0_72] : memref<9x8x8xf32, #tpu.memory_space<vmem>>, vector<1x8x8xf32>
    %137 = vector.shape_cast %136 : vector<1x8x8xf32> to vector<8x8xf32>
    %cst_73 = arith.constant dense<0.000000e+00> : vector<8x512xf32>
    %138 = tpu.matmul %137, %135, %cst_73 {dimension_numbers = #tpu.dot_dimension_numbers<[1], [0], [0], [1], [0, 0, 1, 1], [], []>} : vector<8x8xf32>, vector<8x512xf32>, vector<8x512xf32> -> vector<8x512xf32>
    %139 = arith.addf %129, %138 : vector<8x512xf32>
    %140 = vector.extract_strided_slice %118 {offsets = [0, 497], sizes = [8, 15], strides = [1, 1]} : vector<8x512xf32> to vector<8x15xf32>
    %141 = vector.extract_strided_slice %118 {offsets = [0, 0], sizes = [8, 497], strides = [1, 1]} : vector<8x512xf32> to vector<8x497xf32>
    %142 = tpu.concatenate %140, %141 in 1 : vector<8x15xf32>, vector<8x497xf32> -> vector<8x512xf32>
    %c2_74 = arith.constant 2 : index
    %c0_75 = arith.constant 0 : index
    %143 = vector.load %arg12[%c2_74, %c0_75] : memref<9x512xf32, #tpu.memory_space<vmem>>, vector<1x512xf32>
    %144 = vector.broadcast %143 : vector<1x512xf32> to vector<8x512xf32>
    %145 = arith.mulf %142, %144 : vector<8x512xf32>
    %c2_76 = arith.constant 2 : index
    %c0_77 = arith.constant 0 : index
    %c0_78 = arith.constant 0 : index
    %146 = vector.load %arg2[%c2_76, %c0_77, %c0_78] : memref<9x8x8xf32, #tpu.memory_space<vmem>>, vector<1x8x8xf32>
    %147 = vector.shape_cast %146 : vector<1x8x8xf32> to vector<8x8xf32>
    %cst_79 = arith.constant dense<0.000000e+00> : vector<8x512xf32>
    %148 = tpu.matmul %147, %145, %cst_79 {dimension_numbers = #tpu.dot_dimension_numbers<[1], [0], [0], [1], [0, 0, 1, 1], [], []>} : vector<8x8xf32>, vector<8x512xf32>, vector<8x512xf32> -> vector<8x512xf32>
    %149 = arith.addf %139, %148 : vector<8x512xf32>
    %150 = vector.extract_strided_slice %118 {offsets = [0, 511], sizes = [8, 1], strides = [1, 1]} : vector<8x512xf32> to vector<8x1xf32>
    %151 = vector.extract_strided_slice %118 {offsets = [0, 0], sizes = [8, 511], strides = [1, 1]} : vector<8x512xf32> to vector<8x511xf32>
    %152 = tpu.concatenate %150, %151 in 1 : vector<8x1xf32>, vector<8x511xf32> -> vector<8x512xf32>
    %c3_80 = arith.constant 3 : index
    %c0_81 = arith.constant 0 : index
    %153 = vector.load %arg12[%c3_80, %c0_81] : memref<9x512xf32, #tpu.memory_space<vmem>>, vector<1x512xf32>
    %154 = vector.broadcast %153 : vector<1x512xf32> to vector<8x512xf32>
    %155 = arith.mulf %152, %154 : vector<8x512xf32>
    %c3_82 = arith.constant 3 : index
    %c0_83 = arith.constant 0 : index
    %c0_84 = arith.constant 0 : index
    %156 = vector.load %arg2[%c3_82, %c0_83, %c0_84] : memref<9x8x8xf32, #tpu.memory_space<vmem>>, vector<1x8x8xf32>
    %157 = vector.shape_cast %156 : vector<1x8x8xf32> to vector<8x8xf32>
    %cst_85 = arith.constant dense<0.000000e+00> : vector<8x512xf32>
    %158 = tpu.matmul %157, %155, %cst_85 {dimension_numbers = #tpu.dot_dimension_numbers<[1], [0], [0], [1], [0, 0, 1, 1], [], []>} : vector<8x8xf32>, vector<8x512xf32>, vector<8x512xf32> -> vector<8x512xf32>
    %159 = arith.addf %149, %158 : vector<8x512xf32>
    %c4_86 = arith.constant 4 : index
    %c0_87 = arith.constant 0 : index
    %160 = vector.load %arg12[%c4_86, %c0_87] : memref<9x512xf32, #tpu.memory_space<vmem>>, vector<1x512xf32>
    %161 = vector.broadcast %160 : vector<1x512xf32> to vector<8x512xf32>
    %162 = arith.mulf %118, %161 : vector<8x512xf32>
    %c4_88 = arith.constant 4 : index
    %c0_89 = arith.constant 0 : index
    %c0_90 = arith.constant 0 : index
    %163 = vector.load %arg2[%c4_88, %c0_89, %c0_90] : memref<9x8x8xf32, #tpu.memory_space<vmem>>, vector<1x8x8xf32>
    %164 = vector.shape_cast %163 : vector<1x8x8xf32> to vector<8x8xf32>
    %cst_91 = arith.constant dense<0.000000e+00> : vector<8x512xf32>
    %165 = tpu.matmul %164, %162, %cst_91 {dimension_numbers = #tpu.dot_dimension_numbers<[1], [0], [0], [1], [0, 0, 1, 1], [], []>} : vector<8x8xf32>, vector<8x512xf32>, vector<8x512xf32> -> vector<8x512xf32>
    %166 = arith.addf %159, %165 : vector<8x512xf32>
    %167 = vector.extract_strided_slice %118 {offsets = [0, 1], sizes = [8, 511], strides = [1, 1]} : vector<8x512xf32> to vector<8x511xf32>
    %168 = vector.extract_strided_slice %118 {offsets = [0, 0], sizes = [8, 1], strides = [1, 1]} : vector<8x512xf32> to vector<8x1xf32>
    %169 = tpu.concatenate %167, %168 in 1 : vector<8x511xf32>, vector<8x1xf32> -> vector<8x512xf32>
    %c5_92 = arith.constant 5 : index
    %c0_93 = arith.constant 0 : index
    %170 = vector.load %arg12[%c5_92, %c0_93] : memref<9x512xf32, #tpu.memory_space<vmem>>, vector<1x512xf32>
    %171 = vector.broadcast %170 : vector<1x512xf32> to vector<8x512xf32>
    %172 = arith.mulf %169, %171 : vector<8x512xf32>
    %c5_94 = arith.constant 5 : index
    %c0_95 = arith.constant 0 : index
    %c0_96 = arith.constant 0 : index
    %173 = vector.load %arg2[%c5_94, %c0_95, %c0_96] : memref<9x8x8xf32, #tpu.memory_space<vmem>>, vector<1x8x8xf32>
    %174 = vector.shape_cast %173 : vector<1x8x8xf32> to vector<8x8xf32>
    %cst_97 = arith.constant dense<0.000000e+00> : vector<8x512xf32>
    %175 = tpu.matmul %174, %172, %cst_97 {dimension_numbers = #tpu.dot_dimension_numbers<[1], [0], [0], [1], [0, 0, 1, 1], [], []>} : vector<8x8xf32>, vector<8x512xf32>, vector<8x512xf32> -> vector<8x512xf32>
    %176 = arith.addf %166, %175 : vector<8x512xf32>
    %177 = vector.extract_strided_slice %118 {offsets = [0, 15], sizes = [8, 497], strides = [1, 1]} : vector<8x512xf32> to vector<8x497xf32>
    %178 = vector.extract_strided_slice %118 {offsets = [0, 0], sizes = [8, 15], strides = [1, 1]} : vector<8x512xf32> to vector<8x15xf32>
    %179 = tpu.concatenate %177, %178 in 1 : vector<8x497xf32>, vector<8x15xf32> -> vector<8x512xf32>
    %c6_98 = arith.constant 6 : index
    %c0_99 = arith.constant 0 : index
    %180 = vector.load %arg12[%c6_98, %c0_99] : memref<9x512xf32, #tpu.memory_space<vmem>>, vector<1x512xf32>
    %181 = vector.broadcast %180 : vector<1x512xf32> to vector<8x512xf32>
    %182 = arith.mulf %179, %181 : vector<8x512xf32>
    %c6_100 = arith.constant 6 : index
    %c0_101 = arith.constant 0 : index
    %c0_102 = arith.constant 0 : index
    %183 = vector.load %arg2[%c6_100, %c0_101, %c0_102] : memref<9x8x8xf32, #tpu.memory_space<vmem>>, vector<1x8x8xf32>
    %184 = vector.shape_cast %183 : vector<1x8x8xf32> to vector<8x8xf32>
    %cst_103 = arith.constant dense<0.000000e+00> : vector<8x512xf32>
    %185 = tpu.matmul %184, %182, %cst_103 {dimension_numbers = #tpu.dot_dimension_numbers<[1], [0], [0], [1], [0, 0, 1, 1], [], []>} : vector<8x8xf32>, vector<8x512xf32>, vector<8x512xf32> -> vector<8x512xf32>
    %186 = arith.addf %176, %185 : vector<8x512xf32>
    %187 = vector.extract_strided_slice %118 {offsets = [0, 16], sizes = [8, 496], strides = [1, 1]} : vector<8x512xf32> to vector<8x496xf32>
    %188 = vector.extract_strided_slice %118 {offsets = [0, 0], sizes = [8, 16], strides = [1, 1]} : vector<8x512xf32> to vector<8x16xf32>
    %189 = tpu.concatenate %187, %188 in 1 : vector<8x496xf32>, vector<8x16xf32> -> vector<8x512xf32>
    %c7_104 = arith.constant 7 : index
    %c0_105 = arith.constant 0 : index
    %190 = vector.load %arg12[%c7_104, %c0_105] : memref<9x512xf32, #tpu.memory_space<vmem>>, vector<1x512xf32>
    %191 = vector.broadcast %190 : vector<1x512xf32> to vector<8x512xf32>
    %192 = arith.mulf %189, %191 : vector<8x512xf32>
    %c7_106 = arith.constant 7 : index
    %c0_107 = arith.constant 0 : index
    %c0_108 = arith.constant 0 : index
    %193 = vector.load %arg2[%c7_106, %c0_107, %c0_108] : memref<9x8x8xf32, #tpu.memory_space<vmem>>, vector<1x8x8xf32>
    %194 = vector.shape_cast %193 : vector<1x8x8xf32> to vector<8x8xf32>
    %cst_109 = arith.constant dense<0.000000e+00> : vector<8x512xf32>
    %195 = tpu.matmul %194, %192, %cst_109 {dimension_numbers = #tpu.dot_dimension_numbers<[1], [0], [0], [1], [0, 0, 1, 1], [], []>} : vector<8x8xf32>, vector<8x512xf32>, vector<8x512xf32> -> vector<8x512xf32>
    %196 = arith.addf %186, %195 : vector<8x512xf32>
    %197 = vector.extract_strided_slice %118 {offsets = [0, 17], sizes = [8, 495], strides = [1, 1]} : vector<8x512xf32> to vector<8x495xf32>
    %198 = vector.extract_strided_slice %118 {offsets = [0, 0], sizes = [8, 17], strides = [1, 1]} : vector<8x512xf32> to vector<8x17xf32>
    %199 = tpu.concatenate %197, %198 in 1 : vector<8x495xf32>, vector<8x17xf32> -> vector<8x512xf32>
    %c8_110 = arith.constant 8 : index
    %c0_111 = arith.constant 0 : index
    %200 = vector.load %arg12[%c8_110, %c0_111] : memref<9x512xf32, #tpu.memory_space<vmem>>, vector<1x512xf32>
    %201 = vector.broadcast %200 : vector<1x512xf32> to vector<8x512xf32>
    %202 = arith.mulf %199, %201 : vector<8x512xf32>
    %c8_112 = arith.constant 8 : index
    %c0_113 = arith.constant 0 : index
    %c0_114 = arith.constant 0 : index
    %203 = vector.load %arg2[%c8_112, %c0_113, %c0_114] : memref<9x8x8xf32, #tpu.memory_space<vmem>>, vector<1x8x8xf32>
    %204 = vector.shape_cast %203 : vector<1x8x8xf32> to vector<8x8xf32>
    %cst_115 = arith.constant dense<0.000000e+00> : vector<8x512xf32>
    %205 = tpu.matmul %204, %202, %cst_115 {dimension_numbers = #tpu.dot_dimension_numbers<[1], [0], [0], [1], [0, 0, 1, 1], [], []>} : vector<8x8xf32>, vector<8x512xf32>, vector<8x512xf32> -> vector<8x512xf32>
    %206 = arith.addf %196, %205 : vector<8x512xf32>
    %cst_116 = arith.constant dense<0.000000e+00> : vector<8xf32>
    %207 = vector.multi_reduction <add>, %206, %cst_116 [1] : vector<8x512xf32> to vector<8xf32>
    %208 = vector.shape_cast %207 : vector<8xf32> to vector<8x1xf32>
    %cst_117 = arith.constant 5.120000e+02 : f32
    %209 = vector.broadcast %cst_117 : f32 to vector<8x1xf32>
    %210 = arith.divf %208, %209 : vector<8x1xf32>
    %211 = vector.broadcast %210 : vector<8x1xf32> to vector<8x512xf32>
    %212 = arith.subf %206, %211 : vector<8x512xf32>
    %213 = arith.mulf %212, %212 : vector<8x512xf32>
    %cst_118 = arith.constant dense<0.000000e+00> : vector<8xf32>
    %214 = vector.multi_reduction <add>, %213, %cst_118 [1] : vector<8x512xf32> to vector<8xf32>
    %215 = vector.shape_cast %214 : vector<8xf32> to vector<8x1xf32>
    %cst_119 = arith.constant 5.120000e+02 : f32
    %216 = vector.broadcast %cst_119 : f32 to vector<8x1xf32>
    %217 = arith.divf %215, %216 : vector<8x1xf32>
    %218 = vector.broadcast %210 : vector<8x1xf32> to vector<8x512xf32>
    %219 = arith.subf %206, %218 : vector<8x512xf32>
    %cst_120 = arith.constant 9.99999974E-6 : f32
    %220 = vector.broadcast %cst_120 : f32 to vector<8x1xf32>
    %221 = arith.addf %217, %220 : vector<8x1xf32>
    %222 = math.rsqrt %221 : vector<8x1xf32>
    %223 = vector.broadcast %222 : vector<8x1xf32> to vector<8x512xf32>
    %224 = arith.mulf %219, %223 : vector<8x512xf32>
    %c0_121 = arith.constant 0 : index
    %c0_122 = arith.constant 0 : index
    %225 = vector.load %arg9[%c0_121, %c0_122] : memref<8x1xf32, #tpu.memory_space<vmem>>, vector<8x1xf32>
    %226 = vector.broadcast %225 : vector<8x1xf32> to vector<8x512xf32>
    %227 = arith.mulf %224, %226 : vector<8x512xf32>
    %c0_123 = arith.constant 0 : index
    %c0_124 = arith.constant 0 : index
    %228 = vector.load %arg10[%c0_123, %c0_124] : memref<8x1xf32, #tpu.memory_space<vmem>>, vector<8x1xf32>
    %229 = vector.broadcast %228 : vector<8x1xf32> to vector<8x512xf32>
    %230 = arith.addf %227, %229 : vector<8x512xf32>
    %c0_125 = arith.constant 0 : index
    %c0_126 = arith.constant 0 : index
    %231 = vector.load %arg3[%c0_125, %c0_126] : memref<8x4xf32, #tpu.memory_space<vmem>>, vector<8x4xf32>
    %cst_127 = arith.constant dense<0.000000e+00> : vector<8x512xf32>
    %232 = tpu.matmul %231, %4, %cst_127 {dimension_numbers = #tpu.dot_dimension_numbers<[1], [0], [0], [1], [0, 0, 1, 1], [], []>} : vector<8x4xf32>, vector<4x512xf32>, vector<8x512xf32> -> vector<8x512xf32>
    %c0_128 = arith.constant 0 : index
    %c0_129 = arith.constant 0 : index
    %233 = vector.load %arg6[%c0_128, %c0_129] : memref<8x1xf32, #tpu.memory_space<vmem>>, vector<8x1xf32>
    %234 = vector.broadcast %233 : vector<8x1xf32> to vector<8x512xf32>
    %235 = arith.addf %232, %234 : vector<8x512xf32>
    %236 = arith.addf %230, %235 : vector<8x512xf32>
    %cst_130 = arith.constant 0.000000e+00 : f32
    %237 = vector.broadcast %cst_130 : f32 to vector<8x512xf32>
    %238 = arith.maximumf %236, %237 : vector<8x512xf32>
    %239 = vector.extract_strided_slice %238 {offsets = [0, 0], sizes = [8, 256], strides = [1, 1]} : vector<8x512xf32> to vector<8x256xf32>
    %c0_131 = arith.constant 0 : index
    %c0_132 = arith.constant 0 : index
    %c0_133 = arith.constant 0 : index
    %240 = vector.load %arg14[%c0_131, %c0_132, %c0_133] : memref<2x8x256xf32, #tpu.memory_space<vmem>>, vector<1x8x256xf32>
    %241 = vector.shape_cast %240 : vector<1x8x256xf32> to vector<8x256xf32>
    %242 = vector.shape_cast %239 : vector<8x256xf32> to vector<1x8x256xf32>
    tpu.vector_store %arg14[%c0_131, %c0_132, %c0_133], %242 {strides = array<i32>} : memref<2x8x256xf32, #tpu.memory_space<vmem>>, vector<1x8x256xf32>,
    %243 = vector.extract_strided_slice %238 {offsets = [0, 256], sizes = [8, 256], strides = [1, 1]} : vector<8x512xf32> to vector<8x256xf32>
    %c1_134 = arith.constant 1 : index
    %c0_135 = arith.constant 0 : index
    %c0_136 = arith.constant 0 : index
    %244 = vector.load %arg14[%c1_134, %c0_135, %c0_136] : memref<2x8x256xf32, #tpu.memory_space<vmem>>, vector<1x8x256xf32>
    %245 = vector.shape_cast %244 : vector<1x8x256xf32> to vector<8x256xf32>
    %246 = vector.shape_cast %243 : vector<8x256xf32> to vector<1x8x256xf32>
    tpu.vector_store %arg14[%c1_134, %c0_135, %c0_136], %246 {strides = array<i32>} : memref<2x8x256xf32, #tpu.memory_space<vmem>>, vector<1x8x256xf32>,
    return
  }
}

</mosaic_0001>

<llo_original>
// kernel: tpu_custom_call.1
$region0: #{tpu_custom_call.1}
  #allocation0 [shape = 'u32[]', space=smem, size = 0x4, offset = 0x4, fixed_abs, tag = 'smem constant byte address 0x4 - core index']
  #allocation1 [shape = 'u32[144,128]{1,0:T(1,128)}', space=vmem, size = 0x12000, scoped, tag = 'internal scratch']
  #allocation2 [shape = 'f32[1,1]{1,0:T(1,128)S(1)}', space=vmem, size = 0x200, scoped, tag = 'scoped memory for tpu_custom_call.1']
  #allocation3 [shape = 'f32[1,1]{1,0:T(1,128)S(1)}', space=vmem, size = 0x200, scoped, tag = 'scoped memory for tpu_custom_call.1']
  #allocation4 [shape = 'f32[1,1]{1,0:T(1,128)S(1)}', space=vmem, size = 0x200, scoped, tag = 'scoped memory for tpu_custom_call.1']
  %s0 = inlined_call_operand.vmem [shape: f32[2,4,256], index: 0, kind: input, shape index: {}]
  %s1 = inlined_call_operand.vmem [shape: f32[9,8,4], index: 1, kind: input, shape index: {}]
  %s2 = inlined_call_operand.vmem [shape: f32[9,8,8], index: 2, kind: input, shape index: {}]
  %s3 = inlined_call_operand.vmem [shape: f32[8,4], index: 3, kind: input, shape index: {}]
  %s4 = inlined_call_operand.<no memory space> [shape: f32[1,1], index: 4, kind: input, shape index: {}]
  %s5 = inlined_call_operand.<no memory space> [shape: f32[1,1], index: 5, kind: input, shape index: {}]
  %s6 = inlined_call_operand.vmem [shape: f32[8,1], index: 6, kind: input, shape index: {}]
  %s7 = inlined_call_operand.vmem [shape: f32[8,1], index: 7, kind: input, shape index: {}]
  %s8 = inlined_call_operand.vmem [shape: f32[8,1], index: 8, kind: input, shape index: {}]
  %s9 = inlined_call_operand.vmem [shape: f32[8,1], index: 9, kind: input, shape index: {}]
  %s10 = inlined_call_operand.vmem [shape: f32[8,1], index: 10, kind: input, shape index: {}]
  %s11 = inlined_call_operand.vmem [shape: f32[9,512], index: 11, kind: input, shape index: {}]
  %s12 = inlined_call_operand.vmem [shape: f32[9,512], index: 12, kind: input, shape index: {}]
  %s13 = inlined_call_operand.<no memory space> [shape: f32[1,1], index: 13, kind: input, shape index: {}]
  %s14 = inlined_call_operand.hbm [shape: f32[2,8,256], index: 14, kind: output, shape index: {}]
  %s15 = sld [smem:[#allocation0]]
  $region66: #{tpu_custom_call.1} parent=0
    _
  %s17 = ssub.s32 1, %s15
  %s18 = scalar_select 0, %s17, %s15
  %v19 = vstv %s4
  %20 = vst [vmem:[#allocation2] sm:$0x1] %v19
  %v21 = vstv %s5
  %22 = vst [vmem:[#allocation3] sm:$0x1] %v21
  %v23 = vstv %s13
  %24 = vst [vmem:[#allocation4] sm:$0x1] %v23
  $region1: #{tpu_custom_call.1} parent=0
    #allocation5 [shape = 'u8[16384]{0}', space=vmem, size = 0x4000, scoped, tag = 'output window, operand 0, single buffered']
    #allocation6 [shape = 's32[1]{0}', space=sflag, size = 0x4, scoped, tag = 'scoped memory for tpu_custom_call.1']
    %25 = vsyncpa [#allocation6], 0
    // Predicated region
    $region2: #{tpu_custom_call.1} parent=1 // pred_check
      _
    $region3: #{tpu_custom_call.1} parent=1 // pred_check_branch
      %27 = sbr.rel (0) target = $region5
    $region4: #{tpu_custom_call.1} parent=1 // pred_region
      _
    $region5: #{tpu_custom_call.1} parent=1 // pred_fallthru
      _
    // Predicated region
    $region6: #{tpu_custom_call.1} parent=1 // pred_check
      _
    $region7: #{tpu_custom_call.1} parent=1 // pred_check_branch
      %29 = sbr.rel (0) target = $region9
    $region8: #{tpu_custom_call.1} parent=1 // pred_region
      _
    $region9: #{tpu_custom_call.1} parent=1 // pred_fallthru
      _
    // Predicated region
    $region10: #{tpu_custom_call.1} parent=1 // pred_check
      _
    $region11: #{tpu_custom_call.1} parent=1 // pred_check_branch
      %31 = sbr.rel (0) target = $region13
    $region12: #{tpu_custom_call.1} parent=1 // pred_region
      _
    $region13: #{tpu_custom_call.1} parent=1 // pred_fallthru
      _
    // Predicated region
    $region14: #{tpu_custom_call.1} parent=1 // pred_check
      _
    $region15: #{tpu_custom_call.1} parent=1 // pred_check_branch
      %33 = sbr.rel (0) target = $region17
    $region16: #{tpu_custom_call.1} parent=1 // pred_region
      _
    $region17: #{tpu_custom_call.1} parent=1 // pred_fallthru
      _
    // Predicated region
    $region18: #{tpu_custom_call.1} parent=1 // pred_check
      _
    $region19: #{tpu_custom_call.1} parent=1 // pred_check_branch
      %35 = sbr.rel (0) target = $region21
    $region20: #{tpu_custom_call.1} parent=1 // pred_region
      _
    $region21: #{tpu_custom_call.1} parent=1 // pred_fallthru
      _
    // Predicated region
    $region22: #{tpu_custom_call.1} parent=1 // pred_check
      _
    $region23: #{tpu_custom_call.1} parent=1 // pred_check_branch
      %37 = sbr.rel (0) target = $region25
    $region24: #{tpu_custom_call.1} parent=1 // pred_region
      _
    $region25: #{tpu_custom_call.1} parent=1 // pred_fallthru
      _
    // Predicated region
    $region26: #{tpu_custom_call.1} parent=1 // pred_check
      _
    $region27: #{tpu_custom_call.1} parent=1 // pred_check_branch
      %39 = sbr.rel (0) target = $region29
    $region28: #{tpu_custom_call.1} parent=1 // pred_region
      _
    $region29: #{tpu_custom_call.1} parent=1 // pred_fallthru
      _
    // Predicated region
    $region30: #{tpu_custom_call.1} parent=1 // pred_check
      _
    $region31: #{tpu_custom_call.1} parent=1 // pred_check_branch
      %41 = sbr.rel (0) target = $region33
    $region32: #{tpu_custom_call.1} parent=1 // pred_region
      _
    $region33: #{tpu_custom_call.1} parent=1 // pred_fallthru
      _
    // Predicated region
    $region34: #{tpu_custom_call.1} parent=1 // pred_check
      _
    $region35: #{tpu_custom_call.1} parent=1 // pred_check_branch
      %43 = sbr.rel (0) target = $region37
    $region36: #{tpu_custom_call.1} parent=1 // pred_region
      _
    $region37: #{tpu_custom_call.1} parent=1 // pred_fallthru
      _
    // Predicated region
    $region38: #{tpu_custom_call.1} parent=1 // pred_check
      _
    $region39: #{tpu_custom_call.1} parent=1 // pred_check_branch
      %45 = sbr.rel (0) target = $region41
    $region40: #{tpu_custom_call.1} parent=1 // pred_region
      _
    $region41: #{tpu_custom_call.1} parent=1 // pred_fallthru
      _
    // Predicated region
    $region42: #{tpu_custom_call.1} parent=1 // pred_check
      _
    $region43: #{tpu_custom_call.1} parent=1 // pred_check_branch
      %47 = sbr.rel (0) target = $region45
    $region44: #{tpu_custom_call.1} parent=1 // pred_region
      _
    $region45: #{tpu_custom_call.1} parent=1 // pred_fallthru
      _
    // Predicated region
    $region46: #{tpu_custom_call.1} parent=1 // pred_check
      _
    $region47: #{tpu_custom_call.1} parent=1 // pred_check_branch
      %49 = sbr.rel (0) target = $region49
    $region48: #{tpu_custom_call.1} parent=1 // pred_region
      _
    $region49: #{tpu_custom_call.1} parent=1 // pred_fallthru
      _
    // Predicated region
    $region50: #{tpu_custom_call.1} parent=1 // pred_check
      _
    $region51: #{tpu_custom_call.1} parent=1 // pred_check_branch
      %51 = sbr.rel (0) target = $region53
    $region52: #{tpu_custom_call.1} parent=1 // pred_region
      _
    $region53: #{tpu_custom_call.1} parent=1 // pred_fallthru
      _
    // Predicated region
    $region54: #{tpu_custom_call.1} parent=1 // pred_check
      _
    $region55: #{tpu_custom_call.1} parent=1 // pred_check_branch
      %53 = sbr.rel (0) target = $region57
    $region56: #{tpu_custom_call.1} parent=1 // pred_region
      _
    $region57: #{tpu_custom_call.1} parent=1 // pred_fallthru
      _
    %v54 = vld [vmem:[%s0] sm:$0xff]
    %s55 = scalar_lea.vmem %s0, 8
    %v56 = vld [vmem:[%s55] sm:$0xff]
    %v58 = vcombine.high %v54, %v54
    %v61 = vcombine.high %v56, %v56
    %63 = vrot.lane.b32.xlu0 %v61, 17
    %v64 = vpop.permute.xlu0 %63
    %66 = vrot.lane.b32.xlu0 %v54, 17
    %v67 = vpop.permute.xlu0 %66
    %68 = vrot.lane.b32.xlu0 %v58, 17
    %v69 = vpop.permute.xlu0 %68
    %70 = vrot.lane.b32.xlu0 %v56, 17
    %v71 = vpop.permute.xlu0 %70
    %vm72 = vcmask 138240
    %v73 = vsel %vm72, %v67, %v69
    %v74 = vsel %vm72, %v69, %v71
    %v75 = vsel %vm72, %v71, %v64
    %v80 = vsel %vm72, %v64, %v67
    %v81 = vld [vmem:[%s11] ss:$8 sm:$0xf]
    %v83 = vlaneseq
    %v84 = vshrl.u32 %v83, 7
    %v85 = vsub.s32 0, %v84
    %v86 = vrot.slane %v81, %v85
    %v87 = vlaneseq
    %v88 = vshrl.u32 %v87, 7
    %v89 = vsub.s32 1, %v88
    %v90 = vrot.slane %v81, %v89
    %v91 = vlaneseq
    %v92 = vshrl.u32 %v91, 7
    %v93 = vsub.s32 2, %v92
    %v94 = vrot.slane %v81, %v93
    %v95 = vlaneseq
    %v96 = vshrl.u32 %v95, 7
    %v97 = vsub.s32 3, %v96
    %v98 = vrot.slane %v81, %v97
    %v103 = vmul.f32 %v80, %v86
    %v104 = vmul.f32 %v73, %v90
    %v105 = vmul.f32 %v74, %v94
    %v106 = vmul.f32 %v75, %v98
    %v107 = vld [vmem:[%s1] sm:$0xff]
    %108 = vrot.lane.b32.xlu0 %v61, 16
    %v109 = vpop.permute.xlu0 %108
    %111 = vrot.lane.b32.xlu0 %v54, 16
    %v112 = vpop.permute.xlu0 %111
    %113 = vrot.lane.b32.xlu0 %v58, 16
    %v114 = vpop.permute.xlu0 %113
    %115 = vrot.lane.b32.xlu0 %v56, 16
    %v116 = vpop.permute.xlu0 %115
    %vm117 = vcmask 130048
    %v118 = vsel %vm117, %v112, %v114
    %v119 = vsel %vm117, %v114, %v116
    %v120 = vsel %vm117, %v116, %v109
    %v125 = vsel %vm117, %v109, %v112
    %s126 = scalar_lea.vmem %s11, 1
    %v127 = vld [vmem:[%s126] ss:$8 sm:$0xf]
    %v129 = vlaneseq
    %v130 = vshrl.u32 %v129, 7
    %v131 = vsub.s32 0, %v130
    %v132 = vrot.slane %v127, %v131
    %v133 = vlaneseq
    %v134 = vshrl.u32 %v133, 7
    %v135 = vsub.s32 1, %v134
    %v136 = vrot.slane %v127, %v135
    %v137 = vlaneseq
    %v138 = vshrl.u32 %v137, 7
    %v139 = vsub.s32 2, %v138
    %v140 = vrot.slane %v127, %v139
    %v141 = vlaneseq
    %v142 = vshrl.u32 %v141, 7
    %v143 = vsub.s32 3, %v142
    %v144 = vrot.slane %v127, %v143
    %v149 = vmul.f32 %v125, %v132
    %v150 = vmul.f32 %v118, %v136
    %v151 = vmul.f32 %v119, %v140
    %v152 = vmul.f32 %v120, %v144
    %s153 = scalar_lea.vmem %s1, 8
    %v154 = vld [vmem:[%s153] sm:$0xff]
    %vm155 = vcmask 31744
    %v157 = vsel %vm155, %v154, 0
    %vm159 = vcmask 1043456
    %v161 = vsel %vm159, %v149, 0
    %v164 = vsel %vm159, %v150, 0
    %v167 = vsel %vm159, %v151, 0
    %v170 = vsel %vm159, %v152, 0
    %172 = vmatprep.subr.mxu0 %v164
    %173 = vmatpush1.msra.mxu0 %v161
    %174 = vmatprep.subr.mxu0 0.0
    %175 = vmatpush1.msra.mxu0 0.0
    %176 = vmatprep.subr.mxu0 0.0
    %177 = vmatpush1.msra.mxu0 0.0
    %178 = vmatprep.subr.mxu0 0.0
    %179 = vmatpush1.msra.mxu0 0.0
    %180 = vmatprep.subr.mxu0 0.0
    %181 = vmatpush1.msra.mxu0 0.0
    %182 = vmatprep.subr.mxu0 0.0
    %183 = vmatpush1.msra.mxu0 0.0
    %184 = vmatprep.subr.mxu0 0.0
    %185 = vmatpush1.msra.mxu0 0.0
    %186 = vmatprep.subr.mxu0 0.0
    %187 = vmatpush1.msra.mxu0 0.0
    %188 = vmatprep.subr.mxu0 0.0
    %189 = vmatpush1.msra.mxu0 0.0
    %190 = vmatprep.subr.mxu0 0.0
    %191 = vmatpush1.msra.mxu0 0.0
    %192 = vmatprep.subr.mxu0 0.0
    %193 = vmatpush1.msra.mxu0 0.0
    %194 = vmatprep.subr.mxu0 0.0
    %195 = vmatpush1.msra.mxu0 0.0
    %196 = vmatprep.subr.mxu0 0.0
    %197 = vmatpush1.msra.mxu0 0.0
    %198 = vmatprep.subr.mxu0 0.0
    %199 = vmatpush1.msra.mxu0 0.0
    %200 = vmatprep.subr.mxu0 0.0
    %201 = vmatpush1.msra.mxu0 0.0
    %202 = vmatprep.subr.mxu0 0.0
    %203 = vmatpush1.msra.mxu0 0.0
    %204 = vmatprep.subr.mxu0 0.0
    %205 = vmatpush1.msra.mxu0 0.0
    %206 = vmatprep.subr.mxu0 0.0
    %207 = vmatpush1.msra.mxu0 0.0
    %208 = vmatprep.subr.mxu0 0.0
    %209 = vmatpush1.msra.mxu0 0.0
    %210 = vmatprep.subr.mxu0 0.0
    %211 = vmatpush1.msra.mxu0 0.0
    %212 = vmatprep.subr.mxu0 0.0
    %213 = vmatpush1.msra.mxu0 0.0
    %214 = vmatprep.subr.mxu0 0.0
    %215 = vmatpush1.msra.mxu0 0.0
    %216 = vmatprep.subr.mxu0 0.0
    %217 = vmatpush1.msra.mxu0 0.0
    %218 = vmatprep.subr.mxu0 0.0
    %219 = vmatpush1.msra.mxu0 0.0
    %220 = vmatprep.subr.mxu0 0.0
    %221 = vmatpush1.msra.mxu0 0.0
    %222 = vmatprep.subr.mxu0 0.0
    %223 = vmatpush1.msra.mxu0 0.0
    %224 = vmatprep.subr.mxu0 0.0
    %225 = vmatpush1.msra.mxu0 0.0
    %226 = vmatprep.subr.mxu0 0.0
    %227 = vmatpush1.msra.mxu0 0.0
    %228 = vmatprep.subr.mxu0 0.0
    %229 = vmatpush1.msra.mxu0 0.0
    %230 = vmatprep.subr.mxu0 0.0
    %231 = vmatpush1.msra.mxu0 0.0
    %232 = vmatprep.subr.mxu0 0.0
    %233 = vmatpush1.msra.mxu0 0.0
    %234 = vmatprep.subr.mxu0 0.0
    %235 = vmatpush1.msra.mxu0 0.0
    %236 = vmatprep.mubr.f32.mxu0 0.0
    %237 = vmatmul.mubr.f32.gmra.mrb[0].mxu0 %v157
    %v238 = vpop.f32.mrb[0].mxu0
    %v239 = vadd.f32 0.0, %v238
    %v240 = vpop.f32.mrb[0].mxu0
    %v241 = vadd.f32 0.0, %v240
    %242 = vdwg.mxu0
    %243 = vmatprep.subr.mxu0 %v170
    %244 = vmatpush1.msra.mxu0 %v167
    %245 = vmatprep.subr.mxu0 0.0
    %246 = vmatpush1.msra.mxu0 0.0
    %247 = vmatprep.subr.mxu0 0.0
    %248 = vmatpush1.msra.mxu0 0.0
    %249 = vmatprep.subr.mxu0 0.0
    %250 = vmatpush1.msra.mxu0 0.0
    %251 = vmatprep.subr.mxu0 0.0
    %252 = vmatpush1.msra.mxu0 0.0
    %253 = vmatprep.subr.mxu0 0.0
    %254 = vmatpush1.msra.mxu0 0.0
    %255 = vmatprep.subr.mxu0 0.0
    %256 = vmatpush1.msra.mxu0 0.0
    %257 = vmatprep.subr.mxu0 0.0
    %258 = vmatpush1.msra.mxu0 0.0
    %259 = vmatprep.subr.mxu0 0.0
    %260 = vmatpush1.msra.mxu0 0.0
    %261 = vmatprep.subr.mxu0 0.0
    %262 = vmatpush1.msra.mxu0 0.0
    %263 = vmatprep.subr.mxu0 0.0
    %264 = vmatpush1.msra.mxu0 0.0
    %265 = vmatprep.subr.mxu0 0.0
    %266 = vmatpush1.msra.mxu0 0.0
    %267 = vmatprep.subr.mxu0 0.0
    %268 = vmatpush1.msra.mxu0 0.0
    %269 = vmatprep.subr.mxu0 0.0
    %270 = vmatpush1.msra.mxu0 0.0
    %271 = vmatprep.subr.mxu0 0.0
    %272 = vmatpush1.msra.mxu0 0.0
    %273 = vmatprep.subr.mxu0 0.0
    %274 = vmatpush1.msra.mxu0 0.0
    %275 = vmatprep.subr.mxu0 0.0
    %276 = vmatpush1.msra.mxu0 0.0
    %277 = vmatprep.subr.mxu0 0.0
    %278 = vmatpush1.msra.mxu0 0.0
    %279 = vmatprep.subr.mxu0 0.0
    %280 = vmatpush1.msra.mxu0 0.0
    %281 = vmatprep.subr.mxu0 0.0
    %282 = vmatpush1.msra.mxu0 0.0
    %283 = vmatprep.subr.mxu0 0.0
    %284 = vmatpush1.msra.mxu0 0.0
    %285 = vmatprep.subr.mxu0 0.0
    %286 = vmatpush1.msra.mxu0 0.0
    %287 = vmatprep.subr.mxu0 0.0
    %288 = vmatpush1.msra.mxu0 0.0
    %289 = vmatprep.subr.mxu0 0.0
    %290 = vmatpush1.msra.mxu0 0.0
    %291 = vmatprep.subr.mxu0 0.0
    %292 = vmatpush1.msra.mxu0 0.0
    %293 = vmatprep.subr.mxu0 0.0
    %294 = vmatpush1.msra.mxu0 0.0
    %295 = vmatprep.subr.mxu0 0.0
    %296 = vmatpush1.msra.mxu0 0.0
    %297 = vmatprep.subr.mxu0 0.0
    %298 = vmatpush1.msra.mxu0 0.0
    %299 = vmatprep.subr.mxu0 0.0
    %300 = vmatpush1.msra.mxu0 0.0
    %301 = vmatprep.subr.mxu0 0.0
    %302 = vmatpush1.msra.mxu0 0.0
    %303 = vmatprep.subr.mxu0 0.0
    %304 = vmatpush1.msra.mxu0 0.0
    %305 = vmatprep.subr.mxu0 0.0
    %306 = vmatpush1.msra.mxu0 0.0
    %307 = vmatprep.mubr.f32.mxu0 0.0
    %308 = vmatmul.mubr.f32.gmra.mrb[0].mxu0 %v157
    %v309 = vpop.f32.mrb[0].mxu0
    %v310 = vadd.f32 0.0, %v309
    %v311 = vpop.f32.mrb[0].mxu0
    %v312 = vadd.f32 0.0, %v311
    %313 = vdwg.mxu0
    %v315 = vsel %vm155, %v107, 0
    %v318 = vsel %vm159, %v103, 0
    %v321 = vsel %vm159, %v104, 0
    %v324 = vsel %vm159, %v105, 0
    %v327 = vsel %vm159, %v106, 0
    %329 = vmatprep.subr.mxu0 %v321
    %330 = vmatpush1.msra.mxu0 %v318
    %331 = vmatprep.subr.mxu0 0.0
    %332 = vmatpush1.msra.mxu0 0.0
    %333 = vmatprep.subr.mxu0 0.0
    %334 = vmatpush1.msra.mxu0 0.0
    %335 = vmatprep.subr.mxu0 0.0
    %336 = vmatpush1.msra.mxu0 0.0
    %337 = vmatprep.subr.mxu0 0.0
    %338 = vmatpush1.msra.mxu0 0.0
    %339 = vmatprep.subr.mxu0 0.0
    %340 = vmatpush1.msra.mxu0 0.0
    %341 = vmatprep.subr.mxu0 0.0
    %342 = vmatpush1.msra.mxu0 0.0
    %343 = vmatprep.subr.mxu0 0.0
    %344 = vmatpush1.msra.mxu0 0.0
    %345 = vmatprep.subr.mxu0 0.0
    %346 = vmatpush1.msra.mxu0 0.0
    %347 = vmatprep.subr.mxu0 0.0
    %348 = vmatpush1.msra.mxu0 0.0
    %349 = vmatprep.subr.mxu0 0.0
    %350 = vmatpush1.msra.mxu0 0.0
    %351 = vmatprep.subr.mxu0 0.0
    %352 = vmatpush1.msra.mxu0 0.0
    %353 = vmatprep.subr.mxu0 0.0
    %354 = vmatpush1.msra.mxu0 0.0
    %355 = vmatprep.subr.mxu0 0.0
    %356 = vmatpush1.msra.mxu0 0.0
    %357 = vmatprep.subr.mxu0 0.0
    %358 = vmatpush1.msra.mxu0 0.0
    %359 = vmatprep.subr.mxu0 0.0
    %360 = vmatpush1.msra.mxu0 0.0
    %361 = vmatprep.subr.mxu0 0.0
    %362 = vmatpush1.msra.mxu0 0.0
    %363 = vmatprep.subr.mxu0 0.0
    %364 = vmatpush1.msra.mxu0 0.0
    %365 = vmatprep.subr.mxu0 0.0
    %366 = vmatpush1.msra.mxu0 0.0
    %367 = vmatprep.subr.mxu0 0.0
    %368 = vmatpush1.msra.mxu0 0.0
    %369 = vmatprep.subr.mxu0 0.0
    %370 = vmatpush1.msra.mxu0 0.0
    %371 = vmatprep.subr.mxu0 0.0
    %372 = vmatpush1.msra.mxu0 0.0
    %373 = vmatprep.subr.mxu0 0.0
    %374 = vmatpush1.msra.mxu0 0.0
    %375 = vmatprep.subr.mxu0 0.0
    %376 = vmatpush1.msra.mxu0 0.0
    %377 = vmatprep.subr.mxu0 0.0
    %378 = vmatpush1.msra.mxu0 0.0
    %379 = vmatprep.subr.mxu0 0.0
    %380 = vmatpush1.msra.mxu0 0.0
    %381 = vmatprep.subr.mxu0 0.0
    %382 = vmatpush1.msra.mxu0 0.0
    %383 = vmatprep.subr.mxu0 0.0
    %384 = vmatpush1.msra.mxu0 0.0
    %385 = vmatprep.subr.mxu0 0.0
    %386 = vmatpush1.msra.mxu0 0.0
    %387 = vmatprep.subr.mxu0 0.0
    %388 = vmatpush1.msra.mxu0 0.0
    %389 = vmatprep.subr.mxu0 0.0
    %390 = vmatpush1.msra.mxu0 0.0
    %391 = vmatprep.subr.mxu0 0.0
    %392 = vmatpush1.msra.mxu0 0.0
    %393 = vmatprep.mubr.f32.mxu0 0.0
    %394 = vmatmul.mubr.f32.gmra.mrb[0].mxu0 %v315
    %v395 = vpop.f32.mrb[0].mxu0
    %v396 = vadd.f32 %v239, %v395
    %v397 = vpop.f32.mrb[0].mxu0
    %v398 = vadd.f32 %v241, %v397
    %399 = vdwg.mxu0
    %400 = vmatprep.subr.mxu0 %v327
    %401 = vmatpush1.msra.mxu0 %v324
    %402 = vmatprep.subr.mxu0 0.0
    %403 = vmatpush1.msra.mxu0 0.0
    %404 = vmatprep.subr.mxu0 0.0
    %405 = vmatpush1.msra.mxu0 0.0
    %406 = vmatprep.subr.mxu0 0.0
    %407 = vmatpush1.msra.mxu0 0.0
    %408 = vmatprep.subr.mxu0 0.0
    %409 = vmatpush1.msra.mxu0 0.0
    %410 = vmatprep.subr.mxu0 0.0
    %411 = vmatpush1.msra.mxu0 0.0
    %412 = vmatprep.subr.mxu0 0.0
    %413 = vmatpush1.msra.mxu0 0.0
    %414 = vmatprep.subr.mxu0 0.0
    %415 = vmatpush1.msra.mxu0 0.0
    %416 = vmatprep.subr.mxu0 0.0
    %417 = vmatpush1.msra.mxu0 0.0
    %418 = vmatprep.subr.mxu0 0.0
    %419 = vmatpush1.msra.mxu0 0.0
    %420 = vmatprep.subr.mxu0 0.0
    %421 = vmatpush1.msra.mxu0 0.0
    %422 = vmatprep.subr.mxu0 0.0
    %423 = vmatpush1.msra.mxu0 0.0
    %424 = vmatprep.subr.mxu0 0.0
    %425 = vmatpush1.msra.mxu0 0.0
    %426 = vmatprep.subr.mxu0 0.0
    %427 = vmatpush1.msra.mxu0 0.0
    %428 = vmatprep.subr.mxu0 0.0
    %429 = vmatpush1.msra.mxu0 0.0
    %430 = vmatprep.subr.mxu0 0.0
    %431 = vmatpush1.msra.mxu0 0.0
    %432 = vmatprep.subr.mxu0 0.0
    %433 = vmatpush1.msra.mxu0 0.0
    %434 = vmatprep.subr.mxu0 0.0
    %435 = vmatpush1.msra.mxu0 0.0
    %436 = vmatprep.subr.mxu0 0.0
    %437 = vmatpush1.msra.mxu0 0.0
    %438 = vmatprep.subr.mxu0 0.0
    %439 = vmatpush1.msra.mxu0 0.0
    %440 = vmatprep.subr.mxu0 0.0
    %441 = vmatpush1.msra.mxu0 0.0
    %442 = vmatprep.subr.mxu0 0.0
    %443 = vmatpush1.msra.mxu0 0.0
    %444 = vmatprep.subr.mxu0 0.0
    %445 = vmatpush1.msra.mxu0 0.0
    %446 = vmatprep.subr.mxu0 0.0
    %447 = vmatpush1.msra.mxu0 0.0
    %448 = vmatprep.subr.mxu0 0.0
    %449 = vmatpush1.msra.mxu0 0.0
    %450 = vmatprep.subr.mxu0 0.0
    %451 = vmatpush1.msra.mxu0 0.0
    %452 = vmatprep.subr.mxu0 0.0
    %453 = vmatpush1.msra.mxu0 0.0
    %454 = vmatprep.subr.mxu0 0.0
    %455 = vmatpush1.msra.mxu0 0.0
    %456 = vmatprep.subr.mxu0 0.0
    %457 = vmatpush1.msra.mxu0 0.0
    %458 = vmatprep.subr.mxu0 0.0
    %459 = vmatpush1.msra.mxu0 0.0
    %460 = vmatprep.subr.mxu0 0.0
    %461 = vmatpush1.msra.mxu0 0.0
    %462 = vmatprep.subr.mxu0 0.0
    %463 = vmatpush1.msra.mxu0 0.0
    %464 = vmatprep.mubr.f32.mxu0 0.0
    %465 = vmatmul.mubr.f32.gmra.mrb[0].mxu0 %v315
    %v466 = vpop.f32.mrb[0].mxu0
    %v467 = vadd.f32 %v310, %v466
    %v468 = vpop.f32.mrb[0].mxu0
    %v469 = vadd.f32 %v312, %v468
    %470 = vdwg.mxu0
    %471 = vrot.lane.b32.xlu0 %v61, 15
    %v472 = vpop.permute.xlu0 %471
    %474 = vrot.lane.b32.xlu0 %v54, 15
    %v475 = vpop.permute.xlu0 %474
    %476 = vrot.lane.b32.xlu0 %v58, 15
    %v477 = vpop.permute.xlu0 %476
    %478 = vrot.lane.b32.xlu0 %v56, 15
    %v479 = vpop.permute.xlu0 %478
    %vm480 = vcmask 121856
    %v481 = vsel %vm480, %v475, %v477
    %v482 = vsel %vm480, %v477, %v479
    %v483 = vsel %vm480, %v479, %v472
    %v488 = vsel %vm480, %v472, %v475
    %s489 = scalar_lea.vmem %s11, 2
    %v490 = vld [vmem:[%s489] ss:$8 sm:$0xf]
    %v492 = vlaneseq
    %v493 = vshrl.u32 %v492, 7
    %v494 = vsub.s32 0, %v493
    %v495 = vrot.slane %v490, %v494
    %v496 = vlaneseq
    %v497 = vshrl.u32 %v496, 7
    %v498 = vsub.s32 1, %v497
    %v499 = vrot.slane %v490, %v498
    %v500 = vlaneseq
    %v501 = vshrl.u32 %v500, 7
    %v502 = vsub.s32 2, %v501
    %v503 = vrot.slane %v490, %v502
    %v504 = vlaneseq
    %v505 = vshrl.u32 %v504, 7
    %v506 = vsub.s32 3, %v505
    %v507 = vrot.slane %v490, %v506
    %v512 = vmul.f32 %v488, %v495
    %v513 = vmul.f32 %v481, %v499
    %v514 = vmul.f32 %v482, %v503
    %v515 = vmul.f32 %v483, %v507
    %s516 = scalar_lea.vmem %s1, 16
    %v517 = vld [vmem:[%s516] sm:$0xff]
    %v519 = vsel %vm155, %v517, 0
    %v522 = vsel %vm159, %v512, 0
    %v525 = vsel %vm159, %v513, 0
    %v528 = vsel %vm159, %v514, 0
    %v531 = vsel %vm159, %v515, 0
    %533 = vmatprep.subr.mxu0 %v525
    %534 = vmatpush1.msra.mxu0 %v522
    %535 = vmatprep.subr.mxu0 0.0
    %536 = vmatpush1.msra.mxu0 0.0
    %537 = vmatprep.subr.mxu0 0.0
    %538 = vmatpush1.msra.mxu0 0.0
    %539 = vmatprep.subr.mxu0 0.0
    %540 = vmatpush1.msra.mxu0 0.0
    %541 = vmatprep.subr.mxu0 0.0
    %542 = vmatpush1.msra.mxu0 0.0
    %543 = vmatprep.subr.mxu0 0.0
    %544 = vmatpush1.msra.mxu0 0.0
    %545 = vmatprep.subr.mxu0 0.0
    %546 = vmatpush1.msra.mxu0 0.0
    %547 = vmatprep.subr.mxu0 0.0
    %548 = vmatpush1.msra.mxu0 0.0
    %549 = vmatprep.subr.mxu0 0.0
    %550 = vmatpush1.msra.mxu0 0.0
    %551 = vmatprep.subr.mxu0 0.0
    %552 = vmatpush1.msra.mxu0 0.0
    %553 = vmatprep.subr.mxu0 0.0
    %554 = vmatpush1.msra.mxu0 0.0
    %555 = vmatprep.subr.mxu0 0.0
    %556 = vmatpush1.msra.mxu0 0.0
    %557 = vmatprep.subr.mxu0 0.0
    %558 = vmatpush1.msra.mxu0 0.0
    %559 = vmatprep.subr.mxu0 0.0
    %560 = vmatpush1.msra.mxu0 0.0
    %561 = vmatprep.subr.mxu0 0.0
    %562 = vmatpush1.msra.mxu0 0.0
    %563 = vmatprep.subr.mxu0 0.0
    %564 = vmatpush1.msra.mxu0 0.0
    %565 = vmatprep.subr.mxu0 0.0
    %566 = vmatpush1.msra.mxu0 0.0
    %567 = vmatprep.subr.mxu0 0.0
    %568 = vmatpush1.msra.mxu0 0.0
    %569 = vmatprep.subr.mxu0 0.0
    %570 = vmatpush1.msra.mxu0 0.0
    %571 = vmatprep.subr.mxu0 0.0
    %572 = vmatpush1.msra.mxu0 0.0
    %573 = vmatprep.subr.mxu0 0.0
    %574 = vmatpush1.msra.mxu0 0.0
    %575 = vmatprep.subr.mxu0 0.0
    %576 = vmatpush1.msra.mxu0 0.0
    %577 = vmatprep.subr.mxu0 0.0
    %578 = vmatpush1.msra.mxu0 0.0
    %579 = vmatprep.subr.mxu0 0.0
    %580 = vmatpush1.msra.mxu0 0.0
    %581 = vmatprep.subr.mxu0 0.0
    %582 = vmatpush1.msra.mxu0 0.0
    %583 = vmatprep.subr.mxu0 0.0
    %584 = vmatpush1.msra.mxu0 0.0
    %585 = vmatprep.subr.mxu0 0.0
    %586 = vmatpush1.msra.mxu0 0.0
    %587 = vmatprep.subr.mxu0 0.0
    %588 = vmatpush1.msra.mxu0 0.0
    %589 = vmatprep.subr.mxu0 0.0
    %590 = vmatpush1.msra.mxu0 0.0
    %591 = vmatprep.subr.mxu0 0.0
    %592 = vmatpush1.msra.mxu0 0.0
    %593 = vmatprep.subr.mxu0 0.0
    %594 = vmatpush1.msra.mxu0 0.0
    %595 = vmatprep.subr.mxu0 0.0
    %596 = vmatpush1.msra.mxu0 0.0
    %597 = vmatprep.mubr.f32.mxu0 0.0
    %598 = vmatmul.mubr.f32.gmra.mrb[0].mxu0 %v519
    %v599 = vpop.f32.mrb[0].mxu0
    %v600 = vadd.f32 0.0, %v599
    %v601 = vpop.f32.mrb[0].mxu0
    %v602 = vadd.f32 0.0, %v601
    %603 = vdwg.mxu0
    %604 = vmatprep.subr.mxu0 %v531
    %605 = vmatpush1.msra.mxu0 %v528
    %606 = vmatprep.subr.mxu0 0.0
    %607 = vmatpush1.msra.mxu0 0.0
    %608 = vmatprep.subr.mxu0 0.0
    %609 = vmatpush1.msra.mxu0 0.0
    %610 = vmatprep.subr.mxu0 0.0
    %611 = vmatpush1.msra.mxu0 0.0
    %612 = vmatprep.subr.mxu0 0.0
    %613 = vmatpush1.msra.mxu0 0.0
    %614 = vmatprep.subr.mxu0 0.0
    %615 = vmatpush1.msra.mxu0 0.0
    %616 = vmatprep.subr.mxu0 0.0
    %617 = vmatpush1.msra.mxu0 0.0
    %618 = vmatprep.subr.mxu0 0.0
    %619 = vmatpush1.msra.mxu0 0.0
    %620 = vmatprep.subr.mxu0 0.0
    %621 = vmatpush1.msra.mxu0 0.0
    %622 = vmatprep.subr.mxu0 0.0
    %623 = vmatpush1.msra.mxu0 0.0
    %624 = vmatprep.subr.mxu0 0.0
    %625 = vmatpush1.msra.mxu0 0.0
    %626 = vmatprep.subr.mxu0 0.0
    %627 = vmatpush1.msra.mxu0 0.0
    %628 = vmatprep.subr.mxu0 0.0
    %629 = vmatpush1.msra.mxu0 0.0
    %630 = vmatprep.subr.mxu0 0.0
    %631 = vmatpush1.msra.mxu0 0.0
    %632 = vmatprep.subr.mxu0 0.0
    %633 = vmatpush1.msra.mxu0 0.0
    %634 = vmatprep.subr.mxu0 0.0
    %635 = vmatpush1.msra.mxu0 0.0
    %636 = vmatprep.subr.mxu0 0.0
    %637 = vmatpush1.msra.mxu0 0.0
    %638 = vmatprep.subr.mxu0 0.0
    %639 = vmatpush1.msra.mxu0 0.0
    %640 = vmatprep.subr.mxu0 0.0
    %641 = vmatpush1.msra.mxu0 0.0
    %642 = vmatprep.subr.mxu0 0.0
    %643 = vmatpush1.msra.mxu0 0.0
    %644 = vmatprep.subr.mxu0 0.0
    %645 = vmatpush1.msra.mxu0 0.0
    %646 = vmatprep.subr.mxu0 0.0
    %647 = vmatpush1.msra.mxu0 0.0
    %648 = vmatprep.subr.mxu0 0.0
    %649 = vmatpush1.msra.mxu0 0.0
    %650 = vmatprep.subr.mxu0 0.0
    %651 = vmatpush1.msra.mxu0 0.0
    %652 = vmatprep.subr.mxu0 0.0
    %653 = vmatpush1.msra.mxu0 0.0
    %654 = vmatprep.subr.mxu0 0.0
    %655 = vmatpush1.msra.mxu0 0.0
    %656 = vmatprep.subr.mxu0 0.0
    %657 = vmatpush1.msra.mxu0 0.0
    %658 = vmatprep.subr.mxu0 0.0
    %659 = vmatpush1.msra.mxu0 0.0
    %660 = vmatprep.subr.mxu0 0.0
    %661 = vmatpush1.msra.mxu0 0.0
    %662 = vmatprep.subr.mxu0 0.0
    %663 = vmatpush1.msra.mxu0 0.0
    %664 = vmatprep.subr.mxu0 0.0
    %665 = vmatpush1.msra.mxu0 0.0
    %666 = vmatprep.subr.mxu0 0.0
    %667 = vmatpush1.msra.mxu0 0.0
    %668 = vmatprep.mubr.f32.mxu0 0.0
    %669 = vmatmul.mubr.f32.gmra.mrb[0].mxu0 %v519
    %v670 = vpop.f32.mrb[0].mxu0
    %v671 = vadd.f32 0.0, %v670
    %v672 = vpop.f32.mrb[0].mxu0
    %v673 = vadd.f32 0.0, %v672
    %674 = vdwg.mxu0
    %v675 = vadd.f32 %v396, %v600
    %v676 = vadd.f32 %v398, %v602
    %v677 = vadd.f32 %v467, %v671
    %v678 = vadd.f32 %v469, %v673
    %679 = vrot.lane.b32.xlu0 %v61, 1
    %v680 = vpop.permute.xlu0 %679
    %682 = vrot.lane.b32.xlu0 %v54, 1
    %v683 = vpop.permute.xlu0 %682
    %684 = vrot.lane.b32.xlu0 %v58, 1
    %v685 = vpop.permute.xlu0 %684
    %686 = vrot.lane.b32.xlu0 %v56, 1
    %v687 = vpop.permute.xlu0 %686
    %vm688 = vcmask 7168
    %v689 = vsel %vm688, %v683, %v685
    %v690 = vsel %vm688, %v685, %v687
    %v691 = vsel %vm688, %v687, %v680
    %v696 = vsel %vm688, %v680, %v683
    %s697 = scalar_lea.vmem %s11, 3
    %v698 = vld [vmem:[%s697] ss:$8 sm:$0xf]
    %v700 = vlaneseq
    %v701 = vshrl.u32 %v700, 7
    %v702 = vsub.s32 0, %v701
    %v703 = vrot.slane %v698, %v702
    %v704 = vlaneseq
    %v705 = vshrl.u32 %v704, 7
    %v706 = vsub.s32 1, %v705
    %v707 = vrot.slane %v698, %v706
    %v708 = vlaneseq
    %v709 = vshrl.u32 %v708, 7
    %v710 = vsub.s32 2, %v709
    %v711 = vrot.slane %v698, %v710
    %v712 = vlaneseq
    %v713 = vshrl.u32 %v712, 7
    %v714 = vsub.s32 3, %v713
    %v715 = vrot.slane %v698, %v714
    %v720 = vmul.f32 %v696, %v703
    %v721 = vmul.f32 %v689, %v707
    %v722 = vmul.f32 %v690, %v711
    %v723 = vmul.f32 %v691, %v715
    %s724 = scalar_lea.vmem %s1, 24
    %v725 = vld [vmem:[%s724] sm:$0xff]
    %v727 = vsel %vm155, %v725, 0
    %v730 = vsel %vm159, %v720, 0
    %v733 = vsel %vm159, %v721, 0
    %v736 = vsel %vm159, %v722, 0
    %v739 = vsel %vm159, %v723, 0
    %741 = vmatprep.subr.mxu0 %v733
    %742 = vmatpush1.msra.mxu0 %v730
    %743 = vmatprep.subr.mxu0 0.0
    %744 = vmatpush1.msra.mxu0 0.0
    %745 = vmatprep.subr.mxu0 0.0
    %746 = vmatpush1.msra.mxu0 0.0
    %747 = vmatprep.subr.mxu0 0.0
    %748 = vmatpush1.msra.mxu0 0.0
    %749 = vmatprep.subr.mxu0 0.0
    %750 = vmatpush1.msra.mxu0 0.0
    %751 = vmatprep.subr.mxu0 0.0
    %752 = vmatpush1.msra.mxu0 0.0
    %753 = vmatprep.subr.mxu0 0.0
    %754 = vmatpush1.msra.mxu0 0.0
    %755 = vmatprep.subr.mxu0 0.0
    %756 = vmatpush1.msra.mxu0 0.0
    %757 = vmatprep.subr.mxu0 0.0
    %758 = vmatpush1.msra.mxu0 0.0
    %759 = vmatprep.subr.mxu0 0.0
    %760 = vmatpush1.msra.mxu0 0.0
    %761 = vmatprep.subr.mxu0 0.0
    %762 = vmatpush1.msra.mxu0 0.0
    %763 = vmatprep.subr.mxu0 0.0
    %764 = vmatpush1.msra.mxu0 0.0
    %765 = vmatprep.subr.mxu0 0.0
    %766 = vmatpush1.msra.mxu0 0.0
    %767 = vmatprep.subr.mxu0 0.0
    %768 = vmatpush1.msra.mxu0 0.0
    %769 = vmatprep.subr.mxu0 0.0
    %770 = vmatpush1.msra.mxu0 0.0
    %771 = vmatprep.subr.mxu0 0.0
    %772 = vmatpush1.msra.mxu0 0.0
    %773 = vmatprep.subr.mxu0 0.0
    %774 = vmatpush1.msra.mxu0 0.0
    %775 = vmatprep.subr.mxu0 0.0
    %776 = vmatpush1.msra.mxu0 0.0
    %777 = vmatprep.subr.mxu0 0.0
    %778 = vmatpush1.msra.mxu0 0.0
    %779 = vmatprep.subr.mxu0 0.0
    %780 = vmatpush1.msra.mxu0 0.0
    %781 = vmatprep.subr.mxu0 0.0
    %782 = vmatpush1.msra.mxu0 0.0
    %783 = vmatprep.subr.mxu0 0.0
    %784 = vmatpush1.msra.mxu0 0.0
    %785 = vmatprep.subr.mxu0 0.0
    %786 = vmatpush1.msra.mxu0 0.0
    %787 = vmatprep.subr.mxu0 0.0
    %788 = vmatpush1.msra.mxu0 0.0
    %789 = vmatprep.subr.mxu0 0.0
    %790 = vmatpush1.msra.mxu0 0.0
    %791 = vmatprep.subr.mxu0 0.0
    %792 = vmatpush1.msra.mxu0 0.0
    %793 = vmatprep.subr.mxu0 0.0
    %794 = vmatpush1.msra.mxu0 0.0
    %795 = vmatprep.subr.mxu0 0.0
    %796 = vmatpush1.msra.mxu0 0.0
    %797 = vmatprep.subr.mxu0 0.0
    %798 = vmatpush1.msra.mxu0 0.0
    %799 = vmatprep.subr.mxu0 0.0
    %800 = vmatpush1.msra.mxu0 0.0
    %801 = vmatprep.subr.mxu0 0.0
    %802 = vmatpush1.msra.mxu0 0.0
    %803 = vmatprep.subr.mxu0 0.0
    %804 = vmatpush1.msra.mxu0 0.0
    %805 = vmatprep.mubr.f32.mxu0 0.0
    %806 = vmatmul.mubr.f32.gmra.mrb[0].mxu0 %v727
    %v807 = vpop.f32.mrb[0].mxu0
    %v808 = vadd.f32 0.0, %v807
    %v809 = vpop.f32.mrb[0].mxu0
    %v810 = vadd.f32 0.0, %v809
    %811 = vdwg.mxu0
    %812 = vmatprep.subr.mxu0 %v739
    %813 = vmatpush1.msra.mxu0 %v736
    %814 = vmatprep.subr.mxu0 0.0
    %815 = vmatpush1.msra.mxu0 0.0
    %816 = vmatprep.subr.mxu0 0.0
    %817 = vmatpush1.msra.mxu0 0.0
    %818 = vmatprep.subr.mxu0 0.0
    %819 = vmatpush1.msra.mxu0 0.0
    %820 = vmatprep.subr.mxu0 0.0
    %821 = vmatpush1.msra.mxu0 0.0
    %822 = vmatprep.subr.mxu0 0.0
    %823 = vmatpush1.msra.mxu0 0.0
    %824 = vmatprep.subr.mxu0 0.0
    %825 = vmatpush1.msra.mxu0 0.0
    %826 = vmatprep.subr.mxu0 0.0
    %827 = vmatpush1.msra.mxu0 0.0
    %828 = vmatprep.subr.mxu0 0.0
    %829 = vmatpush1.msra.mxu0 0.0
    %830 = vmatprep.subr.mxu0 0.0
    %831 = vmatpush1.msra.mxu0 0.0
    %832 = vmatprep.subr.mxu0 0.0
    %833 = vmatpush1.msra.mxu0 0.0
    %834 = vmatprep.subr.mxu0 0.0
    %835 = vmatpush1.msra.mxu0 0.0
    %836 = vmatprep.subr.mxu0 0.0
    %837 = vmatpush1.msra.mxu0 0.0
    %838 = vmatprep.subr.mxu0 0.0
    %839 = vmatpush1.msra.mxu0 0.0
    %840 = vmatprep.subr.mxu0 0.0
    %841 = vmatpush1.msra.mxu0 0.0
    %842 = vmatprep.subr.mxu0 0.0
    %843 = vmatpush1.msra.mxu0 0.0
    %844 = vmatprep.subr.mxu0 0.0
    %845 = vmatpush1.msra.mxu0 0.0
    %846 = vmatprep.subr.mxu0 0.0
    %847 = vmatpush1.msra.mxu0 0.0
    %848 = vmatprep.subr.mxu0 0.0
    %849 = vmatpush1.msra.mxu0 0.0
    %850 = vmatprep.subr.mxu0 0.0
    %851 = vmatpush1.msra.mxu0 0.0
    %852 = vmatprep.subr.mxu0 0.0
    %853 = vmatpush1.msra.mxu0 0.0
    %854 = vmatprep.subr.mxu0 0.0
    %855 = vmatpush1.msra.mxu0 0.0
    %856 = vmatprep.subr.mxu0 0.0
    %857 = vmatpush1.msra.mxu0 0.0
    %858 = vmatprep.subr.mxu0 0.0
    %859 = vmatpush1.msra.mxu0 0.0
    %860 = vmatprep.subr.mxu0 0.0
    %861 = vmatpush1.msra.mxu0 0.0
    %862 = vmatprep.subr.mxu0 0.0
    %863 = vmatpush1.msra.mxu0 0.0
    %864 = vmatprep.subr.mxu0 0.0
    %865 = vmatpush1.msra.mxu0 0.0
    %866 = vmatprep.subr.mxu0 0.0
    %867 = vmatpush1.msra.mxu0 0.0
    %868 = vmatprep.subr.mxu0 0.0
    %869 = vmatpush1.msra.mxu0 0.0
    %870 = vmatprep.subr.mxu0 0.0
    %871 = vmatpush1.msra.mxu0 0.0
    %872 = vmatprep.subr.mxu0 0.0
    %873 = vmatpush1.msra.mxu0 0.0
    %874 = vmatprep.subr.mxu0 0.0
    %875 = vmatpush1.msra.mxu0 0.0
    %876 = vmatprep.mubr.f32.mxu0 0.0
    %877 = vmatmul.mubr.f32.gmra.mrb[0].mxu0 %v727
    %v878 = vpop.f32.mrb[0].mxu0
    %v879 = vadd.f32 0.0, %v878
    %v880 = vpop.f32.mrb[0].mxu0
    %v881 = vadd.f32 0.0, %v880
    %882 = vdwg.mxu0
    %v883 = vadd.f32 %v675, %v808
    %v884 = vadd.f32 %v676, %v810
    %v885 = vadd.f32 %v677, %v879
    %v886 = vadd.f32 %v678, %v881
    %s887 = scalar_lea.vmem %s11, 4
    %v888 = vld [vmem:[%s887] ss:$8 sm:$0xf]
    %v890 = vlaneseq
    %v891 = vshrl.u32 %v890, 7
    %v892 = vsub.s32 0, %v891
    %v893 = vrot.slane %v888, %v892
    %v894 = vlaneseq
    %v895 = vshrl.u32 %v894, 7
    %v896 = vsub.s32 1, %v895
    %v897 = vrot.slane %v888, %v896
    %v898 = vlaneseq
    %v899 = vshrl.u32 %v898, 7
    %v900 = vsub.s32 2, %v899
    %v901 = vrot.slane %v888, %v900
    %v902 = vlaneseq
    %v903 = vshrl.u32 %v902, 7
    %v904 = vsub.s32 3, %v903
    %v905 = vrot.slane %v888, %v904
    %v910 = vmul.f32 %v54, %v893
    %v911 = vmul.f32 %v58, %v897
    %v912 = vmul.f32 %v56, %v901
    %v913 = vmul.f32 %v61, %v905
    %s914 = scalar_lea.vmem %s1, 32
    %v915 = vld [vmem:[%s914] sm:$0xff]
    %v917 = vsel %vm155, %v915, 0
    %v920 = vsel %vm159, %v910, 0
    %v923 = vsel %vm159, %v911, 0
    %v926 = vsel %vm159, %v912, 0
    %v929 = vsel %vm159, %v913, 0
    %931 = vmatprep.subr.mxu0 %v923
    %932 = vmatpush1.msra.mxu0 %v920
    %933 = vmatprep.subr.mxu0 0.0
    %934 = vmatpush1.msra.mxu0 0.0
    %935 = vmatprep.subr.mxu0 0.0
    %936 = vmatpush1.msra.mxu0 0.0
    %937 = vmatprep.subr.mxu0 0.0
    %938 = vmatpush1.msra.mxu0 0.0
    %939 = vmatprep.subr.mxu0 0.0
    %940 = vmatpush1.msra.mxu0 0.0
    %941 = vmatprep.subr.mxu0 0.0
    %942 = vmatpush1.msra.mxu0 0.0
    %943 = vmatprep.subr.mxu0 0.0
    %944 = vmatpush1.msra.mxu0 0.0
    %945 = vmatprep.subr.mxu0 0.0
    %946 = vmatpush1.msra.mxu0 0.0
    %947 = vmatprep.subr.mxu0 0.0
    %948 = vmatpush1.msra.mxu0 0.0
    %949 = vmatprep.subr.mxu0 0.0
    %950 = vmatpush1.msra.mxu0 0.0
    %951 = vmatprep.subr.mxu0 0.0
    %952 = vmatpush1.msra.mxu0 0.0
    %953 = vmatprep.subr.mxu0 0.0
    %954 = vmatpush1.msra.mxu0 0.0
    %955 = vmatprep.subr.mxu0 0.0
    %956 = vmatpush1.msra.mxu0 0.0
    %957 = vmatprep.subr.mxu0 0.0
    %958 = vmatpush1.msra.mxu0 0.0
    %959 = vmatprep.subr.mxu0 0.0
    %960 = vmatpush1.msra.mxu0 0.0
    %961 = vmatprep.subr.mxu0 0.0
    %962 = vmatpush1.msra.mxu0 0.0
    %963 = vmatprep.subr.mxu0 0.0
    %964 = vmatpush1.msra.mxu0 0.0
    %965 = vmatprep.subr.mxu0 0.0
    %966 = vmatpush1.msra.mxu0 0.0
    %967 = vmatprep.subr.mxu0 0.0
    %968 = vmatpush1.msra.mxu0 0.0
    %969 = vmatprep.subr.mxu0 0.0
    %970 = vmatpush1.msra.mxu0 0.0
    %971 = vmatprep.subr.mxu0 0.0
    %972 = vmatpush1.msra.mxu0 0.0
    %973 = vmatprep.subr.mxu0 0.0
    %974 = vmatpush1.msra.mxu0 0.0
    %975 = vmatprep.subr.mxu0 0.0
    %976 = vmatpush1.msra.mxu0 0.0
    %977 = vmatprep.subr.mxu0 0.0
    %978 = vmatpush1.msra.mxu0 0.0
    %979 = vmatprep.subr.mxu0 0.0
    %980 = vmatpush1.msra.mxu0 0.0
    %981 = vmatprep.subr.mxu0 0.0
    %982 = vmatpush1.msra.mxu0 0.0
    %983 = vmatprep.subr.mxu0 0.0
    %984 = vmatpush1.msra.mxu0 0.0
    %985 = vmatprep.subr.mxu0 0.0
    %986 = vmatpush1.msra.mxu0 0.0
    %987 = vmatprep.subr.mxu0 0.0
    %988 = vmatpush1.msra.mxu0 0.0
    %989 = vmatprep.subr.mxu0 0.0
    %990 = vmatpush1.msra.mxu0 0.0
    %991 = vmatprep.subr.mxu0 0.0
    %992 = vmatpush1.msra.mxu0 0.0
    %993 = vmatprep.subr.mxu0 0.0
    %994 = vmatpush1.msra.mxu0 0.0
    %995 = vmatprep.mubr.f32.mxu0 0.0
    %996 = vmatmul.mubr.f32.gmra.mrb[0].mxu0 %v917
    %v997 = vpop.f32.mrb[0].mxu0
    %v998 = vadd.f32 0.0, %v997
    %v999 = vpop.f32.mrb[0].mxu0
    %v1000 = vadd.f32 0.0, %v999
    %1001 = vdwg.mxu0
    %1002 = vmatprep.subr.mxu0 %v929
    %1003 = vmatpush1.msra.mxu0 %v926
    %1004 = vmatprep.subr.mxu0 0.0
    %1005 = vmatpush1.msra.mxu0 0.0
    %1006 = vmatprep.subr.mxu0 0.0
    %1007 = vmatpush1.msra.mxu0 0.0
    %1008 = vmatprep.subr.mxu0 0.0
    %1009 = vmatpush1.msra.mxu0 0.0
    %1010 = vmatprep.subr.mxu0 0.0
    %1011 = vmatpush1.msra.mxu0 0.0
    %1012 = vmatprep.subr.mxu0 0.0
    %1013 = vmatpush1.msra.mxu0 0.0
    %1014 = vmatprep.subr.mxu0 0.0
    %1015 = vmatpush1.msra.mxu0 0.0
    %1016 = vmatprep.subr.mxu0 0.0
    %1017 = vmatpush1.msra.mxu0 0.0
    %1018 = vmatprep.subr.mxu0 0.0
    %1019 = vmatpush1.msra.mxu0 0.0
    %1020 = vmatprep.subr.mxu0 0.0
    %1021 = vmatpush1.msra.mxu0 0.0
    %1022 = vmatprep.subr.mxu0 0.0
    %1023 = vmatpush1.msra.mxu0 0.0
    %1024 = vmatprep.subr.mxu0 0.0
    %1025 = vmatpush1.msra.mxu0 0.0
    %1026 = vmatprep.subr.mxu0 0.0
    %1027 = vmatpush1.msra.mxu0 0.0
    %1028 = vmatprep.subr.mxu0 0.0
    %1029 = vmatpush1.msra.mxu0 0.0
    %1030 = vmatprep.subr.mxu0 0.0
    %1031 = vmatpush1.msra.mxu0 0.0
    %1032 = vmatprep.subr.mxu0 0.0
    %1033 = vmatpush1.msra.mxu0 0.0
    %1034 = vmatprep.subr.mxu0 0.0
    %1035 = vmatpush1.msra.mxu0 0.0
    %1036 = vmatprep.subr.mxu0 0.0
    %1037 = vmatpush1.msra.mxu0 0.0
    %1038 = vmatprep.subr.mxu0 0.0
    %1039 = vmatpush1.msra.mxu0 0.0
    %1040 = vmatprep.subr.mxu0 0.0
    %1041 = vmatpush1.msra.mxu0 0.0
    %1042 = vmatprep.subr.mxu0 0.0
    %1043 = vmatpush1.msra.mxu0 0.0
    %1044 = vmatprep.subr.mxu0 0.0
    %1045 = vmatpush1.msra.mxu0 0.0
    %1046 = vmatprep.subr.mxu0 0.0
    %1047 = vmatpush1.msra.mxu0 0.0
    %1048 = vmatprep.subr.mxu0 0.0
    %1049 = vmatpush1.msra.mxu0 0.0
    %1050 = vmatprep.subr.mxu0 0.0
    %1051 = vmatpush1.msra.mxu0 0.0
    %1052 = vmatprep.subr.mxu0 0.0
    %1053 = vmatpush1.msra.mxu0 0.0
    %1054 = vmatprep.subr.mxu0 0.0
    %1055 = vmatpush1.msra.mxu0 0.0
    %1056 = vmatprep.subr.mxu0 0.0
    %1057 = vmatpush1.msra.mxu0 0.0
    %1058 = vmatprep.subr.mxu0 0.0
    %1059 = vmatpush1.msra.mxu0 0.0
    %1060 = vmatprep.subr.mxu0 0.0
    %1061 = vmatpush1.msra.mxu0 0.0
    %1062 = vmatprep.subr.mxu0 0.0
    %1063 = vmatpush1.msra.mxu0 0.0
    %1064 = vmatprep.subr.mxu0 0.0
    %1065 = vmatpush1.msra.mxu0 0.0
    %1066 = vmatprep.mubr.f32.mxu0 0.0
    %1067 = vmatmul.mubr.f32.gmra.mrb[0].mxu0 %v917
    %v1068 = vpop.f32.mrb[0].mxu0
    %v1069 = vadd.f32 0.0, %v1068
    %v1070 = vpop.f32.mrb[0].mxu0
    %v1071 = vadd.f32 0.0, %v1070
    %1072 = vdwg.mxu0
    %v1073 = vadd.f32 %v883, %v998
    %v1074 = vadd.f32 %v884, %v1000
    %v1075 = vadd.f32 %v885, %v1069
    %v1076 = vadd.f32 %v886, %v1071
    %1077 = vrot.lane.b32.xlu0 %v54, 127
    %v1078 = vpop.permute.xlu0 %1077
    %1079 = vrot.lane.b32.xlu0 %v58, 127
    %v1080 = vpop.permute.xlu0 %1079
    %1081 = vrot.lane.b32.xlu0 %v56, 127
    %v1082 = vpop.permute.xlu0 %1081
    %1083 = vrot.lane.b32.xlu0 %v61, 127
    %v1084 = vpop.permute.xlu0 %1083
    %vm1085 = vcmask 1039360
    %v1086 = vsel %vm1085, %v1078, %v1080
    %v1087 = vsel %vm1085, %v1080, %v1082
    %v1088 = vsel %vm1085, %v1082, %v1084
    %v1094 = vsel %vm1085, %v1084, %v1078
    %s1095 = scalar_lea.vmem %s11, 5
    %v1096 = vld [vmem:[%s1095] ss:$8 sm:$0xf]
    %v1098 = vlaneseq
    %v1099 = vshrl.u32 %v1098, 7
    %v1100 = vsub.s32 0, %v1099
    %v1101 = vrot.slane %v1096, %v1100
    %v1102 = vlaneseq
    %v1103 = vshrl.u32 %v1102, 7
    %v1104 = vsub.s32 1, %v1103
    %v1105 = vrot.slane %v1096, %v1104
    %v1106 = vlaneseq
    %v1107 = vshrl.u32 %v1106, 7
    %v1108 = vsub.s32 2, %v1107
    %v1109 = vrot.slane %v1096, %v1108
    %v1110 = vlaneseq
    %v1111 = vshrl.u32 %v1110, 7
    %v1112 = vsub.s32 3, %v1111
    %v1113 = vrot.slane %v1096, %v1112
    %v1118 = vmul.f32 %v1086, %v1101
    %v1119 = vmul.f32 %v1087, %v1105
    %v1120 = vmul.f32 %v1088, %v1109
    %v1121 = vmul.f32 %v1094, %v1113
    %s1122 = scalar_lea.vmem %s1, 40
    %v1123 = vld [vmem:[%s1122] sm:$0xff]
    %v1125 = vsel %vm155, %v1123, 0
    %v1128 = vsel %vm159, %v1118, 0
    %v1131 = vsel %vm159, %v1119, 0
    %v1134 = vsel %vm159, %v1120, 0
    %v1137 = vsel %vm159, %v1121, 0
    %1139 = vmatprep.subr.mxu0 %v1131
    %1140 = vmatpush1.msra.mxu0 %v1128
    %1141 = vmatprep.subr.mxu0 0.0
    %1142 = vmatpush1.msra.mxu0 0.0
    %1143 = vmatprep.subr.mxu0 0.0
    %1144 = vmatpush1.msra.mxu0 0.0
    %1145 = vmatprep.subr.mxu0 0.0
    %1146 = vmatpush1.msra.mxu0 0.0
    %1147 = vmatprep.subr.mxu0 0.0
    %1148 = vmatpush1.msra.mxu0 0.0
    %1149 = vmatprep.subr.mxu0 0.0
    %1150 = vmatpush1.msra.mxu0 0.0
    %1151 = vmatprep.subr.mxu0 0.0
    %1152 = vmatpush1.msra.mxu0 0.0
    %1153 = vmatprep.subr.mxu0 0.0
    %1154 = vmatpush1.msra.mxu0 0.0
    %1155 = vmatprep.subr.mxu0 0.0
    %1156 = vmatpush1.msra.mxu0 0.0
    %1157 = vmatprep.subr.mxu0 0.0
    %1158 = vmatpush1.msra.mxu0 0.0
    %1159 = vmatprep.subr.mxu0 0.0
    %1160 = vmatpush1.msra.mxu0 0.0
    %1161 = vmatprep.subr.mxu0 0.0
    %1162 = vmatpush1.msra.mxu0 0.0
    %1163 = vmatprep.subr.mxu0 0.0
    %1164 = vmatpush1.msra.mxu0 0.0
    %1165 = vmatprep.subr.mxu0 0.0
    %1166 = vmatpush1.msra.mxu0 0.0
    %1167 = vmatprep.subr.mxu0 0.0
    %1168 = vmatpush1.msra.mxu0 0.0
    %1169 = vmatprep.subr.mxu0 0.0
    %1170 = vmatpush1.msra.mxu0 0.0
    %1171 = vmatprep.subr.mxu0 0.0
    %1172 = vmatpush1.msra.mxu0 0.0
    %1173 = vmatprep.subr.mxu0 0.0
    %1174 = vmatpush1.msra.mxu0 0.0
    %1175 = vmatprep.subr.mxu0 0.0
    %1176 = vmatpush1.msra.mxu0 0.0
    %1177 = vmatprep.subr.mxu0 0.0
    %1178 = vmatpush1.msra.mxu0 0.0
    %1179 = vmatprep.subr.mxu0 0.0
    %1180 = vmatpush1.msra.mxu0 0.0
    %1181 = vmatprep.subr.mxu0 0.0
    %1182 = vmatpush1.msra.mxu0 0.0
    %1183 = vmatprep.subr.mxu0 0.0
    %1184 = vmatpush1.msra.mxu0 0.0
    %1185 = vmatprep.subr.mxu0 0.0
    %1186 = vmatpush1.msra.mxu0 0.0
    %1187 = vmatprep.subr.mxu0 0.0
    %1188 = vmatpush1.msra.mxu0 0.0
    %1189 = vmatprep.subr.mxu0 0.0
    %1190 = vmatpush1.msra.mxu0 0.0
    %1191 = vmatprep.subr.mxu0 0.0
    %1192 = vmatpush1.msra.mxu0 0.0
    %1193 = vmatprep.subr.mxu0 0.0
    %1194 = vmatpush1.msra.mxu0 0.0
    %1195 = vmatprep.subr.mxu0 0.0
    %1196 = vmatpush1.msra.mxu0 0.0
    %1197 = vmatprep.subr.mxu0 0.0
    %1198 = vmatpush1.msra.mxu0 0.0
    %1199 = vmatprep.subr.mxu0 0.0
    %1200 = vmatpush1.msra.mxu0 0.0
    %1201 = vmatprep.subr.mxu0 0.0
    %1202 = vmatpush1.msra.mxu0 0.0
    %1203 = vmatprep.mubr.f32.mxu0 0.0
    %1204 = vmatmul.mubr.f32.gmra.mrb[0].mxu0 %v1125
    %v1205 = vpop.f32.mrb[0].mxu0
    %v1206 = vadd.f32 0.0, %v1205
    %v1207 = vpop.f32.mrb[0].mxu0
    %v1208 = vadd.f32 0.0, %v1207
    %1209 = vdwg.mxu0
    %1210 = vmatprep.subr.mxu0 %v1137
    %1211 = vmatpush1.msra.mxu0 %v1134
    %1212 = vmatprep.subr.mxu0 0.0
    %1213 = vmatpush1.msra.mxu0 0.0
    %1214 = vmatprep.subr.mxu0 0.0
    %1215 = vmatpush1.msra.mxu0 0.0
    %1216 = vmatprep.subr.mxu0 0.0
    %1217 = vmatpush1.msra.mxu0 0.0
    %1218 = vmatprep.subr.mxu0 0.0
    %1219 = vmatpush1.msra.mxu0 0.0
    %1220 = vmatprep.subr.mxu0 0.0
    %1221 = vmatpush1.msra.mxu0 0.0
    %1222 = vmatprep.subr.mxu0 0.0
    %1223 = vmatpush1.msra.mxu0 0.0
    %1224 = vmatprep.subr.mxu0 0.0
    %1225 = vmatpush1.msra.mxu0 0.0
    %1226 = vmatprep.subr.mxu0 0.0
    %1227 = vmatpush1.msra.mxu0 0.0
    %1228 = vmatprep.subr.mxu0 0.0
    %1229 = vmatpush1.msra.mxu0 0.0
    %1230 = vmatprep.subr.mxu0 0.0
    %1231 = vmatpush1.msra.mxu0 0.0
    %1232 = vmatprep.subr.mxu0 0.0
    %1233 = vmatpush1.msra.mxu0 0.0
    %1234 = vmatprep.subr.mxu0 0.0
    %1235 = vmatpush1.msra.mxu0 0.0
    %1236 = vmatprep.subr.mxu0 0.0
    %1237 = vmatpush1.msra.mxu0 0.0
    %1238 = vmatprep.subr.mxu0 0.0
    %1239 = vmatpush1.msra.mxu0 0.0
    %1240 = vmatprep.subr.mxu0 0.0
    %1241 = vmatpush1.msra.mxu0 0.0
    %1242 = vmatprep.subr.mxu0 0.0
    %1243 = vmatpush1.msra.mxu0 0.0
    %1244 = vmatprep.subr.mxu0 0.0
    %1245 = vmatpush1.msra.mxu0 0.0
    %1246 = vmatprep.subr.mxu0 0.0
    %1247 = vmatpush1.msra.mxu0 0.0
    %1248 = vmatprep.subr.mxu0 0.0
    %1249 = vmatpush1.msra.mxu0 0.0
    %1250 = vmatprep.subr.mxu0 0.0
    %1251 = vmatpush1.msra.mxu0 0.0
    %1252 = vmatprep.subr.mxu0 0.0
    %1253 = vmatpush1.msra.mxu0 0.0
    %1254 = vmatprep.subr.mxu0 0.0
    %1255 = vmatpush1.msra.mxu0 0.0
    %1256 = vmatprep.subr.mxu0 0.0
    %1257 = vmatpush1.msra.mxu0 0.0
    %1258 = vmatprep.subr.mxu0 0.0
    %1259 = vmatpush1.msra.mxu0 0.0
    %1260 = vmatprep.subr.mxu0 0.0
    %1261 = vmatpush1.msra.mxu0 0.0
    %1262 = vmatprep.subr.mxu0 0.0
    %1263 = vmatpush1.msra.mxu0 0.0
    %1264 = vmatprep.subr.mxu0 0.0
    %1265 = vmatpush1.msra.mxu0 0.0
    %1266 = vmatprep.subr.mxu0 0.0
    %1267 = vmatpush1.msra.mxu0 0.0
    %1268 = vmatprep.subr.mxu0 0.0
    %1269 = vmatpush1.msra.mxu0 0.0
    %1270 = vmatprep.subr.mxu0 0.0
    %1271 = vmatpush1.msra.mxu0 0.0
    %1272 = vmatprep.subr.mxu0 0.0
    %1273 = vmatpush1.msra.mxu0 0.0
    %1274 = vmatprep.mubr.f32.mxu0 0.0
    %1275 = vmatmul.mubr.f32.gmra.mrb[0].mxu0 %v1125
    %v1276 = vpop.f32.mrb[0].mxu0
    %v1277 = vadd.f32 0.0, %v1276
    %v1278 = vpop.f32.mrb[0].mxu0
    %v1279 = vadd.f32 0.0, %v1278
    %1280 = vdwg.mxu0
    %v1281 = vadd.f32 %v1073, %v1206
    %v1282 = vadd.f32 %v1074, %v1208
    %v1283 = vadd.f32 %v1075, %v1277
    %v1284 = vadd.f32 %v1076, %v1279
    %1285 = vrot.lane.b32.xlu0 %v54, 113
    %v1286 = vpop.permute.xlu0 %1285
    %1287 = vrot.lane.b32.xlu0 %v58, 113
    %v1288 = vpop.permute.xlu0 %1287
    %1289 = vrot.lane.b32.xlu0 %v56, 113
    %v1290 = vpop.permute.xlu0 %1289
    %1291 = vrot.lane.b32.xlu0 %v61, 113
    %v1292 = vpop.permute.xlu0 %1291
    %vm1293 = vcmask 924672
    %v1294 = vsel %vm1293, %v1286, %v1288
    %v1295 = vsel %vm1293, %v1288, %v1290
    %v1296 = vsel %vm1293, %v1290, %v1292
    %v1302 = vsel %vm1293, %v1292, %v1286
    %s1303 = scalar_lea.vmem %s11, 6
    %v1304 = vld [vmem:[%s1303] ss:$8 sm:$0xf]
    %v1306 = vlaneseq
    %v1307 = vshrl.u32 %v1306, 7
    %v1308 = vsub.s32 0, %v1307
    %v1309 = vrot.slane %v1304, %v1308
    %v1310 = vlaneseq
    %v1311 = vshrl.u32 %v1310, 7
    %v1312 = vsub.s32 1, %v1311
    %v1313 = vrot.slane %v1304, %v1312
    %v1314 = vlaneseq
    %v1315 = vshrl.u32 %v1314, 7
    %v1316 = vsub.s32 2, %v1315
    %v1317 = vrot.slane %v1304, %v1316
    %v1318 = vlaneseq
    %v1319 = vshrl.u32 %v1318, 7
    %v1320 = vsub.s32 3, %v1319
    %v1321 = vrot.slane %v1304, %v1320
    %v1326 = vmul.f32 %v1294, %v1309
    %v1327 = vmul.f32 %v1295, %v1313
    %v1328 = vmul.f32 %v1296, %v1317
    %v1329 = vmul.f32 %v1302, %v1321
    %s1330 = scalar_lea.vmem %s1, 48
    %v1331 = vld [vmem:[%s1330] sm:$0xff]
    %v1333 = vsel %vm155, %v1331, 0
    %v1336 = vsel %vm159, %v1326, 0
    %v1339 = vsel %vm159, %v1327, 0
    %v1342 = vsel %vm159, %v1328, 0
    %v1345 = vsel %vm159, %v1329, 0
    %1347 = vmatprep.subr.mxu0 %v1339
    %1348 = vmatpush1.msra.mxu0 %v1336
    %1349 = vmatprep.subr.mxu0 0.0
    %1350 = vmatpush1.msra.mxu0 0.0
    %1351 = vmatprep.subr.mxu0 0.0
    %1352 = vmatpush1.msra.mxu0 0.0
    %1353 = vmatprep.subr.mxu0 0.0
    %1354 = vmatpush1.msra.mxu0 0.0
    %1355 = vmatprep.subr.mxu0 0.0
    %1356 = vmatpush1.msra.mxu0 0.0
    %1357 = vmatprep.subr.mxu0 0.0
    %1358 = vmatpush1.msra.mxu0 0.0
    %1359 = vmatprep.subr.mxu0 0.0
    %1360 = vmatpush1.msra.mxu0 0.0
    %1361 = vmatprep.subr.mxu0 0.0
    %1362 = vmatpush1.msra.mxu0 0.0
    %1363 = vmatprep.subr.mxu0 0.0
    %1364 = vmatpush1.msra.mxu0 0.0
    %1365 = vmatprep.subr.mxu0 0.0
    %1366 = vmatpush1.msra.mxu0 0.0
    %1367 = vmatprep.subr.mxu0 0.0
    %1368 = vmatpush1.msra.mxu0 0.0
    %1369 = vmatprep.subr.mxu0 0.0
    %1370 = vmatpush1.msra.mxu0 0.0
    %1371 = vmatprep.subr.mxu0 0.0
    %1372 = vmatpush1.msra.mxu0 0.0
    %1373 = vmatprep.subr.mxu0 0.0
    %1374 = vmatpush1.msra.mxu0 0.0
    %1375 = vmatprep.subr.mxu0 0.0
    %1376 = vmatpush1.msra.mxu0 0.0
    %1377 = vmatprep.subr.mxu0 0.0
    %1378 = vmatpush1.msra.mxu0 0.0
    %1379 = vmatprep.subr.mxu0 0.0
    %1380 = vmatpush1.msra.mxu0 0.0
    %1381 = vmatprep.subr.mxu0 0.0
    %1382 = vmatpush1.msra.mxu0 0.0
    %1383 = vmatprep.subr.mxu0 0.0
    %1384 = vmatpush1.msra.mxu0 0.0
    %1385 = vmatprep.subr.mxu0 0.0
    %1386 = vmatpush1.msra.mxu0 0.0
    %1387 = vmatprep.subr.mxu0 0.0
    %1388 = vmatpush1.msra.mxu0 0.0
    %1389 = vmatprep.subr.mxu0 0.0
    %1390 = vmatpush1.msra.mxu0 0.0
    %1391 = vmatprep.subr.mxu0 0.0
    %1392 = vmatpush1.msra.mxu0 0.0
    %1393 = vmatprep.subr.mxu0 0.0
    %1394 = vmatpush1.msra.mxu0 0.0
    %1395 = vmatprep.subr.mxu0 0.0
    %1396 = vmatpush1.msra.mxu0 0.0
    %1397 = vmatprep.subr.mxu0 0.0
    %1398 = vmatpush1.msra.mxu0 0.0
    %1399 = vmatprep.subr.mxu0 0.0
    %1400 = vmatpush1.msra.mxu0 0.0
    %1401 = vmatprep.subr.mxu0 0.0
    %1402 = vmatpush1.msra.mxu0 0.0
    %1403 = vmatprep.subr.mxu0 0.0
    %1404 = vmatpush1.msra.mxu0 0.0
    %1405 = vmatprep.subr.mxu0 0.0
    %1406 = vmatpush1.msra.mxu0 0.0
    %1407 = vmatprep.subr.mxu0 0.0
    %1408 = vmatpush1.msra.mxu0 0.0
    %1409 = vmatprep.subr.mxu0 0.0
    %1410 = vmatpush1.msra.mxu0 0.0
    %1411 = vmatprep.mubr.f32.mxu0 0.0
    %1412 = vmatmul.mubr.f32.gmra.mrb[0].mxu0 %v1333
    %v1413 = vpop.f32.mrb[0].mxu0
    %v1414 = vadd.f32 0.0, %v1413
    %v1415 = vpop.f32.mrb[0].mxu0
    %v1416 = vadd.f32 0.0, %v1415
    %1417 = vdwg.mxu0
    %1418 = vmatprep.subr.mxu0 %v1345
    %1419 = vmatpush1.msra.mxu0 %v1342
    %1420 = vmatprep.subr.mxu0 0.0
    %1421 = vmatpush1.msra.mxu0 0.0
    %1422 = vmatprep.subr.mxu0 0.0
    %1423 = vmatpush1.msra.mxu0 0.0
    %1424 = vmatprep.subr.mxu0 0.0
    %1425 = vmatpush1.msra.mxu0 0.0
    %1426 = vmatprep.subr.mxu0 0.0
    %1427 = vmatpush1.msra.mxu0 0.0
    %1428 = vmatprep.subr.mxu0 0.0
    %1429 = vmatpush1.msra.mxu0 0.0
    %1430 = vmatprep.subr.mxu0 0.0
    %1431 = vmatpush1.msra.mxu0 0.0
    %1432 = vmatprep.subr.mxu0 0.0
    %1433 = vmatpush1.msra.mxu0 0.0
    %1434 = vmatprep.subr.mxu0 0.0
    %1435 = vmatpush1.msra.mxu0 0.0
    %1436 = vmatprep.subr.mxu0 0.0
    %1437 = vmatpush1.msra.mxu0 0.0
    %1438 = vmatprep.subr.mxu0 0.0
    %1439 = vmatpush1.msra.mxu0 0.0
    %1440 = vmatprep.subr.mxu0 0.0
    %1441 = vmatpush1.msra.mxu0 0.0
    %1442 = vmatprep.subr.mxu0 0.0
    %1443 = vmatpush1.msra.mxu0 0.0
    %1444 = vmatprep.subr.mxu0 0.0
    %1445 = vmatpush1.msra.mxu0 0.0
    %1446 = vmatprep.subr.mxu0 0.0
    %1447 = vmatpush1.msra.mxu0 0.0
    %1448 = vmatprep.subr.mxu0 0.0
    %1449 = vmatpush1.msra.mxu0 0.0
    %1450 = vmatprep.subr.mxu0 0.0
    %1451 = vmatpush1.msra.mxu0 0.0
    %1452 = vmatprep.subr.mxu0 0.0
    %1453 = vmatpush1.msra.mxu0 0.0
    %1454 = vmatprep.subr.mxu0 0.0
    %1455 = vmatpush1.msra.mxu0 0.0
    %1456 = vmatprep.subr.mxu0 0.0
    %1457 = vmatpush1.msra.mxu0 0.0
    %1458 = vmatprep.subr.mxu0 0.0
    %1459 = vmatpush1.msra.mxu0 0.0
    %1460 = vmatprep.subr.mxu0 0.0
    %1461 = vmatpush1.msra.mxu0 0.0
    %1462 = vmatprep.subr.mxu0 0.0
    %1463 = vmatpush1.msra.mxu0 0.0
    %1464 = vmatprep.subr.mxu0 0.0
    %1465 = vmatpush1.msra.mxu0 0.0
    %1466 = vmatprep.subr.mxu0 0.0
    %1467 = vmatpush1.msra.mxu0 0.0
    %1468 = vmatprep.subr.mxu0 0.0
    %1469 = vmatpush1.msra.mxu0 0.0
    %1470 = vmatprep.subr.mxu0 0.0
    %1471 = vmatpush1.msra.mxu0 0.0
    %1472 = vmatprep.subr.mxu0 0.0
    %1473 = vmatpush1.msra.mxu0 0.0
    %1474 = vmatprep.subr.mxu0 0.0
    %1475 = vmatpush1.msra.mxu0 0.0
    %1476 = vmatprep.subr.mxu0 0.0
    %1477 = vmatpush1.msra.mxu0 0.0
    %1478 = vmatprep.subr.mxu0 0.0
    %1479 = vmatpush1.msra.mxu0 0.0
    %1480 = vmatprep.subr.mxu0 0.0
    %1481 = vmatpush1.msra.mxu0 0.0
    %1482 = vmatprep.mubr.f32.mxu0 0.0
    %1483 = vmatmul.mubr.f32.gmra.mrb[0].mxu0 %v1333
    %v1484 = vpop.f32.mrb[0].mxu0
    %v1485 = vadd.f32 0.0, %v1484
    %v1486 = vpop.f32.mrb[0].mxu0
    %v1487 = vadd.f32 0.0, %v1486
    %1488 = vdwg.mxu0
    %v1489 = vadd.f32 %v1281, %v1414
    %v1490 = vadd.f32 %v1282, %v1416
    %v1491 = vadd.f32 %v1283, %v1485
    %v1492 = vadd.f32 %v1284, %v1487
    %1493 = vrot.lane.b32.xlu0 %v54, 112
    %v1494 = vpop.permute.xlu0 %1493
    %1495 = vrot.lane.b32.xlu0 %v58, 112
    %v1496 = vpop.permute.xlu0 %1495
    %1497 = vrot.lane.b32.xlu0 %v56, 112
    %v1498 = vpop.permute.xlu0 %1497
    %1499 = vrot.lane.b32.xlu0 %v61, 112
    %v1500 = vpop.permute.xlu0 %1499
    %vm1501 = vcmask 916480
    %v1502 = vsel %vm1501, %v1494, %v1496
    %v1503 = vsel %vm1501, %v1496, %v1498
    %v1504 = vsel %vm1501, %v1498, %v1500
    %v1510 = vsel %vm1501, %v1500, %v1494
    %s1511 = scalar_lea.vmem %s11, 7
    %v1512 = vld [vmem:[%s1511] ss:$8 sm:$0xf]
    %v1514 = vlaneseq
    %v1515 = vshrl.u32 %v1514, 7
    %v1516 = vsub.s32 0, %v1515
    %v1517 = vrot.slane %v1512, %v1516
    %v1518 = vlaneseq
    %v1519 = vshrl.u32 %v1518, 7
    %v1520 = vsub.s32 1, %v1519
    %v1521 = vrot.slane %v1512, %v1520
    %v1522 = vlaneseq
    %v1523 = vshrl.u32 %v1522, 7
    %v1524 = vsub.s32 2, %v1523
    %v1525 = vrot.slane %v1512, %v1524
    %v1526 = vlaneseq
    %v1527 = vshrl.u32 %v1526, 7
    %v1528 = vsub.s32 3, %v1527
    %v1529 = vrot.slane %v1512, %v1528
    %v1534 = vmul.f32 %v1502, %v1517
    %v1535 = vmul.f32 %v1503, %v1521
    %v1536 = vmul.f32 %v1504, %v1525
    %v1537 = vmul.f32 %v1510, %v1529
    %s1538 = scalar_lea.vmem %s1, 56
    %v1539 = vld [vmem:[%s1538] sm:$0xff]
    %v1541 = vsel %vm155, %v1539, 0
    %v1544 = vsel %vm159, %v1534, 0
    %v1547 = vsel %vm159, %v1535, 0
    %v1550 = vsel %vm159, %v1536, 0
    %v1553 = vsel %vm159, %v1537, 0
    %1555 = vmatprep.subr.mxu0 %v1547
    %1556 = vmatpush1.msra.mxu0 %v1544
    %1557 = vmatprep.subr.mxu0 0.0
    %1558 = vmatpush1.msra.mxu0 0.0
    %1559 = vmatprep.subr.mxu0 0.0
    %1560 = vmatpush1.msra.mxu0 0.0
    %1561 = vmatprep.subr.mxu0 0.0
    %1562 = vmatpush1.msra.mxu0 0.0
    %1563 = vmatprep.subr.mxu0 0.0
    %1564 = vmatpush1.msra.mxu0 0.0
    %1565 = vmatprep.subr.mxu0 0.0
    %1566 = vmatpush1.msra.mxu0 0.0
    %1567 = vmatprep.subr.mxu0 0.0
    %1568 = vmatpush1.msra.mxu0 0.0
    %1569 = vmatprep.subr.mxu0 0.0
    %1570 = vmatpush1.msra.mxu0 0.0
    %1571 = vmatprep.subr.mxu0 0.0
    %1572 = vmatpush1.msra.mxu0 0.0
    %1573 = vmatprep.subr.mxu0 0.0
    %1574 = vmatpush1.msra.mxu0 0.0
    %1575 = vmatprep.subr.mxu0 0.0
    %1576 = vmatpush1.msra.mxu0 0.0
    %1577 = vmatprep.subr.mxu0 0.0
    %1578 = vmatpush1.msra.mxu0 0.0
    %1579 = vmatprep.subr.mxu0 0.0
    %1580 = vmatpush1.msra.mxu0 0.0
    %1581 = vmatprep.subr.mxu0 0.0
    %1582 = vmatpush1.msra.mxu0 0.0
    %1583 = vmatprep.subr.mxu0 0.0
    %1584 = vmatpush1.msra.mxu0 0.0
    %1585 = vmatprep.subr.mxu0 0.0
    %1586 = vmatpush1.msra.mxu0 0.0
    %1587 = vmatprep.subr.mxu0 0.0
    %1588 = vmatpush1.msra.mxu0 0.0
    %1589 = vmatprep.subr.mxu0 0.0
    %1590 = vmatpush1.msra.mxu0 0.0
    %1591 = vmatprep.subr.mxu0 0.0
    %1592 = vmatpush1.msra.mxu0 0.0
    %1593 = vmatprep.subr.mxu0 0.0
    %1594 = vmatpush1.msra.mxu0 0.0
    %1595 = vmatprep.subr.mxu0 0.0
    %1596 = vmatpush1.msra.mxu0 0.0
    %1597 = vmatprep.subr.mxu0 0.0
    %1598 = vmatpush1.msra.mxu0 0.0
    %1599 = vmatprep.subr.mxu0 0.0
    %1600 = vmatpush1.msra.mxu0 0.0
    %1601 = vmatprep.subr.mxu0 0.0
    %1602 = vmatpush1.msra.mxu0 0.0
    %1603 = vmatprep.subr.mxu0 0.0
    %1604 = vmatpush1.msra.mxu0 0.0
    %1605 = vmatprep.subr.mxu0 0.0
    %1606 = vmatpush1.msra.mxu0 0.0
    %1607 = vmatprep.subr.mxu0 0.0
    %1608 = vmatpush1.msra.mxu0 0.0
    %1609 = vmatprep.subr.mxu0 0.0
    %1610 = vmatpush1.msra.mxu0 0.0
    %1611 = vmatprep.subr.mxu0 0.0
    %1612 = vmatpush1.msra.mxu0 0.0
    %1613 = vmatprep.subr.mxu0 0.0
    %1614 = vmatpush1.msra.mxu0 0.0
    %1615 = vmatprep.subr.mxu0 0.0
    %1616 = vmatpush1.msra.mxu0 0.0
    %1617 = vmatprep.subr.mxu0 0.0
    %1618 = vmatpush1.msra.mxu0 0.0
    %1619 = vmatprep.mubr.f32.mxu0 0.0
    %1620 = vmatmul.mubr.f32.gmra.mrb[0].mxu0 %v1541
    %v1621 = vpop.f32.mrb[0].mxu0
    %v1622 = vadd.f32 0.0, %v1621
    %v1623 = vpop.f32.mrb[0].mxu0
    %v1624 = vadd.f32 0.0, %v1623
    %1625 = vdwg.mxu0
    %1626 = vmatprep.subr.mxu0 %v1553
    %1627 = vmatpush1.msra.mxu0 %v1550
    %1628 = vmatprep.subr.mxu0 0.0
    %1629 = vmatpush1.msra.mxu0 0.0
    %1630 = vmatprep.subr.mxu0 0.0
    %1631 = vmatpush1.msra.mxu0 0.0
    %1632 = vmatprep.subr.mxu0 0.0
    %1633 = vmatpush1.msra.mxu0 0.0
    %1634 = vmatprep.subr.mxu0 0.0
    %1635 = vmatpush1.msra.mxu0 0.0
    %1636 = vmatprep.subr.mxu0 0.0
    %1637 = vmatpush1.msra.mxu0 0.0
    %1638 = vmatprep.subr.mxu0 0.0
    %1639 = vmatpush1.msra.mxu0 0.0
    %1640 = vmatprep.subr.mxu0 0.0
    %1641 = vmatpush1.msra.mxu0 0.0
    %1642 = vmatprep.subr.mxu0 0.0
    %1643 = vmatpush1.msra.mxu0 0.0
    %1644 = vmatprep.subr.mxu0 0.0
    %1645 = vmatpush1.msra.mxu0 0.0
    %1646 = vmatprep.subr.mxu0 0.0
    %1647 = vmatpush1.msra.mxu0 0.0
    %1648 = vmatprep.subr.mxu0 0.0
    %1649 = vmatpush1.msra.mxu0 0.0
    %1650 = vmatprep.subr.mxu0 0.0
    %1651 = vmatpush1.msra.mxu0 0.0
    %1652 = vmatprep.subr.mxu0 0.0
    %1653 = vmatpush1.msra.mxu0 0.0
    %1654 = vmatprep.subr.mxu0 0.0
    %1655 = vmatpush1.msra.mxu0 0.0
    %1656 = vmatprep.subr.mxu0 0.0
    %1657 = vmatpush1.msra.mxu0 0.0
    %1658 = vmatprep.subr.mxu0 0.0
    %1659 = vmatpush1.msra.mxu0 0.0
    %1660 = vmatprep.subr.mxu0 0.0
    %1661 = vmatpush1.msra.mxu0 0.0
    %1662 = vmatprep.subr.mxu0 0.0
    %1663 = vmatpush1.msra.mxu0 0.0
    %1664 = vmatprep.subr.mxu0 0.0
    %1665 = vmatpush1.msra.mxu0 0.0
    %1666 = vmatprep.subr.mxu0 0.0
    %1667 = vmatpush1.msra.mxu0 0.0
    %1668 = vmatprep.subr.mxu0 0.0
    %1669 = vmatpush1.msra.mxu0 0.0
    %1670 = vmatprep.subr.mxu0 0.0
    %1671 = vmatpush1.msra.mxu0 0.0
    %1672 = vmatprep.subr.mxu0 0.0
    %1673 = vmatpush1.msra.mxu0 0.0
    %1674 = vmatprep.subr.mxu0 0.0
    %1675 = vmatpush1.msra.mxu0 0.0
    %1676 = vmatprep.subr.mxu0 0.0
    %1677 = vmatpush1.msra.mxu0 0.0
    %1678 = vmatprep.subr.mxu0 0.0
    %1679 = vmatpush1.msra.mxu0 0.0
    %1680 = vmatprep.subr.mxu0 0.0
    %1681 = vmatpush1.msra.mxu0 0.0
    %1682 = vmatprep.subr.mxu0 0.0
    %1683 = vmatpush1.msra.mxu0 0.0
    %1684 = vmatprep.subr.mxu0 0.0
    %1685 = vmatpush1.msra.mxu0 0.0
    %1686 = vmatprep.subr.mxu0 0.0
    %1687 = vmatpush1.msra.mxu0 0.0
    %1688 = vmatprep.subr.mxu0 0.0
    %1689 = vmatpush1.msra.mxu0 0.0
    %1690 = vmatprep.mubr.f32.mxu0 0.0
    %1691 = vmatmul.mubr.f32.gmra.mrb[0].mxu0 %v1541
    %v1692 = vpop.f32.mrb[0].mxu0
    %v1693 = vadd.f32 0.0, %v1692
    %v1694 = vpop.f32.mrb[0].mxu0
    %v1695 = vadd.f32 0.0, %v1694
    %1696 = vdwg.mxu0
    %v1697 = vadd.f32 %v1489, %v1622
    %v1698 = vadd.f32 %v1490, %v1624
    %v1699 = vadd.f32 %v1491, %v1693
    %v1700 = vadd.f32 %v1492, %v1695
    %1701 = vrot.lane.b32.xlu0 %v54, 111
    %v1702 = vpop.permute.xlu0 %1701
    %1703 = vrot.lane.b32.xlu0 %v58, 111
    %v1704 = vpop.permute.xlu0 %1703
    %1705 = vrot.lane.b32.xlu0 %v56, 111
    %v1706 = vpop.permute.xlu0 %1705
    %1707 = vrot.lane.b32.xlu0 %v61, 111
    %v1708 = vpop.permute.xlu0 %1707
    %vm1709 = vcmask 908288
    %v1710 = vsel %vm1709, %v1702, %v1704
    %v1711 = vsel %vm1709, %v1704, %v1706
    %v1712 = vsel %vm1709, %v1706, %v1708
    %v1718 = vsel %vm1709, %v1708, %v1702
    %s1719 = scalar_lea.vmem %s11, 32
    %v1720 = vld [vmem:[%s1719] ss:$8 sm:$0xf]
    %v1722 = vlaneseq
    %v1723 = vshrl.u32 %v1722, 7
    %v1724 = vsub.s32 0, %v1723
    %v1725 = vrot.slane %v1720, %v1724
    %v1726 = vlaneseq
    %v1727 = vshrl.u32 %v1726, 7
    %v1728 = vsub.s32 1, %v1727
    %v1729 = vrot.slane %v1720, %v1728
    %v1730 = vlaneseq
    %v1731 = vshrl.u32 %v1730, 7
    %v1732 = vsub.s32 2, %v1731
    %v1733 = vrot.slane %v1720, %v1732
    %v1734 = vlaneseq
    %v1735 = vshrl.u32 %v1734, 7
    %v1736 = vsub.s32 3, %v1735
    %v1737 = vrot.slane %v1720, %v1736
    %v1742 = vmul.f32 %v1710, %v1725
    %v1743 = vmul.f32 %v1711, %v1729
    %v1744 = vmul.f32 %v1712, %v1733
    %v1745 = vmul.f32 %v1718, %v1737
    %s1746 = scalar_lea.vmem %s1, 64
    %v1747 = vld [vmem:[%s1746] sm:$0xff]
    %v1749 = vsel %vm155, %v1747, 0
    %v1752 = vsel %vm159, %v1742, 0
    %v1755 = vsel %vm159, %v1743, 0
    %v1758 = vsel %vm159, %v1744, 0
    %v1761 = vsel %vm159, %v1745, 0
    %1763 = vmatprep.subr.mxu0 %v1755
    %1764 = vmatpush1.msra.mxu0 %v1752
    %1765 = vmatprep.subr.mxu0 0.0
    %1766 = vmatpush1.msra.mxu0 0.0
    %1767 = vmatprep.subr.mxu0 0.0
    %1768 = vmatpush1.msra.mxu0 0.0
    %1769 = vmatprep.subr.mxu0 0.0
    %1770 = vmatpush1.msra.mxu0 0.0
    %1771 = vmatprep.subr.mxu0 0.0
    %1772 = vmatpush1.msra.mxu0 0.0
    %1773 = vmatprep.subr.mxu0 0.0
    %1774 = vmatpush1.msra.mxu0 0.0
    %1775 = vmatprep.subr.mxu0 0.0
    %1776 = vmatpush1.msra.mxu0 0.0
    %1777 = vmatprep.subr.mxu0 0.0
    %1778 = vmatpush1.msra.mxu0 0.0
    %1779 = vmatprep.subr.mxu0 0.0
    %1780 = vmatpush1.msra.mxu0 0.0
    %1781 = vmatprep.subr.mxu0 0.0
    %1782 = vmatpush1.msra.mxu0 0.0
    %1783 = vmatprep.subr.mxu0 0.0
    %1784 = vmatpush1.msra.mxu0 0.0
    %1785 = vmatprep.subr.mxu0 0.0
    %1786 = vmatpush1.msra.mxu0 0.0
    %1787 = vmatprep.subr.mxu0 0.0
    %1788 = vmatpush1.msra.mxu0 0.0
    %1789 = vmatprep.subr.mxu0 0.0
    %1790 = vmatpush1.msra.mxu0 0.0
    %1791 = vmatprep.subr.mxu0 0.0
    %1792 = vmatpush1.msra.mxu0 0.0
    %1793 = vmatprep.subr.mxu0 0.0
    %1794 = vmatpush1.msra.mxu0 0.0
    %1795 = vmatprep.subr.mxu0 0.0
    %1796 = vmatpush1.msra.mxu0 0.0
    %1797 = vmatprep.subr.mxu0 0.0
    %1798 = vmatpush1.msra.mxu0 0.0
    %1799 = vmatprep.subr.mxu0 0.0
    %1800 = vmatpush1.msra.mxu0 0.0
    %1801 = vmatprep.subr.mxu0 0.0
    %1802 = vmatpush1.msra.mxu0 0.0
    %1803 = vmatprep.subr.mxu0 0.0
    %1804 = vmatpush1.msra.mxu0 0.0
    %1805 = vmatprep.subr.mxu0 0.0
    %1806 = vmatpush1.msra.mxu0 0.0
    %1807 = vmatprep.subr.mxu0 0.0
    %1808 = vmatpush1.msra.mxu0 0.0
    %1809 = vmatprep.subr.mxu0 0.0
    %1810 = vmatpush1.msra.mxu0 0.0
    %1811 = vmatprep.subr.mxu0 0.0
    %1812 = vmatpush1.msra.mxu0 0.0
    %1813 = vmatprep.subr.mxu0 0.0
    %1814 = vmatpush1.msra.mxu0 0.0
    %1815 = vmatprep.subr.mxu0 0.0
    %1816 = vmatpush1.msra.mxu0 0.0
    %1817 = vmatprep.subr.mxu0 0.0
    %1818 = vmatpush1.msra.mxu0 0.0
    %1819 = vmatprep.subr.mxu0 0.0
    %1820 = vmatpush1.msra.mxu0 0.0
    %1821 = vmatprep.subr.mxu0 0.0
    %1822 = vmatpush1.msra.mxu0 0.0
    %1823 = vmatprep.subr.mxu0 0.0
    %1824 = vmatpush1.msra.mxu0 0.0
    %1825 = vmatprep.subr.mxu0 0.0
    %1826 = vmatpush1.msra.mxu0 0.0
    %1827 = vmatprep.mubr.f32.mxu0 0.0
    %1828 = vmatmul.mubr.f32.gmra.mrb[0].mxu0 %v1749
    %v1829 = vpop.f32.mrb[0].mxu0
    %v1830 = vadd.f32 0.0, %v1829
    %v1831 = vpop.f32.mrb[0].mxu0
    %v1832 = vadd.f32 0.0, %v1831
    %1833 = vdwg.mxu0
    %1834 = vmatprep.subr.mxu0 %v1761
    %1835 = vmatpush1.msra.mxu0 %v1758
    %1836 = vmatprep.subr.mxu0 0.0
    %1837 = vmatpush1.msra.mxu0 0.0
    %1838 = vmatprep.subr.mxu0 0.0
    %1839 = vmatpush1.msra.mxu0 0.0
    %1840 = vmatprep.subr.mxu0 0.0
    %1841 = vmatpush1.msra.mxu0 0.0
    %1842 = vmatprep.subr.mxu0 0.0
    %1843 = vmatpush1.msra.mxu0 0.0
    %1844 = vmatprep.subr.mxu0 0.0
    %1845 = vmatpush1.msra.mxu0 0.0
    %1846 = vmatprep.subr.mxu0 0.0
    %1847 = vmatpush1.msra.mxu0 0.0
    %1848 = vmatprep.subr.mxu0 0.0
    %1849 = vmatpush1.msra.mxu0 0.0
    %1850 = vmatprep.subr.mxu0 0.0
    %1851 = vmatpush1.msra.mxu0 0.0
    %1852 = vmatprep.subr.mxu0 0.0
    %1853 = vmatpush1.msra.mxu0 0.0
    %1854 = vmatprep.subr.mxu0 0.0
    %1855 = vmatpush1.msra.mxu0 0.0
    %1856 = vmatprep.subr.mxu0 0.0
    %1857 = vmatpush1.msra.mxu0 0.0
    %1858 = vmatprep.subr.mxu0 0.0
    %1859 = vmatpush1.msra.mxu0 0.0
    %1860 = vmatprep.subr.mxu0 0.0
    %1861 = vmatpush1.msra.mxu0 0.0
    %1862 = vmatprep.subr.mxu0 0.0
    %1863 = vmatpush1.msra.mxu0 0.0
    %1864 = vmatprep.subr.mxu0 0.0
    %1865 = vmatpush1.msra.mxu0 0.0
    %1866 = vmatprep.subr.mxu0 0.0
    %1867 = vmatpush1.msra.mxu0 0.0
    %1868 = vmatprep.subr.mxu0 0.0
    %1869 = vmatpush1.msra.mxu0 0.0
    %1870 = vmatprep.subr.mxu0 0.0
    %1871 = vmatpush1.msra.mxu0 0.0
    %1872 = vmatprep.subr.mxu0 0.0
    %1873 = vmatpush1.msra.mxu0 0.0
    %1874 = vmatprep.subr.mxu0 0.0
    %1875 = vmatpush1.msra.mxu0 0.0
    %1876 = vmatprep.subr.mxu0 0.0
    %1877 = vmatpush1.msra.mxu0 0.0
    %1878 = vmatprep.subr.mxu0 0.0
    %1879 = vmatpush1.msra.mxu0 0.0
    %1880 = vmatprep.subr.mxu0 0.0
    %1881 = vmatpush1.msra.mxu0 0.0
    %1882 = vmatprep.subr.mxu0 0.0
    %1883 = vmatpush1.msra.mxu0 0.0
    %1884 = vmatprep.subr.mxu0 0.0
    %1885 = vmatpush1.msra.mxu0 0.0
    %1886 = vmatprep.subr.mxu0 0.0
    %1887 = vmatpush1.msra.mxu0 0.0
    %1888 = vmatprep.subr.mxu0 0.0
    %1889 = vmatpush1.msra.mxu0 0.0
    %1890 = vmatprep.subr.mxu0 0.0
    %1891 = vmatpush1.msra.mxu0 0.0
    %1892 = vmatprep.subr.mxu0 0.0
    %1893 = vmatpush1.msra.mxu0 0.0
    %1894 = vmatprep.subr.mxu0 0.0
    %1895 = vmatpush1.msra.mxu0 0.0
    %1896 = vmatprep.subr.mxu0 0.0
    %1897 = vmatpush1.msra.mxu0 0.0
    %1898 = vmatprep.mubr.f32.mxu0 0.0
    %1899 = vmatmul.mubr.f32.gmra.mrb[0].mxu0 %v1749
    %v1900 = vpop.f32.mrb[0].mxu0
    %v1901 = vadd.f32 0.0, %v1900
    %v1902 = vpop.f32.mrb[0].mxu0
    %v1903 = vadd.f32 0.0, %v1902
    %1904 = vdwg.mxu0
    %v1905 = vadd.f32 %v1697, %v1830
    %v1906 = vadd.f32 %v1698, %v1832
    %v1907 = vadd.f32 %v1699, %v1901
    %v1908 = vadd.f32 %v1700, %v1903
    %v1909 = vadd.f32 %v1905, %v1906
    %v1910 = vadd.f32 %v1909, %v1907
    %v1911 = vadd.f32 %v1910, %v1908
    %1912 = vadd.xlane.f32.xlu0 %v1911
    %v1913 = vpop.xlane.xlu0 %1912
    %v1914 = vrcp.pop 512.0
    %v1915 = vmul.f32 %v1913, %v1914
    %v1916 = vsub.f32 %v1905, %v1915
    %v1917 = vsub.f32 %v1906, %v1915
    %v1918 = vsub.f32 %v1907, %v1915
    %v1919 = vsub.f32 %v1908, %v1915
    %v1920 = vmul.f32 %v1916, %v1916
    %v1921 = vmul.f32 %v1917, %v1917
    %v1922 = vmul.f32 %v1918, %v1918
    %v1923 = vmul.f32 %v1919, %v1919
    %v1924 = vadd.f32 %v1920, %v1921
    %v1925 = vadd.f32 %v1924, %v1922
    %v1926 = vadd.f32 %v1925, %v1923
    %1927 = vadd.xlane.f32.xlu0 %v1926
    %v1928 = vpop.xlane.xlu0 %1927
    %v1929 = vmul.f32 %v1928, %v1914
    %v1930 = vadd.f32 %v1929, 1e-05
    %v1931 = vrsqrt.pop %v1930
    %v1932 = vmul.f32 %v1916, %v1931
    %v1933 = vmul.f32 %v1917, %v1931
    %v1934 = vmul.f32 %v1918, %v1931
    %v1935 = vmul.f32 %v1919, %v1931
    %v1936 = vld [vmem:[%s7] sm:$0xff]
    %1938 = vset.pattern.permute.xlu0 0
    %1939 = vperm.xlu0 %1938, %v1936
    %v1940 = vpop.permute.xlu0 %1939
    %v1942 = vmul.f32 %v1932, %v1940
    %v1943 = vmul.f32 %v1933, %v1940
    %v1944 = vmul.f32 %v1934, %v1940
    %v1945 = vmul.f32 %v1935, %v1940
    %v1946 = vld [vmem:[%s8] sm:$0xff]
    %1948 = vset.pattern.permute.xlu0 0
    %1949 = vperm.xlu0 %1948, %v1946
    %v1950 = vpop.permute.xlu0 %1949
    %v1952 = vadd.f32 %v1942, %v1950
    %v1953 = vadd.f32 %v1943, %v1950
    %v1954 = vadd.f32 %v1944, %v1950
    %v1955 = vadd.f32 %v1945, %v1950
    %v1956 = vmax.f32 %v1952, 0.0
    %v1957 = vmax.f32 %v1953, 0.0
    %v1958 = vmax.f32 %v1954, 0.0
    %v1959 = vmax.f32 %v1955, 0.0
    %1961 = vrot.lane.b32.xlu0 %v1959, 17
    %v1962 = vpop.permute.xlu0 %1961
    %1967 = vrot.lane.b32.xlu0 %v1956, 17
    %v1968 = vpop.permute.xlu0 %1967
    %1969 = vrot.lane.b32.xlu0 %v1957, 17
    %v1970 = vpop.permute.xlu0 %1969
    %1971 = vrot.lane.b32.xlu0 %v1958, 17
    %v1972 = vpop.permute.xlu0 %1971
    %v1973 = vsel %vm72, %v1968, %v1970
    %v1974 = vsel %vm72, %v1970, %v1972
    %v1975 = vsel %vm72, %v1972, %v1962
    %v1980 = vsel %vm72, %v1962, %v1968
    %v1981 = vld [vmem:[%s12] ss:$8 sm:$0xf]
    %v1983 = vlaneseq
    %v1984 = vshrl.u32 %v1983, 7
    %v1985 = vsub.s32 0, %v1984
    %v1986 = vrot.slane %v1981, %v1985
    %v1987 = vlaneseq
    %v1988 = vshrl.u32 %v1987, 7
    %v1989 = vsub.s32 1, %v1988
    %v1990 = vrot.slane %v1981, %v1989
    %v1991 = vlaneseq
    %v1992 = vshrl.u32 %v1991, 7
    %v1993 = vsub.s32 2, %v1992
    %v1994 = vrot.slane %v1981, %v1993
    %v1995 = vlaneseq
    %v1996 = vshrl.u32 %v1995, 7
    %v1997 = vsub.s32 3, %v1996
    %v1998 = vrot.slane %v1981, %v1997
    %v2003 = vmul.f32 %v1980, %v1986
    %v2004 = vmul.f32 %v1973, %v1990
    %v2005 = vmul.f32 %v1974, %v1994
    %v2006 = vmul.f32 %v1975, %v1998
    %v2007 = vld [vmem:[%s2] sm:$0xff]
    %2008 = vrot.lane.b32.xlu0 %v1959, 16
    %v2009 = vpop.permute.xlu0 %2008
    %2011 = vrot.lane.b32.xlu0 %v1956, 16
    %v2012 = vpop.permute.xlu0 %2011
    %2013 = vrot.lane.b32.xlu0 %v1957, 16
    %v2014 = vpop.permute.xlu0 %2013
    %2015 = vrot.lane.b32.xlu0 %v1958, 16
    %v2016 = vpop.permute.xlu0 %2015
    %v2017 = vsel %vm117, %v2012, %v2014
    %v2018 = vsel %vm117, %v2014, %v2016
    %v2019 = vsel %vm117, %v2016, %v2009
    %v2024 = vsel %vm117, %v2009, %v2012
    %s2025 = scalar_lea.vmem %s12, 1
    %v2026 = vld [vmem:[%s2025] ss:$8 sm:$0xf]
    %v2028 = vlaneseq
    %v2029 = vshrl.u32 %v2028, 7
    %v2030 = vsub.s32 0, %v2029
    %v2031 = vrot.slane %v2026, %v2030
    %v2032 = vlaneseq
    %v2033 = vshrl.u32 %v2032, 7
    %v2034 = vsub.s32 1, %v2033
    %v2035 = vrot.slane %v2026, %v2034
    %v2036 = vlaneseq
    %v2037 = vshrl.u32 %v2036, 7
    %v2038 = vsub.s32 2, %v2037
    %v2039 = vrot.slane %v2026, %v2038
    %v2040 = vlaneseq
    %v2041 = vshrl.u32 %v2040, 7
    %v2042 = vsub.s32 3, %v2041
    %v2043 = vrot.slane %v2026, %v2042
    %v2048 = vmul.f32 %v2024, %v2031
    %v2049 = vmul.f32 %v2017, %v2035
    %v2050 = vmul.f32 %v2018, %v2039
    %v2051 = vmul.f32 %v2019, %v2043
    %s2052 = scalar_lea.vmem %s2, 8
    %v2053 = vld [vmem:[%s2052] sm:$0xff]
    %vm2054 = vcmask 64512
    %v2056 = vsel %vm2054, %v2053, 0
    %2058 = vmatprep.subr.mxu0 %v2049
    %2059 = vmatpush1.msra.mxu0 %v2048
    %2060 = vmatprep.subr.mxu0 0.0
    %2061 = vmatpush1.msra.mxu0 0.0
    %2062 = vmatprep.subr.mxu0 0.0
    %2063 = vmatpush1.msra.mxu0 0.0
    %2064 = vmatprep.subr.mxu0 0.0
    %2065 = vmatpush1.msra.mxu0 0.0
    %2066 = vmatprep.subr.mxu0 0.0
    %2067 = vmatpush1.msra.mxu0 0.0
    %2068 = vmatprep.subr.mxu0 0.0
    %2069 = vmatpush1.msra.mxu0 0.0
    %2070 = vmatprep.subr.mxu0 0.0
    %2071 = vmatpush1.msra.mxu0 0.0
    %2072 = vmatprep.subr.mxu0 0.0
    %2073 = vmatpush1.msra.mxu0 0.0
    %2074 = vmatprep.subr.mxu0 0.0
    %2075 = vmatpush1.msra.mxu0 0.0
    %2076 = vmatprep.subr.mxu0 0.0
    %2077 = vmatpush1.msra.mxu0 0.0
    %2078 = vmatprep.subr.mxu0 0.0
    %2079 = vmatpush1.msra.mxu0 0.0
    %2080 = vmatprep.subr.mxu0 0.0
    %2081 = vmatpush1.msra.mxu0 0.0
    %2082 = vmatprep.subr.mxu0 0.0
    %2083 = vmatpush1.msra.mxu0 0.0
    %2084 = vmatprep.subr.mxu0 0.0
    %2085 = vmatpush1.msra.mxu0 0.0
    %2086 = vmatprep.subr.mxu0 0.0
    %2087 = vmatpush1.msra.mxu0 0.0
    %2088 = vmatprep.subr.mxu0 0.0
    %2089 = vmatpush1.msra.mxu0 0.0
    %2090 = vmatprep.subr.mxu0 0.0
    %2091 = vmatpush1.msra.mxu0 0.0
    %2092 = vmatprep.subr.mxu0 0.0
    %2093 = vmatpush1.msra.mxu0 0.0
    %2094 = vmatprep.subr.mxu0 0.0
    %2095 = vmatpush1.msra.mxu0 0.0
    %2096 = vmatprep.subr.mxu0 0.0
    %2097 = vmatpush1.msra.mxu0 0.0
    %2098 = vmatprep.subr.mxu0 0.0
    %2099 = vmatpush1.msra.mxu0 0.0
    %2100 = vmatprep.subr.mxu0 0.0
    %2101 = vmatpush1.msra.mxu0 0.0
    %2102 = vmatprep.subr.mxu0 0.0
    %2103 = vmatpush1.msra.mxu0 0.0
    %2104 = vmatprep.subr.mxu0 0.0
    %2105 = vmatpush1.msra.mxu0 0.0
    %2106 = vmatprep.subr.mxu0 0.0
    %2107 = vmatpush1.msra.mxu0 0.0
    %2108 = vmatprep.subr.mxu0 0.0
    %2109 = vmatpush1.msra.mxu0 0.0
    %2110 = vmatprep.subr.mxu0 0.0
    %2111 = vmatpush1.msra.mxu0 0.0
    %2112 = vmatprep.subr.mxu0 0.0
    %2113 = vmatpush1.msra.mxu0 0.0
    %2114 = vmatprep.subr.mxu0 0.0
    %2115 = vmatpush1.msra.mxu0 0.0
    %2116 = vmatprep.subr.mxu0 0.0
    %2117 = vmatpush1.msra.mxu0 0.0
    %2118 = vmatprep.subr.mxu0 0.0
    %2119 = vmatpush1.msra.mxu0 0.0
    %2120 = vmatprep.subr.mxu0 0.0
    %2121 = vmatpush1.msra.mxu0 0.0
    %2122 = vmatprep.mubr.f32.mxu0 0.0
    %2123 = vmatmul.mubr.f32.gmra.mrb[0].mxu0 %v2056
    %v2124 = vpop.f32.mrb[0].mxu0
    %v2125 = vadd.f32 0.0, %v2124
    %v2126 = vpop.f32.mrb[0].mxu0
    %v2127 = vadd.f32 0.0, %v2126
    %2128 = vdwg.mxu0
    %2129 = vmatprep.subr.mxu0 %v2051
    %2130 = vmatpush1.msra.mxu0 %v2050
    %2131 = vmatprep.subr.mxu0 0.0
    %2132 = vmatpush1.msra.mxu0 0.0
    %2133 = vmatprep.subr.mxu0 0.0
    %2134 = vmatpush1.msra.mxu0 0.0
    %2135 = vmatprep.subr.mxu0 0.0
    %2136 = vmatpush1.msra.mxu0 0.0
    %2137 = vmatprep.subr.mxu0 0.0
    %2138 = vmatpush1.msra.mxu0 0.0
    %2139 = vmatprep.subr.mxu0 0.0
    %2140 = vmatpush1.msra.mxu0 0.0
    %2141 = vmatprep.subr.mxu0 0.0
    %2142 = vmatpush1.msra.mxu0 0.0
    %2143 = vmatprep.subr.mxu0 0.0
    %2144 = vmatpush1.msra.mxu0 0.0
    %2145 = vmatprep.subr.mxu0 0.0
    %2146 = vmatpush1.msra.mxu0 0.0
    %2147 = vmatprep.subr.mxu0 0.0
    %2148 = vmatpush1.msra.mxu0 0.0
    %2149 = vmatprep.subr.mxu0 0.0
    %2150 = vmatpush1.msra.mxu0 0.0
    %2151 = vmatprep.subr.mxu0 0.0
    %2152 = vmatpush1.msra.mxu0 0.0
    %2153 = vmatprep.subr.mxu0 0.0
    %2154 = vmatpush1.msra.mxu0 0.0
    %2155 = vmatprep.subr.mxu0 0.0
    %2156 = vmatpush1.msra.mxu0 0.0
    %2157 = vmatprep.subr.mxu0 0.0
    %2158 = vmatpush1.msra.mxu0 0.0
    %2159 = vmatprep.subr.mxu0 0.0
    %2160 = vmatpush1.msra.mxu0 0.0
    %2161 = vmatprep.subr.mxu0 0.0
    %2162 = vmatpush1.msra.mxu0 0.0
    %2163 = vmatprep.subr.mxu0 0.0
    %2164 = vmatpush1.msra.mxu0 0.0
    %2165 = vmatprep.subr.mxu0 0.0
    %2166 = vmatpush1.msra.mxu0 0.0
    %2167 = vmatprep.subr.mxu0 0.0
    %2168 = vmatpush1.msra.mxu0 0.0
    %2169 = vmatprep.subr.mxu0 0.0
    %2170 = vmatpush1.msra.mxu0 0.0
    %2171 = vmatprep.subr.mxu0 0.0
    %2172 = vmatpush1.msra.mxu0 0.0
    %2173 = vmatprep.subr.mxu0 0.0
    %2174 = vmatpush1.msra.mxu0 0.0
    %2175 = vmatprep.subr.mxu0 0.0
    %2176 = vmatpush1.msra.mxu0 0.0
    %2177 = vmatprep.subr.mxu0 0.0
    %2178 = vmatpush1.msra.mxu0 0.0
    %2179 = vmatprep.subr.mxu0 0.0
    %2180 = vmatpush1.msra.mxu0 0.0
    %2181 = vmatprep.subr.mxu0 0.0
    %2182 = vmatpush1.msra.mxu0 0.0
    %2183 = vmatprep.subr.mxu0 0.0
    %2184 = vmatpush1.msra.mxu0 0.0
    %2185 = vmatprep.subr.mxu0 0.0
    %2186 = vmatpush1.msra.mxu0 0.0
    %2187 = vmatprep.subr.mxu0 0.0
    %2188 = vmatpush1.msra.mxu0 0.0
    %2189 = vmatprep.subr.mxu0 0.0
    %2190 = vmatpush1.msra.mxu0 0.0
    %2191 = vmatprep.subr.mxu0 0.0
    %2192 = vmatpush1.msra.mxu0 0.0
    %2193 = vmatprep.mubr.f32.mxu0 0.0
    %2194 = vmatmul.mubr.f32.gmra.mrb[0].mxu0 %v2056
    %v2195 = vpop.f32.mrb[0].mxu0
    %v2196 = vadd.f32 0.0, %v2195
    %v2197 = vpop.f32.mrb[0].mxu0
    %v2198 = vadd.f32 0.0, %v2197
    %2199 = vdwg.mxu0
    %v2201 = vsel %vm2054, %v2007, 0
    %2203 = vmatprep.subr.mxu0 %v2004
    %2204 = vmatpush1.msra.mxu0 %v2003
    %2205 = vmatprep.subr.mxu0 0.0
    %2206 = vmatpush1.msra.mxu0 0.0
    %2207 = vmatprep.subr.mxu0 0.0
    %2208 = vmatpush1.msra.mxu0 0.0
    %2209 = vmatprep.subr.mxu0 0.0
    %2210 = vmatpush1.msra.mxu0 0.0
    %2211 = vmatprep.subr.mxu0 0.0
    %2212 = vmatpush1.msra.mxu0 0.0
    %2213 = vmatprep.subr.mxu0 0.0
    %2214 = vmatpush1.msra.mxu0 0.0
    %2215 = vmatprep.subr.mxu0 0.0
    %2216 = vmatpush1.msra.mxu0 0.0
    %2217 = vmatprep.subr.mxu0 0.0
    %2218 = vmatpush1.msra.mxu0 0.0
    %2219 = vmatprep.subr.mxu0 0.0
    %2220 = vmatpush1.msra.mxu0 0.0
    %2221 = vmatprep.subr.mxu0 0.0
    %2222 = vmatpush1.msra.mxu0 0.0
    %2223 = vmatprep.subr.mxu0 0.0
    %2224 = vmatpush1.msra.mxu0 0.0
    %2225 = vmatprep.subr.mxu0 0.0
    %2226 = vmatpush1.msra.mxu0 0.0
    %2227 = vmatprep.subr.mxu0 0.0
    %2228 = vmatpush1.msra.mxu0 0.0
    %2229 = vmatprep.subr.mxu0 0.0
    %2230 = vmatpush1.msra.mxu0 0.0
    %2231 = vmatprep.subr.mxu0 0.0
    %2232 = vmatpush1.msra.mxu0 0.0
    %2233 = vmatprep.subr.mxu0 0.0
    %2234 = vmatpush1.msra.mxu0 0.0
    %2235 = vmatprep.subr.mxu0 0.0
    %2236 = vmatpush1.msra.mxu0 0.0
    %2237 = vmatprep.subr.mxu0 0.0
    %2238 = vmatpush1.msra.mxu0 0.0
    %2239 = vmatprep.subr.mxu0 0.0
    %2240 = vmatpush1.msra.mxu0 0.0
    %2241 = vmatprep.subr.mxu0 0.0
    %2242 = vmatpush1.msra.mxu0 0.0
    %2243 = vmatprep.subr.mxu0 0.0
    %2244 = vmatpush1.msra.mxu0 0.0
    %2245 = vmatprep.subr.mxu0 0.0
    %2246 = vmatpush1.msra.mxu0 0.0
    %2247 = vmatprep.subr.mxu0 0.0
    %2248 = vmatpush1.msra.mxu0 0.0
    %2249 = vmatprep.subr.mxu0 0.0
    %2250 = vmatpush1.msra.mxu0 0.0
    %2251 = vmatprep.subr.mxu0 0.0
    %2252 = vmatpush1.msra.mxu0 0.0
    %2253 = vmatprep.subr.mxu0 0.0
    %2254 = vmatpush1.msra.mxu0 0.0
    %2255 = vmatprep.subr.mxu0 0.0
    %2256 = vmatpush1.msra.mxu0 0.0
    %2257 = vmatprep.subr.mxu0 0.0
    %2258 = vmatpush1.msra.mxu0 0.0
    %2259 = vmatprep.subr.mxu0 0.0
    %2260 = vmatpush1.msra.mxu0 0.0
    %2261 = vmatprep.subr.mxu0 0.0
    %2262 = vmatpush1.msra.mxu0 0.0
    %2263 = vmatprep.subr.mxu0 0.0
    %2264 = vmatpush1.msra.mxu0 0.0
    %2265 = vmatprep.subr.mxu0 0.0
    %2266 = vmatpush1.msra.mxu0 0.0
    %2267 = vmatprep.mubr.f32.mxu0 0.0
    %2268 = vmatmul.mubr.f32.gmra.mrb[0].mxu0 %v2201
    %v2269 = vpop.f32.mrb[0].mxu0
    %v2270 = vadd.f32 %v2125, %v2269
    %v2271 = vpop.f32.mrb[0].mxu0
    %v2272 = vadd.f32 %v2127, %v2271
    %2273 = vdwg.mxu0
    %2274 = vmatprep.subr.mxu0 %v2006
    %2275 = vmatpush1.msra.mxu0 %v2005
    %2276 = vmatprep.subr.mxu0 0.0
    %2277 = vmatpush1.msra.mxu0 0.0
    %2278 = vmatprep.subr.mxu0 0.0
    %2279 = vmatpush1.msra.mxu0 0.0
    %2280 = vmatprep.subr.mxu0 0.0
    %2281 = vmatpush1.msra.mxu0 0.0
    %2282 = vmatprep.subr.mxu0 0.0
    %2283 = vmatpush1.msra.mxu0 0.0
    %2284 = vmatprep.subr.mxu0 0.0
    %2285 = vmatpush1.msra.mxu0 0.0
    %2286 = vmatprep.subr.mxu0 0.0
    %2287 = vmatpush1.msra.mxu0 0.0
    %2288 = vmatprep.subr.mxu0 0.0
    %2289 = vmatpush1.msra.mxu0 0.0
    %2290 = vmatprep.subr.mxu0 0.0
    %2291 = vmatpush1.msra.mxu0 0.0
    %2292 = vmatprep.subr.mxu0 0.0
    %2293 = vmatpush1.msra.mxu0 0.0
    %2294 = vmatprep.subr.mxu0 0.0
    %2295 = vmatpush1.msra.mxu0 0.0
    %2296 = vmatprep.subr.mxu0 0.0
    %2297 = vmatpush1.msra.mxu0 0.0
    %2298 = vmatprep.subr.mxu0 0.0
    %2299 = vmatpush1.msra.mxu0 0.0
    %2300 = vmatprep.subr.mxu0 0.0
    %2301 = vmatpush1.msra.mxu0 0.0
    %2302 = vmatprep.subr.mxu0 0.0
    %2303 = vmatpush1.msra.mxu0 0.0
    %2304 = vmatprep.subr.mxu0 0.0
    %2305 = vmatpush1.msra.mxu0 0.0
    %2306 = vmatprep.subr.mxu0 0.0
    %2307 = vmatpush1.msra.mxu0 0.0
    %2308 = vmatprep.subr.mxu0 0.0
    %2309 = vmatpush1.msra.mxu0 0.0
    %2310 = vmatprep.subr.mxu0 0.0
    %2311 = vmatpush1.msra.mxu0 0.0
    %2312 = vmatprep.subr.mxu0 0.0
    %2313 = vmatpush1.msra.mxu0 0.0
    %2314 = vmatprep.subr.mxu0 0.0
    %2315 = vmatpush1.msra.mxu0 0.0
    %2316 = vmatprep.subr.mxu0 0.0
    %2317 = vmatpush1.msra.mxu0 0.0
    %2318 = vmatprep.subr.mxu0 0.0
    %2319 = vmatpush1.msra.mxu0 0.0
    %2320 = vmatprep.subr.mxu0 0.0
    %2321 = vmatpush1.msra.mxu0 0.0
    %2322 = vmatprep.subr.mxu0 0.0
    %2323 = vmatpush1.msra.mxu0 0.0
    %2324 = vmatprep.subr.mxu0 0.0
    %2325 = vmatpush1.msra.mxu0 0.0
    %2326 = vmatprep.subr.mxu0 0.0
    %2327 = vmatpush1.msra.mxu0 0.0
    %2328 = vmatprep.subr.mxu0 0.0
    %2329 = vmatpush1.msra.mxu0 0.0
    %2330 = vmatprep.subr.mxu0 0.0
    %2331 = vmatpush1.msra.mxu0 0.0
    %2332 = vmatprep.subr.mxu0 0.0
    %2333 = vmatpush1.msra.mxu0 0.0
    %2334 = vmatprep.subr.mxu0 0.0
    %2335 = vmatpush1.msra.mxu0 0.0
    %2336 = vmatprep.subr.mxu0 0.0
    %2337 = vmatpush1.msra.mxu0 0.0
    %2338 = vmatprep.mubr.f32.mxu0 0.0
    %2339 = vmatmul.mubr.f32.gmra.mrb[0].mxu0 %v2201
    %v2340 = vpop.f32.mrb[0].mxu0
    %v2341 = vadd.f32 %v2196, %v2340
    %v2342 = vpop.f32.mrb[0].mxu0
    %v2343 = vadd.f32 %v2198, %v2342
    %2344 = vdwg.mxu0
    %2345 = vrot.lane.b32.xlu0 %v1959, 15
    %v2346 = vpop.permute.xlu0 %2345
    %2348 = vrot.lane.b32.xlu0 %v1956, 15
    %v2349 = vpop.permute.xlu0 %2348
    %2350 = vrot.lane.b32.xlu0 %v1957, 15
    %v2351 = vpop.permute.xlu0 %2350
    %2352 = vrot.lane.b32.xlu0 %v1958, 15
    %v2353 = vpop.permute.xlu0 %2352
    %v2354 = vsel %vm480, %v2349, %v2351
    %v2355 = vsel %vm480, %v2351, %v2353
    %v2356 = vsel %vm480, %v2353, %v2346
    %v2361 = vsel %vm480, %v2346, %v2349
    %s2362 = scalar_lea.vmem %s12, 2
    %v2363 = vld [vmem:[%s2362] ss:$8 sm:$0xf]
    %v2365 = vlaneseq
    %v2366 = vshrl.u32 %v2365, 7
    %v2367 = vsub.s32 0, %v2366
    %v2368 = vrot.slane %v2363, %v2367
    %v2369 = vlaneseq
    %v2370 = vshrl.u32 %v2369, 7
    %v2371 = vsub.s32 1, %v2370
    %v2372 = vrot.slane %v2363, %v2371
    %v2373 = vlaneseq
    %v2374 = vshrl.u32 %v2373, 7
    %v2375 = vsub.s32 2, %v2374
    %v2376 = vrot.slane %v2363, %v2375
    %v2377 = vlaneseq
    %v2378 = vshrl.u32 %v2377, 7
    %v2379 = vsub.s32 3, %v2378
    %v2380 = vrot.slane %v2363, %v2379
    %v2385 = vmul.f32 %v2361, %v2368
    %v2386 = vmul.f32 %v2354, %v2372
    %v2387 = vmul.f32 %v2355, %v2376
    %v2388 = vmul.f32 %v2356, %v2380
    %s2389 = scalar_lea.vmem %s2, 16
    %v2390 = vld [vmem:[%s2389] sm:$0xff]
    %v2392 = vsel %vm2054, %v2390, 0
    %2394 = vmatprep.subr.mxu0 %v2386
    %2395 = vmatpush1.msra.mxu0 %v2385
    %2396 = vmatprep.subr.mxu0 0.0
    %2397 = vmatpush1.msra.mxu0 0.0
    %2398 = vmatprep.subr.mxu0 0.0
    %2399 = vmatpush1.msra.mxu0 0.0
    %2400 = vmatprep.subr.mxu0 0.0
    %2401 = vmatpush1.msra.mxu0 0.0
    %2402 = vmatprep.subr.mxu0 0.0
    %2403 = vmatpush1.msra.mxu0 0.0
    %2404 = vmatprep.subr.mxu0 0.0
    %2405 = vmatpush1.msra.mxu0 0.0
    %2406 = vmatprep.subr.mxu0 0.0
    %2407 = vmatpush1.msra.mxu0 0.0
    %2408 = vmatprep.subr.mxu0 0.0
    %2409 = vmatpush1.msra.mxu0 0.0
    %2410 = vmatprep.subr.mxu0 0.0
    %2411 = vmatpush1.msra.mxu0 0.0
    %2412 = vmatprep.subr.mxu0 0.0
    %2413 = vmatpush1.msra.mxu0 0.0
    %2414 = vmatprep.subr.mxu0 0.0
    %2415 = vmatpush1.msra.mxu0 0.0
    %2416 = vmatprep.subr.mxu0 0.0
    %2417 = vmatpush1.msra.mxu0 0.0
    %2418 = vmatprep.subr.mxu0 0.0
    %2419 = vmatpush1.msra.mxu0 0.0
    %2420 = vmatprep.subr.mxu0 0.0
    %2421 = vmatpush1.msra.mxu0 0.0
    %2422 = vmatprep.subr.mxu0 0.0
    %2423 = vmatpush1.msra.mxu0 0.0
    %2424 = vmatprep.subr.mxu0 0.0
    %2425 = vmatpush1.msra.mxu0 0.0
    %2426 = vmatprep.subr.mxu0 0.0
    %2427 = vmatpush1.msra.mxu0 0.0
    %2428 = vmatprep.subr.mxu0 0.0
    %2429 = vmatpush1.msra.mxu0 0.0
    %2430 = vmatprep.subr.mxu0 0.0
    %2431 = vmatpush1.msra.mxu0 0.0
    %2432 = vmatprep.subr.mxu0 0.0
    %2433 = vmatpush1.msra.mxu0 0.0
    %2434 = vmatprep.subr.mxu0 0.0
    %2435 = vmatpush1.msra.mxu0 0.0
    %2436 = vmatprep.subr.mxu0 0.0
    %2437 = vmatpush1.msra.mxu0 0.0
    %2438 = vmatprep.subr.mxu0 0.0
    %2439 = vmatpush1.msra.mxu0 0.0
    %2440 = vmatprep.subr.mxu0 0.0
    %2441 = vmatpush1.msra.mxu0 0.0
    %2442 = vmatprep.subr.mxu0 0.0
    %2443 = vmatpush1.msra.mxu0 0.0
    %2444 = vmatprep.subr.mxu0 0.0
    %2445 = vmatpush1.msra.mxu0 0.0
    %2446 = vmatprep.subr.mxu0 0.0
    %2447 = vmatpush1.msra.mxu0 0.0
    %2448 = vmatprep.subr.mxu0 0.0
    %2449 = vmatpush1.msra.mxu0 0.0
    %2450 = vmatprep.subr.mxu0 0.0
    %2451 = vmatpush1.msra.mxu0 0.0
    %2452 = vmatprep.subr.mxu0 0.0
    %2453 = vmatpush1.msra.mxu0 0.0
    %2454 = vmatprep.subr.mxu0 0.0
    %2455 = vmatpush1.msra.mxu0 0.0
    %2456 = vmatprep.subr.mxu0 0.0
    %2457 = vmatpush1.msra.mxu0 0.0
    %2458 = vmatprep.mubr.f32.mxu0 0.0
    %2459 = vmatmul.mubr.f32.gmra.mrb[0].mxu0 %v2392
    %v2460 = vpop.f32.mrb[0].mxu0
    %v2461 = vadd.f32 0.0, %v2460
    %v2462 = vpop.f32.mrb[0].mxu0
    %v2463 = vadd.f32 0.0, %v2462
    %2464 = vdwg.mxu0
    %2465 = vmatprep.subr.mxu0 %v2388
    %2466 = vmatpush1.msra.mxu0 %v2387
    %2467 = vmatprep.subr.mxu0 0.0
    %2468 = vmatpush1.msra.mxu0 0.0
    %2469 = vmatprep.subr.mxu0 0.0
    %2470 = vmatpush1.msra.mxu0 0.0
    %2471 = vmatprep.subr.mxu0 0.0
    %2472 = vmatpush1.msra.mxu0 0.0
    %2473 = vmatprep.subr.mxu0 0.0
    %2474 = vmatpush1.msra.mxu0 0.0
    %2475 = vmatprep.subr.mxu0 0.0
    %2476 = vmatpush1.msra.mxu0 0.0
    %2477 = vmatprep.subr.mxu0 0.0
    %2478 = vmatpush1.msra.mxu0 0.0
    %2479 = vmatprep.subr.mxu0 0.0
    %2480 = vmatpush1.msra.mxu0 0.0
    %2481 = vmatprep.subr.mxu0 0.0
    %2482 = vmatpush1.msra.mxu0 0.0
    %2483 = vmatprep.subr.mxu0 0.0
    %2484 = vmatpush1.msra.mxu0 0.0
    %2485 = vmatprep.subr.mxu0 0.0
    %2486 = vmatpush1.msra.mxu0 0.0
    %2487 = vmatprep.subr.mxu0 0.0
    %2488 = vmatpush1.msra.mxu0 0.0
    %2489 = vmatprep.subr.mxu0 0.0
    %2490 = vmatpush1.msra.mxu0 0.0
    %2491 = vmatprep.subr.mxu0 0.0
    %2492 = vmatpush1.msra.mxu0 0.0
    %2493 = vmatprep.subr.mxu0 0.0
    %2494 = vmatpush1.msra.mxu0 0.0
    %2495 = vmatprep.subr.mxu0 0.0
    %2496 = vmatpush1.msra.mxu0 0.0
    %2497 = vmatprep.subr.mxu0 0.0
    %2498 = vmatpush1.msra.mxu0 0.0
    %2499 = vmatprep.subr.mxu0 0.0
    %2500 = vmatpush1.msra.mxu0 0.0
    %2501 = vmatprep.subr.mxu0 0.0
    %2502 = vmatpush1.msra.mxu0 0.0
    %2503 = vmatprep.subr.mxu0 0.0
    %2504 = vmatpush1.msra.mxu0 0.0
    %2505 = vmatprep.subr.mxu0 0.0
    %2506 = vmatpush1.msra.mxu0 0.0
    %2507 = vmatprep.subr.mxu0 0.0
    %2508 = vmatpush1.msra.mxu0 0.0
    %2509 = vmatprep.subr.mxu0 0.0
    %2510 = vmatpush1.msra.mxu0 0.0
    %2511 = vmatprep.subr.mxu0 0.0
    %2512 = vmatpush1.msra.mxu0 0.0
    %2513 = vmatprep.subr.mxu0 0.0
    %2514 = vmatpush1.msra.mxu0 0.0
    %2515 = vmatprep.subr.mxu0 0.0
    %2516 = vmatpush1.msra.mxu0 0.0
    %2517 = vmatprep.subr.mxu0 0.0
    %2518 = vmatpush1.msra.mxu0 0.0
    %2519 = vmatprep.subr.mxu0 0.0
    %2520 = vmatpush1.msra.mxu0 0.0
    %2521 = vmatprep.subr.mxu0 0.0
    %2522 = vmatpush1.msra.mxu0 0.0
    %2523 = vmatprep.subr.mxu0 0.0
    %2524 = vmatpush1.msra.mxu0 0.0
    %2525 = vmatprep.subr.mxu0 0.0
    %2526 = vmatpush1.msra.mxu0 0.0
    %2527 = vmatprep.subr.mxu0 0.0
    %2528 = vmatpush1.msra.mxu0 0.0
    %2529 = vmatprep.mubr.f32.mxu0 0.0
    %2530 = vmatmul.mubr.f32.gmra.mrb[0].mxu0 %v2392
    %v2531 = vpop.f32.mrb[0].mxu0
    %v2532 = vadd.f32 0.0, %v2531
    %v2533 = vpop.f32.mrb[0].mxu0
    %v2534 = vadd.f32 0.0, %v2533
    %2535 = vdwg.mxu0
    %v2536 = vadd.f32 %v2270, %v2461
    %v2537 = vadd.f32 %v2272, %v2463
    %v2538 = vadd.f32 %v2341, %v2532
    %v2539 = vadd.f32 %v2343, %v2534
    %2540 = vrot.lane.b32.xlu0 %v1959, 1
    %v2541 = vpop.permute.xlu0 %2540
    %2543 = vrot.lane.b32.xlu0 %v1956, 1
    %v2544 = vpop.permute.xlu0 %2543
    %2545 = vrot.lane.b32.xlu0 %v1957, 1
    %v2546 = vpop.permute.xlu0 %2545
    %2547 = vrot.lane.b32.xlu0 %v1958, 1
    %v2548 = vpop.permute.xlu0 %2547
    %v2549 = vsel %vm688, %v2544, %v2546
    %v2550 = vsel %vm688, %v2546, %v2548
    %v2551 = vsel %vm688, %v2548, %v2541
    %v2556 = vsel %vm688, %v2541, %v2544
    %s2557 = scalar_lea.vmem %s12, 3
    %v2558 = vld [vmem:[%s2557] ss:$8 sm:$0xf]
    %v2560 = vlaneseq
    %v2561 = vshrl.u32 %v2560, 7
    %v2562 = vsub.s32 0, %v2561
    %v2563 = vrot.slane %v2558, %v2562
    %v2564 = vlaneseq
    %v2565 = vshrl.u32 %v2564, 7
    %v2566 = vsub.s32 1, %v2565
    %v2567 = vrot.slane %v2558, %v2566
    %v2568 = vlaneseq
    %v2569 = vshrl.u32 %v2568, 7
    %v2570 = vsub.s32 2, %v2569
    %v2571 = vrot.slane %v2558, %v2570
    %v2572 = vlaneseq
    %v2573 = vshrl.u32 %v2572, 7
    %v2574 = vsub.s32 3, %v2573
    %v2575 = vrot.slane %v2558, %v2574
    %v2580 = vmul.f32 %v2556, %v2563
    %v2581 = vmul.f32 %v2549, %v2567
    %v2582 = vmul.f32 %v2550, %v2571
    %v2583 = vmul.f32 %v2551, %v2575
    %s2584 = scalar_lea.vmem %s2, 24
    %v2585 = vld [vmem:[%s2584] sm:$0xff]
    %v2587 = vsel %vm2054, %v2585, 0
    %2589 = vmatprep.subr.mxu0 %v2581
    %2590 = vmatpush1.msra.mxu0 %v2580
    %2591 = vmatprep.subr.mxu0 0.0
    %2592 = vmatpush1.msra.mxu0 0.0
    %2593 = vmatprep.subr.mxu0 0.0
    %2594 = vmatpush1.msra.mxu0 0.0
    %2595 = vmatprep.subr.mxu0 0.0
    %2596 = vmatpush1.msra.mxu0 0.0
    %2597 = vmatprep.subr.mxu0 0.0
    %2598 = vmatpush1.msra.mxu0 0.0
    %2599 = vmatprep.subr.mxu0 0.0
    %2600 = vmatpush1.msra.mxu0 0.0
    %2601 = vmatprep.subr.mxu0 0.0
    %2602 = vmatpush1.msra.mxu0 0.0
    %2603 = vmatprep.subr.mxu0 0.0
    %2604 = vmatpush1.msra.mxu0 0.0
    %2605 = vmatprep.subr.mxu0 0.0
    %2606 = vmatpush1.msra.mxu0 0.0
    %2607 = vmatprep.subr.mxu0 0.0
    %2608 = vmatpush1.msra.mxu0 0.0
    %2609 = vmatprep.subr.mxu0 0.0
    %2610 = vmatpush1.msra.mxu0 0.0
    %2611 = vmatprep.subr.mxu0 0.0
    %2612 = vmatpush1.msra.mxu0 0.0
    %2613 = vmatprep.subr.mxu0 0.0
    %2614 = vmatpush1.msra.mxu0 0.0
    %2615 = vmatprep.subr.mxu0 0.0
    %2616 = vmatpush1.msra.mxu0 0.0
    %2617 = vmatprep.subr.mxu0 0.0
    %2618 = vmatpush1.msra.mxu0 0.0
    %2619 = vmatprep.subr.mxu0 0.0
    %2620 = vmatpush1.msra.mxu0 0.0
    %2621 = vmatprep.subr.mxu0 0.0
    %2622 = vmatpush1.msra.mxu0 0.0
    %2623 = vmatprep.subr.mxu0 0.0
    %2624 = vmatpush1.msra.mxu0 0.0
    %2625 = vmatprep.subr.mxu0 0.0
    %2626 = vmatpush1.msra.mxu0 0.0
    %2627 = vmatprep.subr.mxu0 0.0
    %2628 = vmatpush1.msra.mxu0 0.0
    %2629 = vmatprep.subr.mxu0 0.0
    %2630 = vmatpush1.msra.mxu0 0.0
    %2631 = vmatprep.subr.mxu0 0.0
    %2632 = vmatpush1.msra.mxu0 0.0
    %2633 = vmatprep.subr.mxu0 0.0
    %2634 = vmatpush1.msra.mxu0 0.0
    %2635 = vmatprep.subr.mxu0 0.0
    %2636 = vmatpush1.msra.mxu0 0.0
    %2637 = vmatprep.subr.mxu0 0.0
    %2638 = vmatpush1.msra.mxu0 0.0
    %2639 = vmatprep.subr.mxu0 0.0
    %2640 = vmatpush1.msra.mxu0 0.0
    %2641 = vmatprep.subr.mxu0 0.0
    %2642 = vmatpush1.msra.mxu0 0.0
    %2643 = vmatprep.subr.mxu0 0.0
    %2644 = vmatpush1.msra.mxu0 0.0
    %2645 = vmatprep.subr.mxu0 0.0
    %2646 = vmatpush1.msra.mxu0 0.0
    %2647 = vmatprep.subr.mxu0 0.0
    %2648 = vmatpush1.msra.mxu0 0.0
    %2649 = vmatprep.subr.mxu0 0.0
    %2650 = vmatpush1.msra.mxu0 0.0
    %2651 = vmatprep.subr.mxu0 0.0
    %2652 = vmatpush1.msra.mxu0 0.0
    %2653 = vmatprep.mubr.f32.mxu0 0.0
    %2654 = vmatmul.mubr.f32.gmra.mrb[0].mxu0 %v2587
    %v2655 = vpop.f32.mrb[0].mxu0
    %v2656 = vadd.f32 0.0, %v2655
    %v2657 = vpop.f32.mrb[0].mxu0
    %v2658 = vadd.f32 0.0, %v2657
    %2659 = vdwg.mxu0
    %2660 = vmatprep.subr.mxu0 %v2583
    %2661 = vmatpush1.msra.mxu0 %v2582
    %2662 = vmatprep.subr.mxu0 0.0
    %2663 = vmatpush1.msra.mxu0 0.0
    %2664 = vmatprep.subr.mxu0 0.0
    %2665 = vmatpush1.msra.mxu0 0.0
    %2666 = vmatprep.subr.mxu0 0.0
    %2667 = vmatpush1.msra.mxu0 0.0
    %2668 = vmatprep.subr.mxu0 0.0
    %2669 = vmatpush1.msra.mxu0 0.0
    %2670 = vmatprep.subr.mxu0 0.0
    %2671 = vmatpush1.msra.mxu0 0.0
    %2672 = vmatprep.subr.mxu0 0.0
    %2673 = vmatpush1.msra.mxu0 0.0
    %2674 = vmatprep.subr.mxu0 0.0
    %2675 = vmatpush1.msra.mxu0 0.0
    %2676 = vmatprep.subr.mxu0 0.0
    %2677 = vmatpush1.msra.mxu0 0.0
    %2678 = vmatprep.subr.mxu0 0.0
    %2679 = vmatpush1.msra.mxu0 0.0
    %2680 = vmatprep.subr.mxu0 0.0
    %2681 = vmatpush1.msra.mxu0 0.0
    %2682 = vmatprep.subr.mxu0 0.0
    %2683 = vmatpush1.msra.mxu0 0.0
    %2684 = vmatprep.subr.mxu0 0.0
    %2685 = vmatpush1.msra.mxu0 0.0
    %2686 = vmatprep.subr.mxu0 0.0
    %2687 = vmatpush1.msra.mxu0 0.0
    %2688 = vmatprep.subr.mxu0 0.0
    %2689 = vmatpush1.msra.mxu0 0.0
    %2690 = vmatprep.subr.mxu0 0.0
    %2691 = vmatpush1.msra.mxu0 0.0
    %2692 = vmatprep.subr.mxu0 0.0
    %2693 = vmatpush1.msra.mxu0 0.0
    %2694 = vmatprep.subr.mxu0 0.0
    %2695 = vmatpush1.msra.mxu0 0.0
    %2696 = vmatprep.subr.mxu0 0.0
    %2697 = vmatpush1.msra.mxu0 0.0
    %2698 = vmatprep.subr.mxu0 0.0
    %2699 = vmatpush1.msra.mxu0 0.0
    %2700 = vmatprep.subr.mxu0 0.0
    %2701 = vmatpush1.msra.mxu0 0.0
    %2702 = vmatprep.subr.mxu0 0.0
    %2703 = vmatpush1.msra.mxu0 0.0
    %2704 = vmatprep.subr.mxu0 0.0
    %2705 = vmatpush1.msra.mxu0 0.0
    %2706 = vmatprep.subr.mxu0 0.0
    %2707 = vmatpush1.msra.mxu0 0.0
    %2708 = vmatprep.subr.mxu0 0.0
    %2709 = vmatpush1.msra.mxu0 0.0
    %2710 = vmatprep.subr.mxu0 0.0
    %2711 = vmatpush1.msra.mxu0 0.0
    %2712 = vmatprep.subr.mxu0 0.0
    %2713 = vmatpush1.msra.mxu0 0.0
    %2714 = vmatprep.subr.mxu0 0.0
    %2715 = vmatpush1.msra.mxu0 0.0
    %2716 = vmatprep.subr.mxu0 0.0
    %2717 = vmatpush1.msra.mxu0 0.0
    %2718 = vmatprep.subr.mxu0 0.0
    %2719 = vmatpush1.msra.mxu0 0.0
    %2720 = vmatprep.subr.mxu0 0.0
    %2721 = vmatpush1.msra.mxu0 0.0
    %2722 = vmatprep.subr.mxu0 0.0
    %2723 = vmatpush1.msra.mxu0 0.0
    %2724 = vmatprep.mubr.f32.mxu0 0.0
    %2725 = vmatmul.mubr.f32.gmra.mrb[0].mxu0 %v2587
    %v2726 = vpop.f32.mrb[0].mxu0
    %v2727 = vadd.f32 0.0, %v2726
    %v2728 = vpop.f32.mrb[0].mxu0
    %v2729 = vadd.f32 0.0, %v2728
    %2730 = vdwg.mxu0
    %v2731 = vadd.f32 %v2536, %v2656
    %v2732 = vadd.f32 %v2537, %v2658
    %v2733 = vadd.f32 %v2538, %v2727
    %v2734 = vadd.f32 %v2539, %v2729
    %s2735 = scalar_lea.vmem %s12, 4
    %v2736 = vld [vmem:[%s2735] ss:$8 sm:$0xf]
    %v2738 = vlaneseq
    %v2739 = vshrl.u32 %v2738, 7
    %v2740 = vsub.s32 0, %v2739
    %v2741 = vrot.slane %v2736, %v2740
    %v2742 = vlaneseq
    %v2743 = vshrl.u32 %v2742, 7
    %v2744 = vsub.s32 1, %v2743
    %v2745 = vrot.slane %v2736, %v2744
    %v2746 = vlaneseq
    %v2747 = vshrl.u32 %v2746, 7
    %v2748 = vsub.s32 2, %v2747
    %v2749 = vrot.slane %v2736, %v2748
    %v2750 = vlaneseq
    %v2751 = vshrl.u32 %v2750, 7
    %v2752 = vsub.s32 3, %v2751
    %v2753 = vrot.slane %v2736, %v2752
    %v2758 = vmul.f32 %v1956, %v2741
    %v2759 = vmul.f32 %v1957, %v2745
    %v2760 = vmul.f32 %v1958, %v2749
    %v2761 = vmul.f32 %v1959, %v2753
    %s2762 = scalar_lea.vmem %s2, 32
    %v2763 = vld [vmem:[%s2762] sm:$0xff]
    %v2765 = vsel %vm2054, %v2763, 0
    %2767 = vmatprep.subr.mxu0 %v2759
    %2768 = vmatpush1.msra.mxu0 %v2758
    %2769 = vmatprep.subr.mxu0 0.0
    %2770 = vmatpush1.msra.mxu0 0.0
    %2771 = vmatprep.subr.mxu0 0.0
    %2772 = vmatpush1.msra.mxu0 0.0
    %2773 = vmatprep.subr.mxu0 0.0
    %2774 = vmatpush1.msra.mxu0 0.0
    %2775 = vmatprep.subr.mxu0 0.0
    %2776 = vmatpush1.msra.mxu0 0.0
    %2777 = vmatprep.subr.mxu0 0.0
    %2778 = vmatpush1.msra.mxu0 0.0
    %2779 = vmatprep.subr.mxu0 0.0
    %2780 = vmatpush1.msra.mxu0 0.0
    %2781 = vmatprep.subr.mxu0 0.0
    %2782 = vmatpush1.msra.mxu0 0.0
    %2783 = vmatprep.subr.mxu0 0.0
    %2784 = vmatpush1.msra.mxu0 0.0
    %2785 = vmatprep.subr.mxu0 0.0
    %2786 = vmatpush1.msra.mxu0 0.0
    %2787 = vmatprep.subr.mxu0 0.0
    %2788 = vmatpush1.msra.mxu0 0.0
    %2789 = vmatprep.subr.mxu0 0.0
    %2790 = vmatpush1.msra.mxu0 0.0
    %2791 = vmatprep.subr.mxu0 0.0
    %2792 = vmatpush1.msra.mxu0 0.0
    %2793 = vmatprep.subr.mxu0 0.0
    %2794 = vmatpush1.msra.mxu0 0.0
    %2795 = vmatprep.subr.mxu0 0.0
    %2796 = vmatpush1.msra.mxu0 0.0
    %2797 = vmatprep.subr.mxu0 0.0
    %2798 = vmatpush1.msra.mxu0 0.0
    %2799 = vmatprep.subr.mxu0 0.0
    %2800 = vmatpush1.msra.mxu0 0.0
    %2801 = vmatprep.subr.mxu0 0.0
    %2802 = vmatpush1.msra.mxu0 0.0
    %2803 = vmatprep.subr.mxu0 0.0
    %2804 = vmatpush1.msra.mxu0 0.0
    %2805 = vmatprep.subr.mxu0 0.0
    %2806 = vmatpush1.msra.mxu0 0.0
    %2807 = vmatprep.subr.mxu0 0.0
    %2808 = vmatpush1.msra.mxu0 0.0
    %2809 = vmatprep.subr.mxu0 0.0
    %2810 = vmatpush1.msra.mxu0 0.0
    %2811 = vmatprep.subr.mxu0 0.0
    %2812 = vmatpush1.msra.mxu0 0.0
    %2813 = vmatprep.subr.mxu0 0.0
    %2814 = vmatpush1.msra.mxu0 0.0
    %2815 = vmatprep.subr.mxu0 0.0
    %2816 = vmatpush1.msra.mxu0 0.0
    %2817 = vmatprep.subr.mxu0 0.0
    %2818 = vmatpush1.msra.mxu0 0.0
    %2819 = vmatprep.subr.mxu0 0.0
    %2820 = vmatpush1.msra.mxu0 0.0
    %2821 = vmatprep.subr.mxu0 0.0
    %2822 = vmatpush1.msra.mxu0 0.0
    %2823 = vmatprep.subr.mxu0 0.0
    %2824 = vmatpush1.msra.mxu0 0.0
    %2825 = vmatprep.subr.mxu0 0.0
    %2826 = vmatpush1.msra.mxu0 0.0
    %2827 = vmatprep.subr.mxu0 0.0
    %2828 = vmatpush1.msra.mxu0 0.0
    %2829 = vmatprep.subr.mxu0 0.0
    %2830 = vmatpush1.msra.mxu0 0.0
    %2831 = vmatprep.mubr.f32.mxu0 0.0
    %2832 = vmatmul.mubr.f32.gmra.mrb[0].mxu0 %v2765
    %v2833 = vpop.f32.mrb[0].mxu0
    %v2834 = vadd.f32 0.0, %v2833
    %v2835 = vpop.f32.mrb[0].mxu0
    %v2836 = vadd.f32 0.0, %v2835
    %2837 = vdwg.mxu0
    %2838 = vmatprep.subr.mxu0 %v2761
    %2839 = vmatpush1.msra.mxu0 %v2760
    %2840 = vmatprep.subr.mxu0 0.0
    %2841 = vmatpush1.msra.mxu0 0.0
    %2842 = vmatprep.subr.mxu0 0.0
    %2843 = vmatpush1.msra.mxu0 0.0
    %2844 = vmatprep.subr.mxu0 0.0
    %2845 = vmatpush1.msra.mxu0 0.0
    %2846 = vmatprep.subr.mxu0 0.0
    %2847 = vmatpush1.msra.mxu0 0.0
    %2848 = vmatprep.subr.mxu0 0.0
    %2849 = vmatpush1.msra.mxu0 0.0
    %2850 = vmatprep.subr.mxu0 0.0
    %2851 = vmatpush1.msra.mxu0 0.0
    %2852 = vmatprep.subr.mxu0 0.0
    %2853 = vmatpush1.msra.mxu0 0.0
    %2854 = vmatprep.subr.mxu0 0.0
    %2855 = vmatpush1.msra.mxu0 0.0
    %2856 = vmatprep.subr.mxu0 0.0
    %2857 = vmatpush1.msra.mxu0 0.0
    %2858 = vmatprep.subr.mxu0 0.0
    %2859 = vmatpush1.msra.mxu0 0.0
    %2860 = vmatprep.subr.mxu0 0.0
    %2861 = vmatpush1.msra.mxu0 0.0
    %2862 = vmatprep.subr.mxu0 0.0
    %2863 = vmatpush1.msra.mxu0 0.0
    %2864 = vmatprep.subr.mxu0 0.0
    %2865 = vmatpush1.msra.mxu0 0.0
    %2866 = vmatprep.subr.mxu0 0.0
    %2867 = vmatpush1.msra.mxu0 0.0
    %2868 = vmatprep.subr.mxu0 0.0
    %2869 = vmatpush1.msra.mxu0 0.0
    %2870 = vmatprep.subr.mxu0 0.0
    %2871 = vmatpush1.msra.mxu0 0.0
    %2872 = vmatprep.subr.mxu0 0.0
    %2873 = vmatpush1.msra.mxu0 0.0
    %2874 = vmatprep.subr.mxu0 0.0
    %2875 = vmatpush1.msra.mxu0 0.0
    %2876 = vmatprep.subr.mxu0 0.0
    %2877 = vmatpush1.msra.mxu0 0.0
    %2878 = vmatprep.subr.mxu0 0.0
    %2879 = vmatpush1.msra.mxu0 0.0
    %2880 = vmatprep.subr.mxu0 0.0
    %2881 = vmatpush1.msra.mxu0 0.0
    %2882 = vmatprep.subr.mxu0 0.0
    %2883 = vmatpush1.msra.mxu0 0.0
    %2884 = vmatprep.subr.mxu0 0.0
    %2885 = vmatpush1.msra.mxu0 0.0
    %2886 = vmatprep.subr.mxu0 0.0
    %2887 = vmatpush1.msra.mxu0 0.0
    %2888 = vmatprep.subr.mxu0 0.0
    %2889 = vmatpush1.msra.mxu0 0.0
    %2890 = vmatprep.subr.mxu0 0.0
    %2891 = vmatpush1.msra.mxu0 0.0
    %2892 = vmatprep.subr.mxu0 0.0
    %2893 = vmatpush1.msra.mxu0 0.0
    %2894 = vmatprep.subr.mxu0 0.0
    %2895 = vmatpush1.msra.mxu0 0.0
    %2896 = vmatprep.subr.mxu0 0.0
    %2897 = vmatpush1.msra.mxu0 0.0
    %2898 = vmatprep.subr.mxu0 0.0
    %2899 = vmatpush1.msra.mxu0 0.0
    %2900 = vmatprep.subr.mxu0 0.0
    %2901 = vmatpush1.msra.mxu0 0.0
    %2902 = vmatprep.mubr.f32.mxu0 0.0
    %2903 = vmatmul.mubr.f32.gmra.mrb[0].mxu0 %v2765
    %v2904 = vpop.f32.mrb[0].mxu0
    %v2905 = vadd.f32 0.0, %v2904
    %v2906 = vpop.f32.mrb[0].mxu0
    %v2907 = vadd.f32 0.0, %v2906
    %2908 = vdwg.mxu0
    %v2909 = vadd.f32 %v2731, %v2834
    %v2910 = vadd.f32 %v2732, %v2836
    %v2911 = vadd.f32 %v2733, %v2905
    %v2912 = vadd.f32 %v2734, %v2907
    %2913 = vrot.lane.b32.xlu0 %v1956, 127
    %v2914 = vpop.permute.xlu0 %2913
    %2915 = vrot.lane.b32.xlu0 %v1957, 127
    %v2916 = vpop.permute.xlu0 %2915
    %2917 = vrot.lane.b32.xlu0 %v1958, 127
    %v2918 = vpop.permute.xlu0 %2917
    %2919 = vrot.lane.b32.xlu0 %v1959, 127
    %v2920 = vpop.permute.xlu0 %2919
    %v2921 = vsel %vm1085, %v2914, %v2916
    %v2922 = vsel %vm1085, %v2916, %v2918
    %v2923 = vsel %vm1085, %v2918, %v2920
    %v2929 = vsel %vm1085, %v2920, %v2914
    %s2930 = scalar_lea.vmem %s12, 5
    %v2931 = vld [vmem:[%s2930] ss:$8 sm:$0xf]
    %v2933 = vlaneseq
    %v2934 = vshrl.u32 %v2933, 7
    %v2935 = vsub.s32 0, %v2934
    %v2936 = vrot.slane %v2931, %v2935
    %v2937 = vlaneseq
    %v2938 = vshrl.u32 %v2937, 7
    %v2939 = vsub.s32 1, %v2938
    %v2940 = vrot.slane %v2931, %v2939
    %v2941 = vlaneseq
    %v2942 = vshrl.u32 %v2941, 7
    %v2943 = vsub.s32 2, %v2942
    %v2944 = vrot.slane %v2931, %v2943
    %v2945 = vlaneseq
    %v2946 = vshrl.u32 %v2945, 7
    %v2947 = vsub.s32 3, %v2946
    %v2948 = vrot.slane %v2931, %v2947
    %v2953 = vmul.f32 %v2921, %v2936
    %v2954 = vmul.f32 %v2922, %v2940
    %v2955 = vmul.f32 %v2923, %v2944
    %v2956 = vmul.f32 %v2929, %v2948
    %s2957 = scalar_lea.vmem %s2, 40
    %v2958 = vld [vmem:[%s2957] sm:$0xff]
    %v2960 = vsel %vm2054, %v2958, 0
    %2962 = vmatprep.subr.mxu0 %v2954
    %2963 = vmatpush1.msra.mxu0 %v2953
    %2964 = vmatprep.subr.mxu0 0.0
    %2965 = vmatpush1.msra.mxu0 0.0
    %2966 = vmatprep.subr.mxu0 0.0
    %2967 = vmatpush1.msra.mxu0 0.0
    %2968 = vmatprep.subr.mxu0 0.0
    %2969 = vmatpush1.msra.mxu0 0.0
    %2970 = vmatprep.subr.mxu0 0.0
    %2971 = vmatpush1.msra.mxu0 0.0
    %2972 = vmatprep.subr.mxu0 0.0
    %2973 = vmatpush1.msra.mxu0 0.0
    %2974 = vmatprep.subr.mxu0 0.0
    %2975 = vmatpush1.msra.mxu0 0.0
    %2976 = vmatprep.subr.mxu0 0.0
    %2977 = vmatpush1.msra.mxu0 0.0
    %2978 = vmatprep.subr.mxu0 0.0
    %2979 = vmatpush1.msra.mxu0 0.0
    %2980 = vmatprep.subr.mxu0 0.0
    %2981 = vmatpush1.msra.mxu0 0.0
    %2982 = vmatprep.subr.mxu0 0.0
    %2983 = vmatpush1.msra.mxu0 0.0
    %2984 = vmatprep.subr.mxu0 0.0
    %2985 = vmatpush1.msra.mxu0 0.0
    %2986 = vmatprep.subr.mxu0 0.0
    %2987 = vmatpush1.msra.mxu0 0.0
    %2988 = vmatprep.subr.mxu0 0.0
    %2989 = vmatpush1.msra.mxu0 0.0
    %2990 = vmatprep.subr.mxu0 0.0
    %2991 = vmatpush1.msra.mxu0 0.0
    %2992 = vmatprep.subr.mxu0 0.0
    %2993 = vmatpush1.msra.mxu0 0.0
    %2994 = vmatprep.subr.mxu0 0.0
    %2995 = vmatpush1.msra.mxu0 0.0
    %2996 = vmatprep.subr.mxu0 0.0
    %2997 = vmatpush1.msra.mxu0 0.0
    %2998 = vmatprep.subr.mxu0 0.0
    %2999 = vmatpush1.msra.mxu0 0.0
    %3000 = vmatprep.subr.mxu0 0.0
    %3001 = vmatpush1.msra.mxu0 0.0
    %3002 = vmatprep.subr.mxu0 0.0
    %3003 = vmatpush1.msra.mxu0 0.0
    %3004 = vmatprep.subr.mxu0 0.0
    %3005 = vmatpush1.msra.mxu0 0.0
    %3006 = vmatprep.subr.mxu0 0.0
    %3007 = vmatpush1.msra.mxu0 0.0
    %3008 = vmatprep.subr.mxu0 0.0
    %3009 = vmatpush1.msra.mxu0 0.0
    %3010 = vmatprep.subr.mxu0 0.0
    %3011 = vmatpush1.msra.mxu0 0.0
    %3012 = vmatprep.subr.mxu0 0.0
    %3013 = vmatpush1.msra.mxu0 0.0
    %3014 = vmatprep.subr.mxu0 0.0
    %3015 = vmatpush1.msra.mxu0 0.0
    %3016 = vmatprep.subr.mxu0 0.0
    %3017 = vmatpush1.msra.mxu0 0.0
    %3018 = vmatprep.subr.mxu0 0.0
    %3019 = vmatpush1.msra.mxu0 0.0
    %3020 = vmatprep.subr.mxu0 0.0
    %3021 = vmatpush1.msra.mxu0 0.0
    %3022 = vmatprep.subr.mxu0 0.0
    %3023 = vmatpush1.msra.mxu0 0.0
    %3024 = vmatprep.subr.mxu0 0.0
    %3025 = vmatpush1.msra.mxu0 0.0
    %3026 = vmatprep.mubr.f32.mxu0 0.0
    %3027 = vmatmul.mubr.f32.gmra.mrb[0].mxu0 %v2960
    %v3028 = vpop.f32.mrb[0].mxu0
    %v3029 = vadd.f32 0.0, %v3028
    %v3030 = vpop.f32.mrb[0].mxu0
    %v3031 = vadd.f32 0.0, %v3030
    %3032 = vdwg.mxu0
    %3033 = vmatprep.subr.mxu0 %v2956
    %3034 = vmatpush1.msra.mxu0 %v2955
    %3035 = vmatprep.subr.mxu0 0.0
    %3036 = vmatpush1.msra.mxu0 0.0
    %3037 = vmatprep.subr.mxu0 0.0
    %3038 = vmatpush1.msra.mxu0 0.0
    %3039 = vmatprep.subr.mxu0 0.0
    %3040 = vmatpush1.msra.mxu0 0.0
    %3041 = vmatprep.subr.mxu0 0.0
    %3042 = vmatpush1.msra.mxu0 0.0
    %3043 = vmatprep.subr.mxu0 0.0
    %3044 = vmatpush1.msra.mxu0 0.0
    %3045 = vmatprep.subr.mxu0 0.0
    %3046 = vmatpush1.msra.mxu0 0.0
    %3047 = vmatprep.subr.mxu0 0.0
    %3048 = vmatpush1.msra.mxu0 0.0
    %3049 = vmatprep.subr.mxu0 0.0
    %3050 = vmatpush1.msra.mxu0 0.0
    %3051 = vmatprep.subr.mxu0 0.0
    %3052 = vmatpush1.msra.mxu0 0.0
    %3053 = vmatprep.subr.mxu0 0.0
    %3054 = vmatpush1.msra.mxu0 0.0
    %3055 = vmatprep.subr.mxu0 0.0
    %3056 = vmatpush1.msra.mxu0 0.0
    %3057 = vmatprep.subr.mxu0 0.0
    %3058 = vmatpush1.msra.mxu0 0.0
    %3059 = vmatprep.subr.mxu0 0.0
    %3060 = vmatpush1.msra.mxu0 0.0
    %3061 = vmatprep.subr.mxu0 0.0
    %3062 = vmatpush1.msra.mxu0 0.0
    %3063 = vmatprep.subr.mxu0 0.0
    %3064 = vmatpush1.msra.mxu0 0.0
    %3065 = vmatprep.subr.mxu0 0.0
    %3066 = vmatpush1.msra.mxu0 0.0
    %3067 = vmatprep.subr.mxu0 0.0
    %3068 = vmatpush1.msra.mxu0 0.0
    %3069 = vmatprep.subr.mxu0 0.0
    %3070 = vmatpush1.msra.mxu0 0.0
    %3071 = vmatprep.subr.mxu0 0.0
    %3072 = vmatpush1.msra.mxu0 0.0
    %3073 = vmatprep.subr.mxu0 0.0
    %3074 = vmatpush1.msra.mxu0 0.0
    %3075 = vmatprep.subr.mxu0 0.0
    %3076 = vmatpush1.msra.mxu0 0.0
    %3077 = vmatprep.subr.mxu0 0.0
    %3078 = vmatpush1.msra.mxu0 0.0
    %3079 = vmatprep.subr.mxu0 0.0
    %3080 = vmatpush1.msra.mxu0 0.0
    %3081 = vmatprep.subr.mxu0 0.0
    %3082 = vmatpush1.msra.mxu0 0.0
    %3083 = vmatprep.subr.mxu0 0.0
    %3084 = vmatpush1.msra.mxu0 0.0
    %3085 = vmatprep.subr.mxu0 0.0
    %3086 = vmatpush1.msra.mxu0 0.0
    %3087 = vmatprep.subr.mxu0 0.0
    %3088 = vmatpush1.msra.mxu0 0.0
    %3089 = vmatprep.subr.mxu0 0.0
    %3090 = vmatpush1.msra.mxu0 0.0
    %3091 = vmatprep.subr.mxu0 0.0
    %3092 = vmatpush1.msra.mxu0 0.0
    %3093 = vmatprep.subr.mxu0 0.0
    %3094 = vmatpush1.msra.mxu0 0.0
    %3095 = vmatprep.subr.mxu0 0.0
    %3096 = vmatpush1.msra.mxu0 0.0
    %3097 = vmatprep.mubr.f32.mxu0 0.0
    %3098 = vmatmul.mubr.f32.gmra.mrb[0].mxu0 %v2960
    %v3099 = vpop.f32.mrb[0].mxu0
    %v3100 = vadd.f32 0.0, %v3099
    %v3101 = vpop.f32.mrb[0].mxu0
    %v3102 = vadd.f32 0.0, %v3101
    %3103 = vdwg.mxu0
    %v3104 = vadd.f32 %v2909, %v3029
    %v3105 = vadd.f32 %v2910, %v3031
    %v3106 = vadd.f32 %v2911, %v3100
    %v3107 = vadd.f32 %v2912, %v3102
    %3108 = vrot.lane.b32.xlu0 %v1956, 113
    %v3109 = vpop.permute.xlu0 %3108
    %3110 = vrot.lane.b32.xlu0 %v1957, 113
    %v3111 = vpop.permute.xlu0 %3110
    %3112 = vrot.lane.b32.xlu0 %v1958, 113
    %v3113 = vpop.permute.xlu0 %3112
    %3114 = vrot.lane.b32.xlu0 %v1959, 113
    %v3115 = vpop.permute.xlu0 %3114
    %v3116 = vsel %vm1293, %v3109, %v3111
    %v3117 = vsel %vm1293, %v3111, %v3113
    %v3118 = vsel %vm1293, %v3113, %v3115
    %v3124 = vsel %vm1293, %v3115, %v3109
    %s3125 = scalar_lea.vmem %s12, 6
    %v3126 = vld [vmem:[%s3125] ss:$8 sm:$0xf]
    %v3128 = vlaneseq
    %v3129 = vshrl.u32 %v3128, 7
    %v3130 = vsub.s32 0, %v3129
    %v3131 = vrot.slane %v3126, %v3130
    %v3132 = vlaneseq
    %v3133 = vshrl.u32 %v3132, 7
    %v3134 = vsub.s32 1, %v3133
    %v3135 = vrot.slane %v3126, %v3134
    %v3136 = vlaneseq
    %v3137 = vshrl.u32 %v3136, 7
    %v3138 = vsub.s32 2, %v3137
    %v3139 = vrot.slane %v3126, %v3138
    %v3140 = vlaneseq
    %v3141 = vshrl.u32 %v3140, 7
    %v3142 = vsub.s32 3, %v3141
    %v3143 = vrot.slane %v3126, %v3142
    %v3148 = vmul.f32 %v3116, %v3131
    %v3149 = vmul.f32 %v3117, %v3135
    %v3150 = vmul.f32 %v3118, %v3139
    %v3151 = vmul.f32 %v3124, %v3143
    %s3152 = scalar_lea.vmem %s2, 48
    %v3153 = vld [vmem:[%s3152] sm:$0xff]
    %v3155 = vsel %vm2054, %v3153, 0
    %3157 = vmatprep.subr.mxu0 %v3149
    %3158 = vmatpush1.msra.mxu0 %v3148
    %3159 = vmatprep.subr.mxu0 0.0
    %3160 = vmatpush1.msra.mxu0 0.0
    %3161 = vmatprep.subr.mxu0 0.0
    %3162 = vmatpush1.msra.mxu0 0.0
    %3163 = vmatprep.subr.mxu0 0.0
    %3164 = vmatpush1.msra.mxu0 0.0
    %3165 = vmatprep.subr.mxu0 0.0
    %3166 = vmatpush1.msra.mxu0 0.0
    %3167 = vmatprep.subr.mxu0 0.0
    %3168 = vmatpush1.msra.mxu0 0.0
    %3169 = vmatprep.subr.mxu0 0.0
    %3170 = vmatpush1.msra.mxu0 0.0
    %3171 = vmatprep.subr.mxu0 0.0
    %3172 = vmatpush1.msra.mxu0 0.0
    %3173 = vmatprep.subr.mxu0 0.0
    %3174 = vmatpush1.msra.mxu0 0.0
    %3175 = vmatprep.subr.mxu0 0.0
    %3176 = vmatpush1.msra.mxu0 0.0
    %3177 = vmatprep.subr.mxu0 0.0
    %3178 = vmatpush1.msra.mxu0 0.0
    %3179 = vmatprep.subr.mxu0 0.0
    %3180 = vmatpush1.msra.mxu0 0.0
    %3181 = vmatprep.subr.mxu0 0.0
    %3182 = vmatpush1.msra.mxu0 0.0
    %3183 = vmatprep.subr.mxu0 0.0
    %3184 = vmatpush1.msra.mxu0 0.0
    %3185 = vmatprep.subr.mxu0 0.0
    %3186 = vmatpush1.msra.mxu0 0.0
    %3187 = vmatprep.subr.mxu0 0.0
    %3188 = vmatpush1.msra.mxu0 0.0
    %3189 = vmatprep.subr.mxu0 0.0
    %3190 = vmatpush1.msra.mxu0 0.0
    %3191 = vmatprep.subr.mxu0 0.0
    %3192 = vmatpush1.msra.mxu0 0.0
    %3193 = vmatprep.subr.mxu0 0.0
    %3194 = vmatpush1.msra.mxu0 0.0
    %3195 = vmatprep.subr.mxu0 0.0
    %3196 = vmatpush1.msra.mxu0 0.0
    %3197 = vmatprep.subr.mxu0 0.0
    %3198 = vmatpush1.msra.mxu0 0.0
    %3199 = vmatprep.subr.mxu0 0.0
    %3200 = vmatpush1.msra.mxu0 0.0
    %3201 = vmatprep.subr.mxu0 0.0
    %3202 = vmatpush1.msra.mxu0 0.0
    %3203 = vmatprep.subr.mxu0 0.0
    %3204 = vmatpush1.msra.mxu0 0.0
    %3205 = vmatprep.subr.mxu0 0.0
    %3206 = vmatpush1.msra.mxu0 0.0
    %3207 = vmatprep.subr.mxu0 0.0
    %3208 = vmatpush1.msra.mxu0 0.0
    %3209 = vmatprep.subr.mxu0 0.0
    %3210 = vmatpush1.msra.mxu0 0.0
    %3211 = vmatprep.subr.mxu0 0.0
    %3212 = vmatpush1.msra.mxu0 0.0
    %3213 = vmatprep.subr.mxu0 0.0
    %3214 = vmatpush1.msra.mxu0 0.0
    %3215 = vmatprep.subr.mxu0 0.0
    %3216 = vmatpush1.msra.mxu0 0.0
    %3217 = vmatprep.subr.mxu0 0.0
    %3218 = vmatpush1.msra.mxu0 0.0
    %3219 = vmatprep.subr.mxu0 0.0
    %3220 = vmatpush1.msra.mxu0 0.0
    %3221 = vmatprep.mubr.f32.mxu0 0.0
    %3222 = vmatmul.mubr.f32.gmra.mrb[0].mxu0 %v3155
    %v3223 = vpop.f32.mrb[0].mxu0
    %v3224 = vadd.f32 0.0, %v3223
    %v3225 = vpop.f32.mrb[0].mxu0
    %v3226 = vadd.f32 0.0, %v3225
    %3227 = vdwg.mxu0
    %3228 = vmatprep.subr.mxu0 %v3151
    %3229 = vmatpush1.msra.mxu0 %v3150
    %3230 = vmatprep.subr.mxu0 0.0
    %3231 = vmatpush1.msra.mxu0 0.0
    %3232 = vmatprep.subr.mxu0 0.0
    %3233 = vmatpush1.msra.mxu0 0.0
    %3234 = vmatprep.subr.mxu0 0.0
    %3235 = vmatpush1.msra.mxu0 0.0
    %3236 = vmatprep.subr.mxu0 0.0
    %3237 = vmatpush1.msra.mxu0 0.0
    %3238 = vmatprep.subr.mxu0 0.0
    %3239 = vmatpush1.msra.mxu0 0.0
    %3240 = vmatprep.subr.mxu0 0.0
    %3241 = vmatpush1.msra.mxu0 0.0
    %3242 = vmatprep.subr.mxu0 0.0
    %3243 = vmatpush1.msra.mxu0 0.0
    %3244 = vmatprep.subr.mxu0 0.0
    %3245 = vmatpush1.msra.mxu0 0.0
    %3246 = vmatprep.subr.mxu0 0.0
    %3247 = vmatpush1.msra.mxu0 0.0
    %3248 = vmatprep.subr.mxu0 0.0
    %3249 = vmatpush1.msra.mxu0 0.0
    %3250 = vmatprep.subr.mxu0 0.0
    %3251 = vmatpush1.msra.mxu0 0.0
    %3252 = vmatprep.subr.mxu0 0.0
    %3253 = vmatpush1.msra.mxu0 0.0
    %3254 = vmatprep.subr.mxu0 0.0
    %3255 = vmatpush1.msra.mxu0 0.0
    %3256 = vmatprep.subr.mxu0 0.0
    %3257 = vmatpush1.msra.mxu0 0.0
    %3258 = vmatprep.subr.mxu0 0.0
    %3259 = vmatpush1.msra.mxu0 0.0
    %3260 = vmatprep.subr.mxu0 0.0
    %3261 = vmatpush1.msra.mxu0 0.0
    %3262 = vmatprep.subr.mxu0 0.0
    %3263 = vmatpush1.msra.mxu0 0.0
    %3264 = vmatprep.subr.mxu0 0.0
    %3265 = vmatpush1.msra.mxu0 0.0
    %3266 = vmatprep.subr.mxu0 0.0
    %3267 = vmatpush1.msra.mxu0 0.0
    %3268 = vmatprep.subr.mxu0 0.0
    %3269 = vmatpush1.msra.mxu0 0.0
    %3270 = vmatprep.subr.mxu0 0.0
    %3271 = vmatpush1.msra.mxu0 0.0
    %3272 = vmatprep.subr.mxu0 0.0
    %3273 = vmatpush1.msra.mxu0 0.0
    %3274 = vmatprep.subr.mxu0 0.0
    %3275 = vmatpush1.msra.mxu0 0.0
    %3276 = vmatprep.subr.mxu0 0.0
    %3277 = vmatpush1.msra.mxu0 0.0
    %3278 = vmatprep.subr.mxu0 0.0
    %3279 = vmatpush1.msra.mxu0 0.0
    %3280 = vmatprep.subr.mxu0 0.0
    %3281 = vmatpush1.msra.mxu0 0.0
    %3282 = vmatprep.subr.mxu0 0.0
    %3283 = vmatpush1.msra.mxu0 0.0
    %3284 = vmatprep.subr.mxu0 0.0
    %3285 = vmatpush1.msra.mxu0 0.0
    %3286 = vmatprep.subr.mxu0 0.0
    %3287 = vmatpush1.msra.mxu0 0.0
    %3288 = vmatprep.subr.mxu0 0.0
    %3289 = vmatpush1.msra.mxu0 0.0
    %3290 = vmatprep.subr.mxu0 0.0
    %3291 = vmatpush1.msra.mxu0 0.0
    %3292 = vmatprep.mubr.f32.mxu0 0.0
    %3293 = vmatmul.mubr.f32.gmra.mrb[0].mxu0 %v3155
    %v3294 = vpop.f32.mrb[0].mxu0
    %v3295 = vadd.f32 0.0, %v3294
    %v3296 = vpop.f32.mrb[0].mxu0
    %v3297 = vadd.f32 0.0, %v3296
    %3298 = vdwg.mxu0
    %v3299 = vadd.f32 %v3104, %v3224
    %v3300 = vadd.f32 %v3105, %v3226
    %v3301 = vadd.f32 %v3106, %v3295
    %v3302 = vadd.f32 %v3107, %v3297
    %3303 = vrot.lane.b32.xlu0 %v1956, 112
    %v3304 = vpop.permute.xlu0 %3303
    %3305 = vrot.lane.b32.xlu0 %v1957, 112
    %v3306 = vpop.permute.xlu0 %3305
    %3307 = vrot.lane.b32.xlu0 %v1958, 112
    %v3308 = vpop.permute.xlu0 %3307
    %3309 = vrot.lane.b32.xlu0 %v1959, 112
    %v3310 = vpop.permute.xlu0 %3309
    %v3311 = vsel %vm1501, %v3304, %v3306
    %v3312 = vsel %vm1501, %v3306, %v3308
    %v3313 = vsel %vm1501, %v3308, %v3310
    %v3319 = vsel %vm1501, %v3310, %v3304
    %s3320 = scalar_lea.vmem %s12, 7
    %v3321 = vld [vmem:[%s3320] ss:$8 sm:$0xf]
    %v3323 = vlaneseq
    %v3324 = vshrl.u32 %v3323, 7
    %v3325 = vsub.s32 0, %v3324
    %v3326 = vrot.slane %v3321, %v3325
    %v3327 = vlaneseq
    %v3328 = vshrl.u32 %v3327, 7
    %v3329 = vsub.s32 1, %v3328
    %v3330 = vrot.slane %v3321, %v3329
    %v3331 = vlaneseq
    %v3332 = vshrl.u32 %v3331, 7
    %v3333 = vsub.s32 2, %v3332
    %v3334 = vrot.slane %v3321, %v3333
    %v3335 = vlaneseq
    %v3336 = vshrl.u32 %v3335, 7
    %v3337 = vsub.s32 3, %v3336
    %v3338 = vrot.slane %v3321, %v3337
    %v3343 = vmul.f32 %v3311, %v3326
    %v3344 = vmul.f32 %v3312, %v3330
    %v3345 = vmul.f32 %v3313, %v3334
    %v3346 = vmul.f32 %v3319, %v3338
    %s3347 = scalar_lea.vmem %s2, 56
    %v3348 = vld [vmem:[%s3347] sm:$0xff]
    %v3350 = vsel %vm2054, %v3348, 0
    %3352 = vmatprep.subr.mxu0 %v3344
    %3353 = vmatpush1.msra.mxu0 %v3343
    %3354 = vmatprep.subr.mxu0 0.0
    %3355 = vmatpush1.msra.mxu0 0.0
    %3356 = vmatprep.subr.mxu0 0.0
    %3357 = vmatpush1.msra.mxu0 0.0
    %3358 = vmatprep.subr.mxu0 0.0
    %3359 = vmatpush1.msra.mxu0 0.0
    %3360 = vmatprep.subr.mxu0 0.0
    %3361 = vmatpush1.msra.mxu0 0.0
    %3362 = vmatprep.subr.mxu0 0.0
    %3363 = vmatpush1.msra.mxu0 0.0
    %3364 = vmatprep.subr.mxu0 0.0
    %3365 = vmatpush1.msra.mxu0 0.0
    %3366 = vmatprep.subr.mxu0 0.0
    %3367 = vmatpush1.msra.mxu0 0.0
    %3368 = vmatprep.subr.mxu0 0.0
    %3369 = vmatpush1.msra.mxu0 0.0
    %3370 = vmatprep.subr.mxu0 0.0
    %3371 = vmatpush1.msra.mxu0 0.0
    %3372 = vmatprep.subr.mxu0 0.0
    %3373 = vmatpush1.msra.mxu0 0.0
    %3374 = vmatprep.subr.mxu0 0.0
    %3375 = vmatpush1.msra.mxu0 0.0
    %3376 = vmatprep.subr.mxu0 0.0
    %3377 = vmatpush1.msra.mxu0 0.0
    %3378 = vmatprep.subr.mxu0 0.0
    %3379 = vmatpush1.msra.mxu0 0.0
    %3380 = vmatprep.subr.mxu0 0.0
    %3381 = vmatpush1.msra.mxu0 0.0
    %3382 = vmatprep.subr.mxu0 0.0
    %3383 = vmatpush1.msra.mxu0 0.0
    %3384 = vmatprep.subr.mxu0 0.0
    %3385 = vmatpush1.msra.mxu0 0.0
    %3386 = vmatprep.subr.mxu0 0.0
    %3387 = vmatpush1.msra.mxu0 0.0
    %3388 = vmatprep.subr.mxu0 0.0
    %3389 = vmatpush1.msra.mxu0 0.0
    %3390 = vmatprep.subr.mxu0 0.0
    %3391 = vmatpush1.msra.mxu0 0.0
    %3392 = vmatprep.subr.mxu0 0.0
    %3393 = vmatpush1.msra.mxu0 0.0
    %3394 = vmatprep.subr.mxu0 0.0
    %3395 = vmatpush1.msra.mxu0 0.0
    %3396 = vmatprep.subr.mxu0 0.0
    %3397 = vmatpush1.msra.mxu0 0.0
    %3398 = vmatprep.subr.mxu0 0.0
    %3399 = vmatpush1.msra.mxu0 0.0
    %3400 = vmatprep.subr.mxu0 0.0
    %3401 = vmatpush1.msra.mxu0 0.0
    %3402 = vmatprep.subr.mxu0 0.0
    %3403 = vmatpush1.msra.mxu0 0.0
    %3404 = vmatprep.subr.mxu0 0.0
    %3405 = vmatpush1.msra.mxu0 0.0
    %3406 = vmatprep.subr.mxu0 0.0
    %3407 = vmatpush1.msra.mxu0 0.0
    %3408 = vmatprep.subr.mxu0 0.0
    %3409 = vmatpush1.msra.mxu0 0.0
    %3410 = vmatprep.subr.mxu0 0.0
    %3411 = vmatpush1.msra.mxu0 0.0
    %3412 = vmatprep.subr.mxu0 0.0
    %3413 = vmatpush1.msra.mxu0 0.0
    %3414 = vmatprep.subr.mxu0 0.0
    %3415 = vmatpush1.msra.mxu0 0.0
    %3416 = vmatprep.mubr.f32.mxu0 0.0
    %3417 = vmatmul.mubr.f32.gmra.mrb[0].mxu0 %v3350
    %v3418 = vpop.f32.mrb[0].mxu0
    %v3419 = vadd.f32 0.0, %v3418
    %v3420 = vpop.f32.mrb[0].mxu0
    %v3421 = vadd.f32 0.0, %v3420
    %3422 = vdwg.mxu0
    %3423 = vmatprep.subr.mxu0 %v3346
    %3424 = vmatpush1.msra.mxu0 %v3345
    %3425 = vmatprep.subr.mxu0 0.0
    %3426 = vmatpush1.msra.mxu0 0.0
    %3427 = vmatprep.subr.mxu0 0.0
    %3428 = vmatpush1.msra.mxu0 0.0
    %3429 = vmatprep.subr.mxu0 0.0
    %3430 = vmatpush1.msra.mxu0 0.0
    %3431 = vmatprep.subr.mxu0 0.0
    %3432 = vmatpush1.msra.mxu0 0.0
    %3433 = vmatprep.subr.mxu0 0.0
    %3434 = vmatpush1.msra.mxu0 0.0
    %3435 = vmatprep.subr.mxu0 0.0
    %3436 = vmatpush1.msra.mxu0 0.0
    %3437 = vmatprep.subr.mxu0 0.0
    %3438 = vmatpush1.msra.mxu0 0.0
    %3439 = vmatprep.subr.mxu0 0.0
    %3440 = vmatpush1.msra.mxu0 0.0
    %3441 = vmatprep.subr.mxu0 0.0
    %3442 = vmatpush1.msra.mxu0 0.0
    %3443 = vmatprep.subr.mxu0 0.0
    %3444 = vmatpush1.msra.mxu0 0.0
    %3445 = vmatprep.subr.mxu0 0.0
    %3446 = vmatpush1.msra.mxu0 0.0
    %3447 = vmatprep.subr.mxu0 0.0
    %3448 = vmatpush1.msra.mxu0 0.0
    %3449 = vmatprep.subr.mxu0 0.0
    %3450 = vmatpush1.msra.mxu0 0.0
    %3451 = vmatprep.subr.mxu0 0.0
    %3452 = vmatpush1.msra.mxu0 0.0
    %3453 = vmatprep.subr.mxu0 0.0
    %3454 = vmatpush1.msra.mxu0 0.0
    %3455 = vmatprep.subr.mxu0 0.0
    %3456 = vmatpush1.msra.mxu0 0.0
    %3457 = vmatprep.subr.mxu0 0.0
    %3458 = vmatpush1.msra.mxu0 0.0
    %3459 = vmatprep.subr.mxu0 0.0
    %3460 = vmatpush1.msra.mxu0 0.0
    %3461 = vmatprep.subr.mxu0 0.0
    %3462 = vmatpush1.msra.mxu0 0.0
    %3463 = vmatprep.subr.mxu0 0.0
    %3464 = vmatpush1.msra.mxu0 0.0
    %3465 = vmatprep.subr.mxu0 0.0
    %3466 = vmatpush1.msra.mxu0 0.0
    %3467 = vmatprep.subr.mxu0 0.0
    %3468 = vmatpush1.msra.mxu0 0.0
    %3469 = vmatprep.subr.mxu0 0.0
    %3470 = vmatpush1.msra.mxu0 0.0
    %3471 = vmatprep.subr.mxu0 0.0
    %3472 = vmatpush1.msra.mxu0 0.0
    %3473 = vmatprep.subr.mxu0 0.0
    %3474 = vmatpush1.msra.mxu0 0.0
    %3475 = vmatprep.subr.mxu0 0.0
    %3476 = vmatpush1.msra.mxu0 0.0
    %3477 = vmatprep.subr.mxu0 0.0
    %3478 = vmatpush1.msra.mxu0 0.0
    %3479 = vmatprep.subr.mxu0 0.0
    %3480 = vmatpush1.msra.mxu0 0.0
    %3481 = vmatprep.subr.mxu0 0.0
    %3482 = vmatpush1.msra.mxu0 0.0
    %3483 = vmatprep.subr.mxu0 0.0
    %3484 = vmatpush1.msra.mxu0 0.0
    %3485 = vmatprep.subr.mxu0 0.0
    %3486 = vmatpush1.msra.mxu0 0.0
    %3487 = vmatprep.mubr.f32.mxu0 0.0
    %3488 = vmatmul.mubr.f32.gmra.mrb[0].mxu0 %v3350
    %v3489 = vpop.f32.mrb[0].mxu0
    %v3490 = vadd.f32 0.0, %v3489
    %v3491 = vpop.f32.mrb[0].mxu0
    %v3492 = vadd.f32 0.0, %v3491
    %3493 = vdwg.mxu0
    %v3494 = vadd.f32 %v3299, %v3419
    %v3495 = vadd.f32 %v3300, %v3421
    %v3496 = vadd.f32 %v3301, %v3490
    %v3497 = vadd.f32 %v3302, %v3492
    %3498 = vrot.lane.b32.xlu0 %v1956, 111
    %v3499 = vpop.permute.xlu0 %3498
    %3500 = vrot.lane.b32.xlu0 %v1957, 111
    %v3501 = vpop.permute.xlu0 %3500
    %3502 = vrot.lane.b32.xlu0 %v1958, 111
    %v3503 = vpop.permute.xlu0 %3502
    %3504 = vrot.lane.b32.xlu0 %v1959, 111
    %v3505 = vpop.permute.xlu0 %3504
    %v3506 = vsel %vm1709, %v3499, %v3501
    %v3507 = vsel %vm1709, %v3501, %v3503
    %v3508 = vsel %vm1709, %v3503, %v3505
    %v3514 = vsel %vm1709, %v3505, %v3499
    %s3515 = scalar_lea.vmem %s12, 32
    %v3516 = vld [vmem:[%s3515] ss:$8 sm:$0xf]
    %v3518 = vlaneseq
    %v3519 = vshrl.u32 %v3518, 7
    %v3520 = vsub.s32 0, %v3519
    %v3521 = vrot.slane %v3516, %v3520
    %v3522 = vlaneseq
    %v3523 = vshrl.u32 %v3522, 7
    %v3524 = vsub.s32 1, %v3523
    %v3525 = vrot.slane %v3516, %v3524
    %v3526 = vlaneseq
    %v3527 = vshrl.u32 %v3526, 7
    %v3528 = vsub.s32 2, %v3527
    %v3529 = vrot.slane %v3516, %v3528
    %v3530 = vlaneseq
    %v3531 = vshrl.u32 %v3530, 7
    %v3532 = vsub.s32 3, %v3531
    %v3533 = vrot.slane %v3516, %v3532
    %v3538 = vmul.f32 %v3506, %v3521
    %v3539 = vmul.f32 %v3507, %v3525
    %v3540 = vmul.f32 %v3508, %v3529
    %v3541 = vmul.f32 %v3514, %v3533
    %s3542 = scalar_lea.vmem %s2, 64
    %v3543 = vld [vmem:[%s3542] sm:$0xff]
    %v3545 = vsel %vm2054, %v3543, 0
    %3547 = vmatprep.subr.mxu0 %v3539
    %3548 = vmatpush1.msra.mxu0 %v3538
    %3549 = vmatprep.subr.mxu0 0.0
    %3550 = vmatpush1.msra.mxu0 0.0
    %3551 = vmatprep.subr.mxu0 0.0
    %3552 = vmatpush1.msra.mxu0 0.0
    %3553 = vmatprep.subr.mxu0 0.0
    %3554 = vmatpush1.msra.mxu0 0.0
    %3555 = vmatprep.subr.mxu0 0.0
    %3556 = vmatpush1.msra.mxu0 0.0
    %3557 = vmatprep.subr.mxu0 0.0
    %3558 = vmatpush1.msra.mxu0 0.0
    %3559 = vmatprep.subr.mxu0 0.0
    %3560 = vmatpush1.msra.mxu0 0.0
    %3561 = vmatprep.subr.mxu0 0.0
    %3562 = vmatpush1.msra.mxu0 0.0
    %3563 = vmatprep.subr.mxu0 0.0
    %3564 = vmatpush1.msra.mxu0 0.0
    %3565 = vmatprep.subr.mxu0 0.0
    %3566 = vmatpush1.msra.mxu0 0.0
    %3567 = vmatprep.subr.mxu0 0.0
    %3568 = vmatpush1.msra.mxu0 0.0
    %3569 = vmatprep.subr.mxu0 0.0
    %3570 = vmatpush1.msra.mxu0 0.0
    %3571 = vmatprep.subr.mxu0 0.0
    %3572 = vmatpush1.msra.mxu0 0.0
    %3573 = vmatprep.subr.mxu0 0.0
    %3574 = vmatpush1.msra.mxu0 0.0
    %3575 = vmatprep.subr.mxu0 0.0
    %3576 = vmatpush1.msra.mxu0 0.0
    %3577 = vmatprep.subr.mxu0 0.0
    %3578 = vmatpush1.msra.mxu0 0.0
    %3579 = vmatprep.subr.mxu0 0.0
    %3580 = vmatpush1.msra.mxu0 0.0
    %3581 = vmatprep.subr.mxu0 0.0
    %3582 = vmatpush1.msra.mxu0 0.0
    %3583 = vmatprep.subr.mxu0 0.0
    %3584 = vmatpush1.msra.mxu0 0.0
    %3585 = vmatprep.subr.mxu0 0.0
    %3586 = vmatpush1.msra.mxu0 0.0
    %3587 = vmatprep.subr.mxu0 0.0
    %3588 = vmatpush1.msra.mxu0 0.0
    %3589 = vmatprep.subr.mxu0 0.0
    %3590 = vmatpush1.msra.mxu0 0.0
    %3591 = vmatprep.subr.mxu0 0.0
    %3592 = vmatpush1.msra.mxu0 0.0
    %3593 = vmatprep.subr.mxu0 0.0
    %3594 = vmatpush1.msra.mxu0 0.0
    %3595 = vmatprep.subr.mxu0 0.0
    %3596 = vmatpush1.msra.mxu0 0.0
    %3597 = vmatprep.subr.mxu0 0.0
    %3598 = vmatpush1.msra.mxu0 0.0
    %3599 = vmatprep.subr.mxu0 0.0
    %3600 = vmatpush1.msra.mxu0 0.0
    %3601 = vmatprep.subr.mxu0 0.0
    %3602 = vmatpush1.msra.mxu0 0.0
    %3603 = vmatprep.subr.mxu0 0.0
    %3604 = vmatpush1.msra.mxu0 0.0
    %3605 = vmatprep.subr.mxu0 0.0
    %3606 = vmatpush1.msra.mxu0 0.0
    %3607 = vmatprep.subr.mxu0 0.0
    %3608 = vmatpush1.msra.mxu0 0.0
    %3609 = vmatprep.subr.mxu0 0.0
    %3610 = vmatpush1.msra.mxu0 0.0
    %3611 = vmatprep.mubr.f32.mxu0 0.0
    %3612 = vmatmul.mubr.f32.gmra.mrb[0].mxu0 %v3545
    %v3613 = vpop.f32.mrb[0].mxu0
    %v3614 = vadd.f32 0.0, %v3613
    %v3615 = vpop.f32.mrb[0].mxu0
    %v3616 = vadd.f32 0.0, %v3615
    %3617 = vdwg.mxu0
    %3618 = vmatprep.subr.mxu0 %v3541
    %3619 = vmatpush1.msra.mxu0 %v3540
    %3620 = vmatprep.subr.mxu0 0.0
    %3621 = vmatpush1.msra.mxu0 0.0
    %3622 = vmatprep.subr.mxu0 0.0
    %3623 = vmatpush1.msra.mxu0 0.0
    %3624 = vmatprep.subr.mxu0 0.0
    %3625 = vmatpush1.msra.mxu0 0.0
    %3626 = vmatprep.subr.mxu0 0.0
    %3627 = vmatpush1.msra.mxu0 0.0
    %3628 = vmatprep.subr.mxu0 0.0
    %3629 = vmatpush1.msra.mxu0 0.0
    %3630 = vmatprep.subr.mxu0 0.0
    %3631 = vmatpush1.msra.mxu0 0.0
    %3632 = vmatprep.subr.mxu0 0.0
    %3633 = vmatpush1.msra.mxu0 0.0
    %3634 = vmatprep.subr.mxu0 0.0
    %3635 = vmatpush1.msra.mxu0 0.0
    %3636 = vmatprep.subr.mxu0 0.0
    %3637 = vmatpush1.msra.mxu0 0.0
    %3638 = vmatprep.subr.mxu0 0.0
    %3639 = vmatpush1.msra.mxu0 0.0
    %3640 = vmatprep.subr.mxu0 0.0
    %3641 = vmatpush1.msra.mxu0 0.0
    %3642 = vmatprep.subr.mxu0 0.0
    %3643 = vmatpush1.msra.mxu0 0.0
    %3644 = vmatprep.subr.mxu0 0.0
    %3645 = vmatpush1.msra.mxu0 0.0
    %3646 = vmatprep.subr.mxu0 0.0
    %3647 = vmatpush1.msra.mxu0 0.0
    %3648 = vmatprep.subr.mxu0 0.0
    %3649 = vmatpush1.msra.mxu0 0.0
    %3650 = vmatprep.subr.mxu0 0.0
    %3651 = vmatpush1.msra.mxu0 0.0
    %3652 = vmatprep.subr.mxu0 0.0
    %3653 = vmatpush1.msra.mxu0 0.0
    %3654 = vmatprep.subr.mxu0 0.0
    %3655 = vmatpush1.msra.mxu0 0.0
    %3656 = vmatprep.subr.mxu0 0.0
    %3657 = vmatpush1.msra.mxu0 0.0
    %3658 = vmatprep.subr.mxu0 0.0
    %3659 = vmatpush1.msra.mxu0 0.0
    %3660 = vmatprep.subr.mxu0 0.0
    %3661 = vmatpush1.msra.mxu0 0.0
    %3662 = vmatprep.subr.mxu0 0.0
    %3663 = vmatpush1.msra.mxu0 0.0
    %3664 = vmatprep.subr.mxu0 0.0
    %3665 = vmatpush1.msra.mxu0 0.0
    %3666 = vmatprep.subr.mxu0 0.0
    %3667 = vmatpush1.msra.mxu0 0.0
    %3668 = vmatprep.subr.mxu0 0.0
    %3669 = vmatpush1.msra.mxu0 0.0
    %3670 = vmatprep.subr.mxu0 0.0
    %3671 = vmatpush1.msra.mxu0 0.0
    %3672 = vmatprep.subr.mxu0 0.0
    %3673 = vmatpush1.msra.mxu0 0.0
    %3674 = vmatprep.subr.mxu0 0.0
    %3675 = vmatpush1.msra.mxu0 0.0
    %3676 = vmatprep.subr.mxu0 0.0
    %3677 = vmatpush1.msra.mxu0 0.0
    %3678 = vmatprep.subr.mxu0 0.0
    %3679 = vmatpush1.msra.mxu0 0.0
    %3680 = vmatprep.subr.mxu0 0.0
    %3681 = vmatpush1.msra.mxu0 0.0
    %3682 = vmatprep.mubr.f32.mxu0 0.0
    %3683 = vmatmul.mubr.f32.gmra.mrb[0].mxu0 %v3545
    %v3684 = vpop.f32.mrb[0].mxu0
    %v3685 = vadd.f32 0.0, %v3684
    %v3686 = vpop.f32.mrb[0].mxu0
    %v3687 = vadd.f32 0.0, %v3686
    %3688 = vdwg.mxu0
    %v3689 = vadd.f32 %v3494, %v3614
    %v3690 = vadd.f32 %v3495, %v3616
    %v3691 = vadd.f32 %v3496, %v3685
    %v3692 = vadd.f32 %v3497, %v3687
    %v3693 = vadd.f32 %v3689, %v3690
    %v3694 = vadd.f32 %v3693, %v3691
    %v3695 = vadd.f32 %v3694, %v3692
    %3696 = vadd.xlane.f32.xlu0 %v3695
    %v3697 = vpop.xlane.xlu0 %3696
    %v3698 = vmul.f32 %v3697, %v1914
    %v3699 = vsub.f32 %v3689, %v3698
    %v3700 = vsub.f32 %v3690, %v3698
    %v3701 = vsub.f32 %v3691, %v3698
    %v3702 = vsub.f32 %v3692, %v3698
    %v3703 = vmul.f32 %v3699, %v3699
    %v3704 = vmul.f32 %v3700, %v3700
    %v3705 = vmul.f32 %v3701, %v3701
    %v3706 = vmul.f32 %v3702, %v3702
    %v3707 = vadd.f32 %v3703, %v3704
    %v3708 = vadd.f32 %v3707, %v3705
    %v3709 = vadd.f32 %v3708, %v3706
    %3710 = vadd.xlane.f32.xlu0 %v3709
    %v3711 = vpop.xlane.xlu0 %3710
    %v3712 = vmul.f32 %v3711, %v1914
    %v3713 = vadd.f32 %v3712, 1e-05
    %v3714 = vrsqrt.pop %v3713
    %v3715 = vmul.f32 %v3699, %v3714
    %v3716 = vmul.f32 %v3700, %v3714
    %v3717 = vmul.f32 %v3701, %v3714
    %v3718 = vmul.f32 %v3702, %v3714
    %v3719 = vld [vmem:[%s9] sm:$0xff]
    %3721 = vset.pattern.permute.xlu0 0
    %3722 = vperm.xlu0 %3721, %v3719
    %v3723 = vpop.permute.xlu0 %3722
    %v3725 = vmul.f32 %v3715, %v3723
    %v3726 = vmul.f32 %v3716, %v3723
    %v3727 = vmul.f32 %v3717, %v3723
    %v3728 = vmul.f32 %v3718, %v3723
    %v3729 = vld [vmem:[%s10] sm:$0xff]
    %3731 = vset.pattern.permute.xlu0 0
    %3732 = vperm.xlu0 %3731, %v3729
    %v3733 = vpop.permute.xlu0 %3732
    %v3735 = vadd.f32 %v3725, %v3733
    %v3736 = vadd.f32 %v3726, %v3733
    %v3737 = vadd.f32 %v3727, %v3733
    %v3738 = vadd.f32 %v3728, %v3733
    %v3739 = vld [vmem:[%s3] sm:$0xff]
    %v3740 = vld [vmem:[%s6] sm:$0xff]
    %3742 = vset.pattern.permute.xlu0 0
    %3743 = vperm.xlu0 %3742, %v3740
    %v3744 = vpop.permute.xlu0 %3743
    %v3747 = vsel %vm155, %v3739, 0
    %v3749 = vsel %vm159, %v54, 0
    %v3751 = vsel %vm159, %v58, 0
    %v3753 = vsel %vm159, %v56, 0
    %v3755 = vsel %vm159, %v61, 0
    %3757 = vmatprep.subr.mxu0 %v3751
    %3758 = vmatpush1.msra.mxu0 %v3749
    %3759 = vmatprep.subr.mxu0 0.0
    %3760 = vmatpush1.msra.mxu0 0.0
    %3761 = vmatprep.subr.mxu0 0.0
    %3762 = vmatpush1.msra.mxu0 0.0
    %3763 = vmatprep.subr.mxu0 0.0
    %3764 = vmatpush1.msra.mxu0 0.0
    %3765 = vmatprep.subr.mxu0 0.0
    %3766 = vmatpush1.msra.mxu0 0.0
    %3767 = vmatprep.subr.mxu0 0.0
    %3768 = vmatpush1.msra.mxu0 0.0
    %3769 = vmatprep.subr.mxu0 0.0
    %3770 = vmatpush1.msra.mxu0 0.0
    %3771 = vmatprep.subr.mxu0 0.0
    %3772 = vmatpush1.msra.mxu0 0.0
    %3773 = vmatprep.subr.mxu0 0.0
    %3774 = vmatpush1.msra.mxu0 0.0
    %3775 = vmatprep.subr.mxu0 0.0
    %3776 = vmatpush1.msra.mxu0 0.0
    %3777 = vmatprep.subr.mxu0 0.0
    %3778 = vmatpush1.msra.mxu0 0.0
    %3779 = vmatprep.subr.mxu0 0.0
    %3780 = vmatpush1.msra.mxu0 0.0
    %3781 = vmatprep.subr.mxu0 0.0
    %3782 = vmatpush1.msra.mxu0 0.0
    %3783 = vmatprep.subr.mxu0 0.0
    %3784 = vmatpush1.msra.mxu0 0.0
    %3785 = vmatprep.subr.mxu0 0.0
    %3786 = vmatpush1.msra.mxu0 0.0
    %3787 = vmatprep.subr.mxu0 0.0
    %3788 = vmatpush1.msra.mxu0 0.0
    %3789 = vmatprep.subr.mxu0 0.0
    %3790 = vmatpush1.msra.mxu0 0.0
    %3791 = vmatprep.subr.mxu0 0.0
    %3792 = vmatpush1.msra.mxu0 0.0
    %3793 = vmatprep.subr.mxu0 0.0
    %3794 = vmatpush1.msra.mxu0 0.0
    %3795 = vmatprep.subr.mxu0 0.0
    %3796 = vmatpush1.msra.mxu0 0.0
    %3797 = vmatprep.subr.mxu0 0.0
    %3798 = vmatpush1.msra.mxu0 0.0
    %3799 = vmatprep.subr.mxu0 0.0
    %3800 = vmatpush1.msra.mxu0 0.0
    %3801 = vmatprep.subr.mxu0 0.0
    %3802 = vmatpush1.msra.mxu0 0.0
    %3803 = vmatprep.subr.mxu0 0.0
    %3804 = vmatpush1.msra.mxu0 0.0
    %3805 = vmatprep.subr.mxu0 0.0
    %3806 = vmatpush1.msra.mxu0 0.0
    %3807 = vmatprep.subr.mxu0 0.0
    %3808 = vmatpush1.msra.mxu0 0.0
    %3809 = vmatprep.subr.mxu0 0.0
    %3810 = vmatpush1.msra.mxu0 0.0
    %3811 = vmatprep.subr.mxu0 0.0
    %3812 = vmatpush1.msra.mxu0 0.0
    %3813 = vmatprep.subr.mxu0 0.0
    %3814 = vmatpush1.msra.mxu0 0.0
    %3815 = vmatprep.subr.mxu0 0.0
    %3816 = vmatpush1.msra.mxu0 0.0
    %3817 = vmatprep.subr.mxu0 0.0
    %3818 = vmatpush1.msra.mxu0 0.0
    %3819 = vmatprep.subr.mxu0 0.0
    %3820 = vmatpush1.msra.mxu0 0.0
    %3821 = vmatprep.mubr.f32.mxu0 0.0
    %3822 = vmatmul.mubr.f32.gmra.mrb[0].mxu0 %v3747
    %v3823 = vpop.f32.mrb[0].mxu0
    %v3824 = vadd.f32 %v3744, %v3823
    %v3825 = vpop.f32.mrb[0].mxu0
    %v3826 = vadd.f32 %v3744, %v3825
    %3827 = vdwg.mxu0
    %3828 = vmatprep.subr.mxu0 %v3755
    %3829 = vmatpush1.msra.mxu0 %v3753
    %3830 = vmatprep.subr.mxu0 0.0
    %3831 = vmatpush1.msra.mxu0 0.0
    %3832 = vmatprep.subr.mxu0 0.0
    %3833 = vmatpush1.msra.mxu0 0.0
    %3834 = vmatprep.subr.mxu0 0.0
    %3835 = vmatpush1.msra.mxu0 0.0
    %3836 = vmatprep.subr.mxu0 0.0
    %3837 = vmatpush1.msra.mxu0 0.0
    %3838 = vmatprep.subr.mxu0 0.0
    %3839 = vmatpush1.msra.mxu0 0.0
    %3840 = vmatprep.subr.mxu0 0.0
    %3841 = vmatpush1.msra.mxu0 0.0
    %3842 = vmatprep.subr.mxu0 0.0
    %3843 = vmatpush1.msra.mxu0 0.0
    %3844 = vmatprep.subr.mxu0 0.0
    %3845 = vmatpush1.msra.mxu0 0.0
    %3846 = vmatprep.subr.mxu0 0.0
    %3847 = vmatpush1.msra.mxu0 0.0
    %3848 = vmatprep.subr.mxu0 0.0
    %3849 = vmatpush1.msra.mxu0 0.0
    %3850 = vmatprep.subr.mxu0 0.0
    %3851 = vmatpush1.msra.mxu0 0.0
    %3852 = vmatprep.subr.mxu0 0.0
    %3853 = vmatpush1.msra.mxu0 0.0
    %3854 = vmatprep.subr.mxu0 0.0
    %3855 = vmatpush1.msra.mxu0 0.0
    %3856 = vmatprep.subr.mxu0 0.0
    %3857 = vmatpush1.msra.mxu0 0.0
    %3858 = vmatprep.subr.mxu0 0.0
    %3859 = vmatpush1.msra.mxu0 0.0
    %3860 = vmatprep.subr.mxu0 0.0
    %3861 = vmatpush1.msra.mxu0 0.0
    %3862 = vmatprep.subr.mxu0 0.0
    %3863 = vmatpush1.msra.mxu0 0.0
    %3864 = vmatprep.subr.mxu0 0.0
    %3865 = vmatpush1.msra.mxu0 0.0
    %3866 = vmatprep.subr.mxu0 0.0
    %3867 = vmatpush1.msra.mxu0 0.0
    %3868 = vmatprep.subr.mxu0 0.0
    %3869 = vmatpush1.msra.mxu0 0.0
    %3870 = vmatprep.subr.mxu0 0.0
    %3871 = vmatpush1.msra.mxu0 0.0
    %3872 = vmatprep.subr.mxu0 0.0
    %3873 = vmatpush1.msra.mxu0 0.0
    %3874 = vmatprep.subr.mxu0 0.0
    %3875 = vmatpush1.msra.mxu0 0.0
    %3876 = vmatprep.subr.mxu0 0.0
    %3877 = vmatpush1.msra.mxu0 0.0
    %3878 = vmatprep.subr.mxu0 0.0
    %3879 = vmatpush1.msra.mxu0 0.0
    %3880 = vmatprep.subr.mxu0 0.0
    %3881 = vmatpush1.msra.mxu0 0.0
    %3882 = vmatprep.subr.mxu0 0.0
    %3883 = vmatpush1.msra.mxu0 0.0
    %3884 = vmatprep.subr.mxu0 0.0
    %3885 = vmatpush1.msra.mxu0 0.0
    %3886 = vmatprep.subr.mxu0 0.0
    %3887 = vmatpush1.msra.mxu0 0.0
    %3888 = vmatprep.subr.mxu0 0.0
    %3889 = vmatpush1.msra.mxu0 0.0
    %3890 = vmatprep.subr.mxu0 0.0
    %3891 = vmatpush1.msra.mxu0 0.0
    %3892 = vmatprep.mubr.f32.mxu0 0.0
    %3893 = vmatmul.mubr.f32.gmra.mrb[0].mxu0 %v3747
    %v3894 = vpop.f32.mrb[0].mxu0
    %v3895 = vadd.f32 %v3744, %v3894
    %v3896 = vpop.f32.mrb[0].mxu0
    %v3897 = vadd.f32 %v3744, %v3896
    %3898 = vdwg.mxu0
    %v3899 = vadd.f32 %v3735, %v3824
    %v3900 = vadd.f32 %v3736, %v3826
    %v3901 = vadd.f32 %v3737, %v3895
    %v3902 = vadd.f32 %v3738, %v3897
    %v3903 = vmax.f32 %v3899, 0.0
    %v3904 = vmax.f32 %v3900, 0.0
    %v3905 = vmax.f32 %v3901, 0.0
    %v3906 = vmax.f32 %v3902, 0.0
    %3907 = vst [vmem:[#allocation5] sm:$0xff] %v3903
    %3908 = vst [vmem:[#allocation5 + $0x8] sm:$0xff] %v3904
    %s3909 = scalar_lea.vmem [#allocation5], 16
    %3910 = vst [vmem:[%s3909] sm:$0xff] %v3905
    %3911 = vst [vmem:[%s3909 + $0x8] sm:$0xff] %v3906
    // Predicated region
    $region58: #{tpu_custom_call.1} parent=1 // pred_check
      _
    $region59: #{tpu_custom_call.1} parent=1 // pred_check_branch
      %3913 = sbr.rel (0) target = $region61
    $region60: #{tpu_custom_call.1} parent=1 // pred_region
      %s3915 = ssub.s32 512, 512
      %3916 = vsyncadd [#allocation6], %s3915
      %s3917 = sshll.u32 [#allocation5], 4
      %s3918 = int_to_ptr.vmem [resolvable:$true] %s3917
      %3923 = dma.vmem_to_hbm [thread:$0]  %s3918, 512, %s14, [#allocation6], 256, 256, 16
    $region61: #{tpu_custom_call.1} parent=1 // pred_fallthru
      _
    // Predicated region
    $region62: #{tpu_custom_call.1} parent=1 // pred_check
      _
    $region63: #{tpu_custom_call.1} parent=1 // pred_check_branch
      %3925 = sbr.rel (0) target = $region65
    $region64: #{tpu_custom_call.1} parent=1 // pred_region
      %3926 = dma.done [#allocation6], 512
    $region65: #{tpu_custom_call.1} parent=1 // pred_fallthru
      _
    %3927 = vsyncpa [#allocation6], 1

</llo_original>
